<compile_context>
chip_gen: v6e
topology: v6e:2x2x1
jax: 0.10.0
libtpu: 0.0.40
codegen_flags: <defaults>
</compile_context>

<pallas_src>
import functools
import math

import jax
import jax.numpy as jnp
from jax.experimental import pallas as pl
from jax.experimental.pallas import tpu as pltpu

# ---------------- model hyperparameters (small, deterministic) ----------------
INPUT_DIM   = 16
EMBED_DIM   = 32
N_HEADS     = 4
NUM_LAYERS  = 2
DIM_FF      = 64
BATCH       = 2
SEQ         = 8
LN_EPS      = 1e-5
LANES       = 128     # packed-slab lane width


# ------------------------- packed weight slab layout ---------------------------
def _round_up(n, m):
    return -(-n // m) * m


def _weight_layout(num_layers, d_in, d_model, d_ff):
    """Deterministic row layout of the packed [rows, 128] weight slab.
    Every tensor starts on a sublane(8)-aligned row; widths are <= 128 lanes."""
    entries = [("emb_w", d_in, d_model), ("emb_b", 1, d_model)]
    for li in range(num_layers):
        entries += [
            (f"l{li}_wqkv", d_model, 3 * d_model),
            (f"l{li}_bqkv", 1, 3 * d_model),
            (f"l{li}_wo",   d_model, d_model),
            (f"l{li}_bo",   1, d_model),
            (f"l{li}_g1",   1, d_model),
            (f"l{li}_bt1",  1, d_model),
            (f"l{li}_w1",   d_model, d_ff),
            (f"l{li}_b1",   1, d_ff),
            (f"l{li}_w2",   d_ff, d_model),
            (f"l{li}_b2",   1, d_model),
            (f"l{li}_g2",   1, d_model),
            (f"l{li}_bt2",  1, d_model),
        ]
    layout, row = {}, 0
    for name, r, c in entries:
        assert c <= LANES, f"{name}: width {c} exceeds one lane tile"
        layout[name] = (row, r, c)
        row += _round_up(r, 8)                 # sublane-align every tensor
    return layout, row


def pack_params(params):
    """One-time host-side packing: transpose Linear weights to [in, out], fold
    the 1/sqrt(head_dim) scale into the Q projection, and write everything into
    a single lane-padded [total_rows, 128] f32 slab."""
    layout, total_rows = _weight_layout(NUM_LAYERS, INPUT_DIM, EMBED_DIM, DIM_FF)
    slab = jnp.zeros((total_rows, LANES), jnp.float32)

    def put(s, name, arr):
        row, r, c = layout[name]
        assert arr.shape == (r, c), (name, arr.shape, (r, c))
        return s.at[row:row + r, :c].set(arr.astype(jnp.float32))

    scale = 1.0 / math.sqrt(EMBED_DIM // N_HEADS)
    slab = put(slab, "emb_w", params["emb_w"].T)
    slab = put(slab, "emb_b", params["emb_b"])
    for li, lp in enumerate(params["layers"]):
        wqkv = lp["wqkv"].T                                  # [d_model, 3*d_model]
        bqkv = lp["bqkv"]
        wqkv = wqkv.at[:, :EMBED_DIM].multiply(scale)        # fold scale into Q
        bqkv = bqkv.at[:, :EMBED_DIM].multiply(scale)
        slab = put(slab, f"l{li}_wqkv", wqkv)
        slab = put(slab, f"l{li}_bqkv", bqkv)
        slab = put(slab, f"l{li}_wo",  lp["wo"].T)
        slab = put(slab, f"l{li}_bo",  lp["bo"])
        slab = put(slab, f"l{li}_g1",  lp["g1"])
        slab = put(slab, f"l{li}_bt1", lp["bt1"])
        slab = put(slab, f"l{li}_w1",  lp["w1"].T)
        slab = put(slab, f"l{li}_b1",  lp["b1"])
        slab = put(slab, f"l{li}_w2",  lp["w2"].T)
        slab = put(slab, f"l{li}_b2",  lp["b2"])
        slab = put(slab, f"l{li}_g2",  lp["g2"])
        slab = put(slab, f"l{li}_bt2", lp["bt2"])
    return slab, layout


# ------------------------------- kernel ----------------------------------------
def _layer_norm(x, gamma, beta):
    mu = jnp.mean(x, axis=-1, keepdims=True)
    xc = x - mu
    var = jnp.mean(xc * xc, axis=-1, keepdims=True)
    return xc * jax.lax.rsqrt(var + LN_EPS) * gamma + beta


def _fused_encoder_kernel(layout, num_layers, n_heads, batch, seq, d_model,
                          x_ref, w_ref, o_ref):
    """Embedding Linear + all encoder layers; activations stay (B*S, D) 2-D."""
    hd = d_model // n_heads

    def w(name):
        row, r, c = layout[name]
        return w_ref[row:row + r, :c]           # static, sublane-aligned slice

    # Embedding: one fat (B*S, D_in) @ (D_in, D) matmul.
    h = jnp.dot(x_ref[...], w("emb_w"),
                preferred_element_type=jnp.float32) + w("emb_b")

    for li in range(num_layers):                # static unroll (NUM_LAYERS small)
        # ---- multi-head self-attention ---------------------------------------
        qkv = jnp.dot(h, w(f"l{li}_wqkv"),
                      preferred_element_type=jnp.float32) + w(f"l{li}_bqkv")
        q = qkv[:, 0 * d_model:1 * d_model].reshape(batch, seq, d_model)
        k = qkv[:, 1 * d_model:2 * d_model].reshape(batch, seq, d_model)
        v = qkv[:, 2 * d_model:3 * d_model].reshape(batch, seq, d_model)

        # Static per-head loop of batch-dim einsums.  At these shapes Mosaic
        # unrolls any head-batched dot_general into the same sixteen 8x8 MXU
        # matmuls, so a single merged einsum pair would not reduce matmul count
        # -- it would only add a (b,s,h,d)->(b,h,s,d) relayout.
        head_outs = []
        for hh in range(n_heads):
            sl = slice(hh * hd, (hh + 1) * hd)
            # 1/sqrt(hd) already folded into the Q projection host-side.
            s = jnp.einsum('bqd,bkd->bqk', q[:, :, sl], k[:, :, sl],
                           preferred_element_type=jnp.float32)
            s = s - jnp.max(s, axis=-1, keepdims=True)
            p = jnp.exp(s)
            # Exact normalization so the reference check is tight.  Production:
            # p = p * pl.reciprocal(jnp.sum(p, -1, keepdims=True), approx=True)
            p = p / jnp.sum(p, axis=-1, keepdims=True)
            head_outs.append(jnp.einsum('bqk,bkd->bqd', p, v[:, :, sl],
                                        preferred_element_type=jnp.float32))
        attn = jnp.concatenate(head_outs, axis=-1).reshape(batch * seq, d_model)
        attn = jnp.dot(attn, w(f"l{li}_wo"),
                       preferred_element_type=jnp.float32) + w(f"l{li}_bo")

        # ---- residual + LayerNorm 1 (post-norm, norm_first=False) -------------
        x1 = _layer_norm(h + attn, w(f"l{li}_g1"), w(f"l{li}_bt1"))

        # ---- feed-forward: Linear -> ReLU -> Linear ----------------------------
        ff = jnp.dot(x1, w(f"l{li}_w1"),
                     preferred_element_type=jnp.float32) + w(f"l{li}_b1")
        ff = jnp.maximum(ff, 0.0)
        ff = jnp.dot(ff, w(f"l{li}_w2"),
                     preferred_element_type=jnp.float32) + w(f"l{li}_b2")

        # ---- residual + LayerNorm 2 --------------------------------------------
        h = _layer_norm(x1 + ff, w(f"l{li}_g2"), w(f"l{li}_bt2"))

    o_ref[...] = h                              # (B*S, D); un-flattened outside


# ------------------------------- host wrapper ----------------------------------
def _cost_estimate(batch, seq, d_in, d_model, d_ff, n_heads, num_layers, packed_w):
    hd = d_model // n_heads
    flops = 2 * batch * seq * d_in * d_model                       # embedding
    per_layer = (2 * batch * seq * d_model * 3 * d_model           # qkv projection
                 + 2 * 2 * batch * n_heads * seq * seq * hd        # qk^T and p@v
                 + 2 * batch * seq * d_model * d_model             # out projection
                 + 2 * 2 * batch * seq * d_model * d_ff)           # feed-forward
    flops += num_layers * per_layer
    transcendentals = num_layers * batch * seq * n_heads * seq     # softmax exp
    bytes_accessed = (batch * seq * (d_in + d_model) * 4
                      + int(packed_w.size) * 4)
    return pl.CostEstimate(flops=flops, transcendentals=transcendentals,
                           bytes_accessed=bytes_accessed)


def transformer_encoder_forward(x, packed_w, layout):
    """Fused embed + NUM_LAYERS encoder layers in ONE pallas_call, 2 inputs total."""
    batch, seq, d_in = x.shape
    d_model = EMBED_DIM
    bs = batch * seq
    x2d = x.reshape(bs, d_in)        # wrapper-side reshape: free layout plumbing

    kernel = functools.partial(_fused_encoder_kernel, layout, NUM_LAYERS,
                               N_HEADS, batch, seq, d_model)
    # NOTE: block last dims (16 / 32 / 128) are legal only because they equal
    # the full array dims; if this model is scaled and the arrays get tiled,
    # blocks must become multiples of (8, 128).
    out2d = pl.pallas_call(
        kernel,
        out_shape=jax.ShapeDtypeStruct((bs, d_model), jnp.float32),
        grid=(1,),                   # single fat block on all chips (no megacore split)
        in_specs=[pl.BlockSpec((bs, d_in), lambda i: (0, 0)),
                  pl.BlockSpec(packed_w.shape, lambda i: (0, 0))],
        out_specs=pl.BlockSpec((bs, d_model), lambda i: (0, 0)),
        compiler_params=pltpu.CompilerParams(dimension_semantics=("arbitrary",)),
        cost_estimate=_cost_estimate(batch, seq, d_in, d_model, DIM_FF,
                                     N_HEADS, NUM_LAYERS, packed_w),
    )(x2d, packed_w)
    return out2d.reshape(batch, seq, d_model)


# ------------------------------- parameters ------------------------------------
def init_params(key):
    """Parameters in PyTorch layout (Linear weights are [out_features, in_features])."""
    def nrm(k, shape, scale=0.05):
        return scale * jax.random.normal(k, shape, dtype=jnp.float32)

    keys = jax.random.split(key, 2 + NUM_LAYERS)
    params = {
        "emb_w": nrm(keys[0], (EMBED_DIM, INPUT_DIM)),
        "emb_b": nrm(keys[1], (1, EMBED_DIM)),
        "layers": [],
    }
    for li in range(NUM_LAYERS):
        lk = jax.random.split(keys[2 + li], 8)
        params["layers"].append({
            "wqkv": nrm(lk[0], (3 * EMBED_DIM, EMBED_DIM)),   # in_proj_weight
            "bqkv": nrm(lk[1], (1, 3 * EMBED_DIM)),           # in_proj_bias
            "wo":   nrm(lk[2], (EMBED_DIM, EMBED_DIM)),       # out_proj.weight
            "bo":   nrm(lk[3], (1, EMBED_DIM)),               # out_proj.bias
            "g1":   jnp.ones((1, EMBED_DIM), jnp.float32),    # norm1.weight
            "bt1":  jnp.zeros((1, EMBED_DIM), jnp.float32),   # norm1.bias
            "w1":   nrm(lk[4], (DIM_FF, EMBED_DIM)),          # linear1.weight
            "b1":   nrm(lk[5], (1, DIM_FF)),                  # linear1.bias
            "w2":   nrm(lk[6], (EMBED_DIM, DIM_FF)),          # linear2.weight
            "b2":   nrm(lk[7], (1, EMBED_DIM)),               # linear2.bias
            "g2":   jnp.ones((1, EMBED_DIM), jnp.float32),    # norm2.weight
            "bt2":  jnp.zeros((1, EMBED_DIM), jnp.float32),   # norm2.bias
        })
    return params


def reference_forward(x, params):
    """Pure-JAX reference matching PyTorch TransformerEncoder eval semantics."""
    def ln(t, g, b):
        mu = jnp.mean(t, axis=-1, keepdims=True)
        var = jnp.mean((t - mu) ** 2, axis=-1, keepdims=True)
        return (t - mu) / jnp.sqrt(var + LN_EPS) * g + b

    d = EMBED_DIM
    hd = d // N_HEADS
    h = x @ params["emb_w"].T + params["emb_b"]
    for lp in params["layers"]:
        qkv = h @ lp["wqkv"].T + lp["bqkv"]
        q, k, v = qkv[..., :d], qkv[..., d:2 * d], qkv[..., 2 * d:]
        outs = []
        for hh in range(N_HEADS):
            sl = slice(hh * hd, (hh + 1) * hd)
            s = jnp.einsum('bqd,bkd->bqk', q[..., sl], k[..., sl]) / math.sqrt(hd)
            p = jax.nn.softmax(s, axis=-1)
            outs.append(jnp.einsum('bqk,bkd->bqd', p, v[..., sl]))
        attn = jnp.concatenate(outs, axis=-1) @ lp["wo"].T + lp["bo"]
        x1 = ln(h + attn, lp["g1"], lp["bt1"])
        ff = jnp.maximum(x1 @ lp["w1"].T + lp["b1"], 0.0) @ lp["w2"].T + lp["b2"]
        h = ln(x1 + ff, lp["g2"], lp["bt2"])
    return h


# ---------------------------------- main ----------------------------------------
if __name__ == "__main__":
    key = jax.random.PRNGKey(0)
    pkey, xkey = jax.random.split(key)
    params = init_params(pkey)
    packed_w, layout = pack_params(params)       # host-side, done once
    x = jax.random.normal(xkey, (BATCH, SEQ, INPUT_DIM), dtype=jnp.float32)

    out = transformer_encoder_forward(x, packed_w, layout)
    out = jax.block_until_ready(out)

    assert out.shape == (BATCH, SEQ, EMBED_DIM), out.shape
    assert bool(jnp.all(jnp.isfinite(out)))

    # Numerical check vs. pure-JAX reference.  Exact softmax normalization in
    # the kernel -> tight tolerance (20x tighter than before).
    with jax.default_matmul_precision("highest"):
        ref = reference_forward(x, params)
    assert bool(jnp.allclose(out, ref, rtol=1e-3, atol=1e-3)), \
        float(jnp.max(jnp.abs(out - ref)))

    print("KERNEL_OK")
</pallas_src>

<mosaic_0001>
module attributes {stable_mosaic.version = 11 : i64} {
  func.func @_fused_encoder_kernel(%arg0: i32, %arg1: memref<16x16xf32, #tpu.memory_space<vmem>>, %arg2: memref<472x128xf32, #tpu.memory_space<vmem>>, %arg3: memref<16x32xf32, #tpu.memory_space<vmem>>) attributes {dimension_semantics = [#tpu.dimension_semantics<arbitrary>], iteration_bounds = array<i64: 1>, scalar_prefetch = 0 : i64, scratch_operands = 0 : i64, tpu.core_type = #tpu.core_type<tc>, window_params = [{pipeline_mode = #tpu.pipeline_mode<synchronous>, transform_indices = @transform_0, window_bounds = array<i64: 16, 16>}, {pipeline_mode = #tpu.pipeline_mode<synchronous>, transform_indices = @transform_1, window_bounds = array<i64: 472, 128>}, {pipeline_mode = #tpu.pipeline_mode<synchronous>, transform_indices = @transform_2, window_bounds = array<i64: 16, 32>}]} {
    %c0 = arith.constant 0 : index
    %c0_0 = arith.constant 0 : index
    %0 = vector.load %arg1[%c0, %c0_0] : memref<16x16xf32, #tpu.memory_space<vmem>>, vector<16x16xf32>
    %c0_1 = arith.constant 0 : index
    %c0_2 = arith.constant 0 : index
    %1 = vector.load %arg2[%c0_1, %c0_2] : memref<472x128xf32, #tpu.memory_space<vmem>>, vector<16x32xf32>
    %cst = arith.constant dense<0.000000e+00> : vector<16x32xf32>
    %2 = tpu.matmul %0, %1, %cst {dimension_numbers = #tpu.dot_dimension_numbers<[1], [0], [0], [1], [0, 0, 1, 1], [], []>} : vector<16x16xf32>, vector<16x32xf32>, vector<16x32xf32> -> vector<16x32xf32>
    %c16 = arith.constant 16 : index
    %c0_3 = arith.constant 0 : index
    %3 = vector.load %arg2[%c16, %c0_3] : memref<472x128xf32, #tpu.memory_space<vmem>>, vector<1x32xf32>
    %4 = vector.broadcast %3 : vector<1x32xf32> to vector<16x32xf32>
    %5 = arith.addf %2, %4 : vector<16x32xf32>
    %c24 = arith.constant 24 : index
    %c0_4 = arith.constant 0 : index
    %6 = vector.load %arg2[%c24, %c0_4] : memref<472x128xf32, #tpu.memory_space<vmem>>, vector<32x96xf32>
    %cst_5 = arith.constant dense<0.000000e+00> : vector<16x96xf32>
    %7 = tpu.matmul %5, %6, %cst_5 {dimension_numbers = #tpu.dot_dimension_numbers<[1], [0], [0], [1], [0, 0, 1, 1], [], []>} : vector<16x32xf32>, vector<32x96xf32>, vector<16x96xf32> -> vector<16x96xf32>
    %c56 = arith.constant 56 : index
    %c0_6 = arith.constant 0 : index
    %8 = vector.load %arg2[%c56, %c0_6] : memref<472x128xf32, #tpu.memory_space<vmem>>, vector<1x96xf32>
    %9 = vector.broadcast %8 : vector<1x96xf32> to vector<16x96xf32>
    %10 = arith.addf %7, %9 : vector<16x96xf32>
    %11 = vector.extract_strided_slice %10 {offsets = [0, 0], sizes = [16, 32], strides = [1, 1]} : vector<16x96xf32> to vector<16x32xf32>
    %12 = vector.shape_cast %11 : vector<16x32xf32> to vector<2x8x32xf32>
    %13 = vector.extract_strided_slice %10 {offsets = [0, 32], sizes = [16, 32], strides = [1, 1]} : vector<16x96xf32> to vector<16x32xf32>
    %14 = vector.shape_cast %13 : vector<16x32xf32> to vector<2x8x32xf32>
    %15 = vector.extract_strided_slice %10 {offsets = [0, 64], sizes = [16, 32], strides = [1, 1]} : vector<16x96xf32> to vector<16x32xf32>
    %16 = vector.shape_cast %15 : vector<16x32xf32> to vector<2x8x32xf32>
    %17 = vector.extract_strided_slice %12 {offsets = [0, 0, 0], sizes = [2, 8, 8], strides = [1, 1, 1]} : vector<2x8x32xf32> to vector<2x8x8xf32>
    %18 = vector.extract_strided_slice %14 {offsets = [0, 0, 0], sizes = [2, 8, 8], strides = [1, 1, 1]} : vector<2x8x32xf32> to vector<2x8x8xf32>
    "tpu.trace_start"() <{level = 10 : i32, message = "bqd,bkd->bqk"}> : () -> ()
    %cst_7 = arith.constant dense<0.000000e+00> : vector<2x8x8xf32>
    %19 = tpu.matmul %17, %18, %cst_7 {dimension_numbers = #tpu.dot_dimension_numbers<[2], [2], [1], [1], [0, 0, 0, 1, 1, 1], [0], [0]>} : vector<2x8x8xf32>, vector<2x8x8xf32>, vector<2x8x8xf32> -> vector<2x8x8xf32>
    "tpu.trace_stop"() : () -> ()
    %cst_8 = arith.constant dense<0xFF800000> : vector<2x8xf32>
    %20 = vector.multi_reduction <maximumf>, %19, %cst_8 [2] : vector<2x8x8xf32> to vector<2x8xf32>
    %21 = vector.shape_cast %20 : vector<2x8xf32> to vector<2x8x1xf32>
    %22 = vector.broadcast %21 : vector<2x8x1xf32> to vector<2x8x8xf32>
    %23 = arith.subf %19, %22 : vector<2x8x8xf32>
    %24 = math.exp %23 : vector<2x8x8xf32>
    %cst_9 = arith.constant dense<0.000000e+00> : vector<2x8xf32>
    %25 = vector.multi_reduction <add>, %24, %cst_9 [2] : vector<2x8x8xf32> to vector<2x8xf32>
    %26 = vector.shape_cast %25 : vector<2x8xf32> to vector<2x8x1xf32>
    %27 = vector.broadcast %26 : vector<2x8x1xf32> to vector<2x8x8xf32>
    %28 = arith.divf %24, %27 : vector<2x8x8xf32>
    %29 = vector.extract_strided_slice %16 {offsets = [0, 0, 0], sizes = [2, 8, 8], strides = [1, 1, 1]} : vector<2x8x32xf32> to vector<2x8x8xf32>
    "tpu.trace_start"() <{level = 10 : i32, message = "bqk,bkd->bqd"}> : () -> ()
    %cst_10 = arith.constant dense<0.000000e+00> : vector<2x8x8xf32>
    %30 = tpu.matmul %28, %29, %cst_10 {dimension_numbers = #tpu.dot_dimension_numbers<[2], [1], [1], [2], [0, 0, 0, 1, 1, 2], [0], [0]>} : vector<2x8x8xf32>, vector<2x8x8xf32>, vector<2x8x8xf32> -> vector<2x8x8xf32>
    "tpu.trace_stop"() : () -> ()
    %31 = vector.extract_strided_slice %12 {offsets = [0, 0, 8], sizes = [2, 8, 8], strides = [1, 1, 1]} : vector<2x8x32xf32> to vector<2x8x8xf32>
    %32 = vector.extract_strided_slice %14 {offsets = [0, 0, 8], sizes = [2, 8, 8], strides = [1, 1, 1]} : vector<2x8x32xf32> to vector<2x8x8xf32>
    "tpu.trace_start"() <{level = 10 : i32, message = "bqd,bkd->bqk"}> : () -> ()
    %cst_11 = arith.constant dense<0.000000e+00> : vector<2x8x8xf32>
    %33 = tpu.matmul %31, %32, %cst_11 {dimension_numbers = #tpu.dot_dimension_numbers<[2], [2], [1], [1], [0, 0, 0, 1, 1, 1], [0], [0]>} : vector<2x8x8xf32>, vector<2x8x8xf32>, vector<2x8x8xf32> -> vector<2x8x8xf32>
    "tpu.trace_stop"() : () -> ()
    %cst_12 = arith.constant dense<0xFF800000> : vector<2x8xf32>
    %34 = vector.multi_reduction <maximumf>, %33, %cst_12 [2] : vector<2x8x8xf32> to vector<2x8xf32>
    %35 = vector.shape_cast %34 : vector<2x8xf32> to vector<2x8x1xf32>
    %36 = vector.broadcast %35 : vector<2x8x1xf32> to vector<2x8x8xf32>
    %37 = arith.subf %33, %36 : vector<2x8x8xf32>
    %38 = math.exp %37 : vector<2x8x8xf32>
    %cst_13 = arith.constant dense<0.000000e+00> : vector<2x8xf32>
    %39 = vector.multi_reduction <add>, %38, %cst_13 [2] : vector<2x8x8xf32> to vector<2x8xf32>
    %40 = vector.shape_cast %39 : vector<2x8xf32> to vector<2x8x1xf32>
    %41 = vector.broadcast %40 : vector<2x8x1xf32> to vector<2x8x8xf32>
    %42 = arith.divf %38, %41 : vector<2x8x8xf32>
    %43 = vector.extract_strided_slice %16 {offsets = [0, 0, 8], sizes = [2, 8, 8], strides = [1, 1, 1]} : vector<2x8x32xf32> to vector<2x8x8xf32>
    "tpu.trace_start"() <{level = 10 : i32, message = "bqk,bkd->bqd"}> : () -> ()
    %cst_14 = arith.constant dense<0.000000e+00> : vector<2x8x8xf32>
    %44 = tpu.matmul %42, %43, %cst_14 {dimension_numbers = #tpu.dot_dimension_numbers<[2], [1], [1], [2], [0, 0, 0, 1, 1, 2], [0], [0]>} : vector<2x8x8xf32>, vector<2x8x8xf32>, vector<2x8x8xf32> -> vector<2x8x8xf32>
    "tpu.trace_stop"() : () -> ()
    %45 = vector.extract_strided_slice %12 {offsets = [0, 0, 16], sizes = [2, 8, 8], strides = [1, 1, 1]} : vector<2x8x32xf32> to vector<2x8x8xf32>
    %46 = vector.extract_strided_slice %14 {offsets = [0, 0, 16], sizes = [2, 8, 8], strides = [1, 1, 1]} : vector<2x8x32xf32> to vector<2x8x8xf32>
    "tpu.trace_start"() <{level = 10 : i32, message = "bqd,bkd->bqk"}> : () -> ()
    %cst_15 = arith.constant dense<0.000000e+00> : vector<2x8x8xf32>
    %47 = tpu.matmul %45, %46, %cst_15 {dimension_numbers = #tpu.dot_dimension_numbers<[2], [2], [1], [1], [0, 0, 0, 1, 1, 1], [0], [0]>} : vector<2x8x8xf32>, vector<2x8x8xf32>, vector<2x8x8xf32> -> vector<2x8x8xf32>
    "tpu.trace_stop"() : () -> ()
    %cst_16 = arith.constant dense<0xFF800000> : vector<2x8xf32>
    %48 = vector.multi_reduction <maximumf>, %47, %cst_16 [2] : vector<2x8x8xf32> to vector<2x8xf32>
    %49 = vector.shape_cast %48 : vector<2x8xf32> to vector<2x8x1xf32>
    %50 = vector.broadcast %49 : vector<2x8x1xf32> to vector<2x8x8xf32>
    %51 = arith.subf %47, %50 : vector<2x8x8xf32>
    %52 = math.exp %51 : vector<2x8x8xf32>
    %cst_17 = arith.constant dense<0.000000e+00> : vector<2x8xf32>
    %53 = vector.multi_reduction <add>, %52, %cst_17 [2] : vector<2x8x8xf32> to vector<2x8xf32>
    %54 = vector.shape_cast %53 : vector<2x8xf32> to vector<2x8x1xf32>
    %55 = vector.broadcast %54 : vector<2x8x1xf32> to vector<2x8x8xf32>
    %56 = arith.divf %52, %55 : vector<2x8x8xf32>
    %57 = vector.extract_strided_slice %16 {offsets = [0, 0, 16], sizes = [2, 8, 8], strides = [1, 1, 1]} : vector<2x8x32xf32> to vector<2x8x8xf32>
    "tpu.trace_start"() <{level = 10 : i32, message = "bqk,bkd->bqd"}> : () -> ()
    %cst_18 = arith.constant dense<0.000000e+00> : vector<2x8x8xf32>
    %58 = tpu.matmul %56, %57, %cst_18 {dimension_numbers = #tpu.dot_dimension_numbers<[2], [1], [1], [2], [0, 0, 0, 1, 1, 2], [0], [0]>} : vector<2x8x8xf32>, vector<2x8x8xf32>, vector<2x8x8xf32> -> vector<2x8x8xf32>
    "tpu.trace_stop"() : () -> ()
    %59 = vector.extract_strided_slice %12 {offsets = [0, 0, 24], sizes = [2, 8, 8], strides = [1, 1, 1]} : vector<2x8x32xf32> to vector<2x8x8xf32>
    %60 = vector.extract_strided_slice %14 {offsets = [0, 0, 24], sizes = [2, 8, 8], strides = [1, 1, 1]} : vector<2x8x32xf32> to vector<2x8x8xf32>
    "tpu.trace_start"() <{level = 10 : i32, message = "bqd,bkd->bqk"}> : () -> ()
    %cst_19 = arith.constant dense<0.000000e+00> : vector<2x8x8xf32>
    %61 = tpu.matmul %59, %60, %cst_19 {dimension_numbers = #tpu.dot_dimension_numbers<[2], [2], [1], [1], [0, 0, 0, 1, 1, 1], [0], [0]>} : vector<2x8x8xf32>, vector<2x8x8xf32>, vector<2x8x8xf32> -> vector<2x8x8xf32>
    "tpu.trace_stop"() : () -> ()
    %cst_20 = arith.constant dense<0xFF800000> : vector<2x8xf32>
    %62 = vector.multi_reduction <maximumf>, %61, %cst_20 [2] : vector<2x8x8xf32> to vector<2x8xf32>
    %63 = vector.shape_cast %62 : vector<2x8xf32> to vector<2x8x1xf32>
    %64 = vector.broadcast %63 : vector<2x8x1xf32> to vector<2x8x8xf32>
    %65 = arith.subf %61, %64 : vector<2x8x8xf32>
    %66 = math.exp %65 : vector<2x8x8xf32>
    %cst_21 = arith.constant dense<0.000000e+00> : vector<2x8xf32>
    %67 = vector.multi_reduction <add>, %66, %cst_21 [2] : vector<2x8x8xf32> to vector<2x8xf32>
    %68 = vector.shape_cast %67 : vector<2x8xf32> to vector<2x8x1xf32>
    %69 = vector.broadcast %68 : vector<2x8x1xf32> to vector<2x8x8xf32>
    %70 = arith.divf %66, %69 : vector<2x8x8xf32>
    %71 = vector.extract_strided_slice %16 {offsets = [0, 0, 24], sizes = [2, 8, 8], strides = [1, 1, 1]} : vector<2x8x32xf32> to vector<2x8x8xf32>
    "tpu.trace_start"() <{level = 10 : i32, message = "bqk,bkd->bqd"}> : () -> ()
    %cst_22 = arith.constant dense<0.000000e+00> : vector<2x8x8xf32>
    %72 = tpu.matmul %70, %71, %cst_22 {dimension_numbers = #tpu.dot_dimension_numbers<[2], [1], [1], [2], [0, 0, 0, 1, 1, 2], [0], [0]>} : vector<2x8x8xf32>, vector<2x8x8xf32>, vector<2x8x8xf32> -> vector<2x8x8xf32>
    "tpu.trace_stop"() : () -> ()
    %73 = tpu.concatenate %30, %44, %58, %72 in 2 : vector<2x8x8xf32>, vector<2x8x8xf32>, vector<2x8x8xf32>, vector<2x8x8xf32> -> vector<2x8x32xf32>
    %74 = vector.shape_cast %73 : vector<2x8x32xf32> to vector<16x32xf32>
    %c64 = arith.constant 64 : index
    %c0_23 = arith.constant 0 : index
    %75 = vector.load %arg2[%c64, %c0_23] : memref<472x128xf32, #tpu.memory_space<vmem>>, vector<32x32xf32>
    %cst_24 = arith.constant dense<0.000000e+00> : vector<16x32xf32>
    %76 = tpu.matmul %74, %75, %cst_24 {dimension_numbers = #tpu.dot_dimension_numbers<[1], [0], [0], [1], [0, 0, 1, 1], [], []>} : vector<16x32xf32>, vector<32x32xf32>, vector<16x32xf32> -> vector<16x32xf32>
    %c96 = arith.constant 96 : index
    %c0_25 = arith.constant 0 : index
    %77 = vector.load %arg2[%c96, %c0_25] : memref<472x128xf32, #tpu.memory_space<vmem>>, vector<1x32xf32>
    %78 = vector.broadcast %77 : vector<1x32xf32> to vector<16x32xf32>
    %79 = arith.addf %76, %78 : vector<16x32xf32>
    %80 = arith.addf %5, %79 : vector<16x32xf32>
    %c104 = arith.constant 104 : index
    %c0_26 = arith.constant 0 : index
    %81 = vector.load %arg2[%c104, %c0_26] : memref<472x128xf32, #tpu.memory_space<vmem>>, vector<1x32xf32>
    %c112 = arith.constant 112 : index
    %c0_27 = arith.constant 0 : index
    %82 = vector.load %arg2[%c112, %c0_27] : memref<472x128xf32, #tpu.memory_space<vmem>>, vector<1x32xf32>
    %cst_28 = arith.constant dense<0.000000e+00> : vector<16xf32>
    %83 = vector.multi_reduction <add>, %80, %cst_28 [1] : vector<16x32xf32> to vector<16xf32>
    %84 = vector.shape_cast %83 : vector<16xf32> to vector<16x1xf32>
    %cst_29 = arith.constant 3.200000e+01 : f32
    %85 = vector.broadcast %cst_29 : f32 to vector<16x1xf32>
    %86 = arith.divf %84, %85 : vector<16x1xf32>
    %87 = vector.broadcast %86 : vector<16x1xf32> to vector<16x32xf32>
    %88 = arith.subf %80, %87 : vector<16x32xf32>
    %89 = arith.mulf %88, %88 : vector<16x32xf32>
    %cst_30 = arith.constant dense<0.000000e+00> : vector<16xf32>
    %90 = vector.multi_reduction <add>, %89, %cst_30 [1] : vector<16x32xf32> to vector<16xf32>
    %91 = vector.shape_cast %90 : vector<16xf32> to vector<16x1xf32>
    %cst_31 = arith.constant 3.200000e+01 : f32
    %92 = vector.broadcast %cst_31 : f32 to vector<16x1xf32>
    %93 = arith.divf %91, %92 : vector<16x1xf32>
    %cst_32 = arith.constant 9.99999974E-6 : f32
    %94 = vector.broadcast %cst_32 : f32 to vector<16x1xf32>
    %95 = arith.addf %93, %94 : vector<16x1xf32>
    %96 = math.rsqrt %95 : vector<16x1xf32>
    %97 = vector.broadcast %96 : vector<16x1xf32> to vector<16x32xf32>
    %98 = arith.mulf %88, %97 : vector<16x32xf32>
    %99 = vector.broadcast %81 : vector<1x32xf32> to vector<16x32xf32>
    %100 = arith.mulf %98, %99 : vector<16x32xf32>
    %101 = vector.broadcast %82 : vector<1x32xf32> to vector<16x32xf32>
    %102 = arith.addf %100, %101 : vector<16x32xf32>
    %c120 = arith.constant 120 : index
    %c0_33 = arith.constant 0 : index
    %103 = vector.load %arg2[%c120, %c0_33] : memref<472x128xf32, #tpu.memory_space<vmem>>, vector<32x64xf32>
    %cst_34 = arith.constant dense<0.000000e+00> : vector<16x64xf32>
    %104 = tpu.matmul %102, %103, %cst_34 {dimension_numbers = #tpu.dot_dimension_numbers<[1], [0], [0], [1], [0, 0, 1, 1], [], []>} : vector<16x32xf32>, vector<32x64xf32>, vector<16x64xf32> -> vector<16x64xf32>
    %c152 = arith.constant 152 : index
    %c0_35 = arith.constant 0 : index
    %105 = vector.load %arg2[%c152, %c0_35] : memref<472x128xf32, #tpu.memory_space<vmem>>, vector<1x64xf32>
    %106 = vector.broadcast %105 : vector<1x64xf32> to vector<16x64xf32>
    %107 = arith.addf %104, %106 : vector<16x64xf32>
    %cst_36 = arith.constant 0.000000e+00 : f32
    %108 = vector.broadcast %cst_36 : f32 to vector<16x64xf32>
    %109 = arith.maximumf %107, %108 : vector<16x64xf32>
    %c160 = arith.constant 160 : index
    %c0_37 = arith.constant 0 : index
    %110 = vector.load %arg2[%c160, %c0_37] : memref<472x128xf32, #tpu.memory_space<vmem>>, vector<64x32xf32>
    %cst_38 = arith.constant dense<0.000000e+00> : vector<16x32xf32>
    %111 = tpu.matmul %109, %110, %cst_38 {dimension_numbers = #tpu.dot_dimension_numbers<[1], [0], [0], [1], [0, 0, 1, 1], [], []>} : vector<16x64xf32>, vector<64x32xf32>, vector<16x32xf32> -> vector<16x32xf32>
    %c224 = arith.constant 224 : index
    %c0_39 = arith.constant 0 : index
    %112 = vector.load %arg2[%c224, %c0_39] : memref<472x128xf32, #tpu.memory_space<vmem>>, vector<1x32xf32>
    %113 = vector.broadcast %112 : vector<1x32xf32> to vector<16x32xf32>
    %114 = arith.addf %111, %113 : vector<16x32xf32>
    %115 = arith.addf %102, %114 : vector<16x32xf32>
    %c232 = arith.constant 232 : index
    %c0_40 = arith.constant 0 : index
    %116 = vector.load %arg2[%c232, %c0_40] : memref<472x128xf32, #tpu.memory_space<vmem>>, vector<1x32xf32>
    %c240 = arith.constant 240 : index
    %c0_41 = arith.constant 0 : index
    %117 = vector.load %arg2[%c240, %c0_41] : memref<472x128xf32, #tpu.memory_space<vmem>>, vector<1x32xf32>
    %cst_42 = arith.constant dense<0.000000e+00> : vector<16xf32>
    %118 = vector.multi_reduction <add>, %115, %cst_42 [1] : vector<16x32xf32> to vector<16xf32>
    %119 = vector.shape_cast %118 : vector<16xf32> to vector<16x1xf32>
    %cst_43 = arith.constant 3.200000e+01 : f32
    %120 = vector.broadcast %cst_43 : f32 to vector<16x1xf32>
    %121 = arith.divf %119, %120 : vector<16x1xf32>
    %122 = vector.broadcast %121 : vector<16x1xf32> to vector<16x32xf32>
    %123 = arith.subf %115, %122 : vector<16x32xf32>
    %124 = arith.mulf %123, %123 : vector<16x32xf32>
    %cst_44 = arith.constant dense<0.000000e+00> : vector<16xf32>
    %125 = vector.multi_reduction <add>, %124, %cst_44 [1] : vector<16x32xf32> to vector<16xf32>
    %126 = vector.shape_cast %125 : vector<16xf32> to vector<16x1xf32>
    %cst_45 = arith.constant 3.200000e+01 : f32
    %127 = vector.broadcast %cst_45 : f32 to vector<16x1xf32>
    %128 = arith.divf %126, %127 : vector<16x1xf32>
    %cst_46 = arith.constant 9.99999974E-6 : f32
    %129 = vector.broadcast %cst_46 : f32 to vector<16x1xf32>
    %130 = arith.addf %128, %129 : vector<16x1xf32>
    %131 = math.rsqrt %130 : vector<16x1xf32>
    %132 = vector.broadcast %131 : vector<16x1xf32> to vector<16x32xf32>
    %133 = arith.mulf %123, %132 : vector<16x32xf32>
    %134 = vector.broadcast %116 : vector<1x32xf32> to vector<16x32xf32>
    %135 = arith.mulf %133, %134 : vector<16x32xf32>
    %136 = vector.broadcast %117 : vector<1x32xf32> to vector<16x32xf32>
    %137 = arith.addf %135, %136 : vector<16x32xf32>
    %c248 = arith.constant 248 : index
    %c0_47 = arith.constant 0 : index
    %138 = vector.load %arg2[%c248, %c0_47] : memref<472x128xf32, #tpu.memory_space<vmem>>, vector<32x96xf32>
    %cst_48 = arith.constant dense<0.000000e+00> : vector<16x96xf32>
    %139 = tpu.matmul %137, %138, %cst_48 {dimension_numbers = #tpu.dot_dimension_numbers<[1], [0], [0], [1], [0, 0, 1, 1], [], []>} : vector<16x32xf32>, vector<32x96xf32>, vector<16x96xf32> -> vector<16x96xf32>
    %c280 = arith.constant 280 : index
    %c0_49 = arith.constant 0 : index
    %140 = vector.load %arg2[%c280, %c0_49] : memref<472x128xf32, #tpu.memory_space<vmem>>, vector<1x96xf32>
    %141 = vector.broadcast %140 : vector<1x96xf32> to vector<16x96xf32>
    %142 = arith.addf %139, %141 : vector<16x96xf32>
    %143 = vector.extract_strided_slice %142 {offsets = [0, 0], sizes = [16, 32], strides = [1, 1]} : vector<16x96xf32> to vector<16x32xf32>
    %144 = vector.shape_cast %143 : vector<16x32xf32> to vector<2x8x32xf32>
    %145 = vector.extract_strided_slice %142 {offsets = [0, 32], sizes = [16, 32], strides = [1, 1]} : vector<16x96xf32> to vector<16x32xf32>
    %146 = vector.shape_cast %145 : vector<16x32xf32> to vector<2x8x32xf32>
    %147 = vector.extract_strided_slice %142 {offsets = [0, 64], sizes = [16, 32], strides = [1, 1]} : vector<16x96xf32> to vector<16x32xf32>
    %148 = vector.shape_cast %147 : vector<16x32xf32> to vector<2x8x32xf32>
    %149 = vector.extract_strided_slice %144 {offsets = [0, 0, 0], sizes = [2, 8, 8], strides = [1, 1, 1]} : vector<2x8x32xf32> to vector<2x8x8xf32>
    %150 = vector.extract_strided_slice %146 {offsets = [0, 0, 0], sizes = [2, 8, 8], strides = [1, 1, 1]} : vector<2x8x32xf32> to vector<2x8x8xf32>
    "tpu.trace_start"() <{level = 10 : i32, message = "bqd,bkd->bqk"}> : () -> ()
    %cst_50 = arith.constant dense<0.000000e+00> : vector<2x8x8xf32>
    %151 = tpu.matmul %149, %150, %cst_50 {dimension_numbers = #tpu.dot_dimension_numbers<[2], [2], [1], [1], [0, 0, 0, 1, 1, 1], [0], [0]>} : vector<2x8x8xf32>, vector<2x8x8xf32>, vector<2x8x8xf32> -> vector<2x8x8xf32>
    "tpu.trace_stop"() : () -> ()
    %cst_51 = arith.constant dense<0xFF800000> : vector<2x8xf32>
    %152 = vector.multi_reduction <maximumf>, %151, %cst_51 [2] : vector<2x8x8xf32> to vector<2x8xf32>
    %153 = vector.shape_cast %152 : vector<2x8xf32> to vector<2x8x1xf32>
    %154 = vector.broadcast %153 : vector<2x8x1xf32> to vector<2x8x8xf32>
    %155 = arith.subf %151, %154 : vector<2x8x8xf32>
    %156 = math.exp %155 : vector<2x8x8xf32>
    %cst_52 = arith.constant dense<0.000000e+00> : vector<2x8xf32>
    %157 = vector.multi_reduction <add>, %156, %cst_52 [2] : vector<2x8x8xf32> to vector<2x8xf32>
    %158 = vector.shape_cast %157 : vector<2x8xf32> to vector<2x8x1xf32>
    %159 = vector.broadcast %158 : vector<2x8x1xf32> to vector<2x8x8xf32>
    %160 = arith.divf %156, %159 : vector<2x8x8xf32>
    %161 = vector.extract_strided_slice %148 {offsets = [0, 0, 0], sizes = [2, 8, 8], strides = [1, 1, 1]} : vector<2x8x32xf32> to vector<2x8x8xf32>
    "tpu.trace_start"() <{level = 10 : i32, message = "bqk,bkd->bqd"}> : () -> ()
    %cst_53 = arith.constant dense<0.000000e+00> : vector<2x8x8xf32>
    %162 = tpu.matmul %160, %161, %cst_53 {dimension_numbers = #tpu.dot_dimension_numbers<[2], [1], [1], [2], [0, 0, 0, 1, 1, 2], [0], [0]>} : vector<2x8x8xf32>, vector<2x8x8xf32>, vector<2x8x8xf32> -> vector<2x8x8xf32>
    "tpu.trace_stop"() : () -> ()
    %163 = vector.extract_strided_slice %144 {offsets = [0, 0, 8], sizes = [2, 8, 8], strides = [1, 1, 1]} : vector<2x8x32xf32> to vector<2x8x8xf32>
    %164 = vector.extract_strided_slice %146 {offsets = [0, 0, 8], sizes = [2, 8, 8], strides = [1, 1, 1]} : vector<2x8x32xf32> to vector<2x8x8xf32>
    "tpu.trace_start"() <{level = 10 : i32, message = "bqd,bkd->bqk"}> : () -> ()
    %cst_54 = arith.constant dense<0.000000e+00> : vector<2x8x8xf32>
    %165 = tpu.matmul %163, %164, %cst_54 {dimension_numbers = #tpu.dot_dimension_numbers<[2], [2], [1], [1], [0, 0, 0, 1, 1, 1], [0], [0]>} : vector<2x8x8xf32>, vector<2x8x8xf32>, vector<2x8x8xf32> -> vector<2x8x8xf32>
    "tpu.trace_stop"() : () -> ()
    %cst_55 = arith.constant dense<0xFF800000> : vector<2x8xf32>
    %166 = vector.multi_reduction <maximumf>, %165, %cst_55 [2] : vector<2x8x8xf32> to vector<2x8xf32>
    %167 = vector.shape_cast %166 : vector<2x8xf32> to vector<2x8x1xf32>
    %168 = vector.broadcast %167 : vector<2x8x1xf32> to vector<2x8x8xf32>
    %169 = arith.subf %165, %168 : vector<2x8x8xf32>
    %170 = math.exp %169 : vector<2x8x8xf32>
    %cst_56 = arith.constant dense<0.000000e+00> : vector<2x8xf32>
    %171 = vector.multi_reduction <add>, %170, %cst_56 [2] : vector<2x8x8xf32> to vector<2x8xf32>
    %172 = vector.shape_cast %171 : vector<2x8xf32> to vector<2x8x1xf32>
    %173 = vector.broadcast %172 : vector<2x8x1xf32> to vector<2x8x8xf32>
    %174 = arith.divf %170, %173 : vector<2x8x8xf32>
    %175 = vector.extract_strided_slice %148 {offsets = [0, 0, 8], sizes = [2, 8, 8], strides = [1, 1, 1]} : vector<2x8x32xf32> to vector<2x8x8xf32>
    "tpu.trace_start"() <{level = 10 : i32, message = "bqk,bkd->bqd"}> : () -> ()
    %cst_57 = arith.constant dense<0.000000e+00> : vector<2x8x8xf32>
    %176 = tpu.matmul %174, %175, %cst_57 {dimension_numbers = #tpu.dot_dimension_numbers<[2], [1], [1], [2], [0, 0, 0, 1, 1, 2], [0], [0]>} : vector<2x8x8xf32>, vector<2x8x8xf32>, vector<2x8x8xf32> -> vector<2x8x8xf32>
    "tpu.trace_stop"() : () -> ()
    %177 = vector.extract_strided_slice %144 {offsets = [0, 0, 16], sizes = [2, 8, 8], strides = [1, 1, 1]} : vector<2x8x32xf32> to vector<2x8x8xf32>
    %178 = vector.extract_strided_slice %146 {offsets = [0, 0, 16], sizes = [2, 8, 8], strides = [1, 1, 1]} : vector<2x8x32xf32> to vector<2x8x8xf32>
    "tpu.trace_start"() <{level = 10 : i32, message = "bqd,bkd->bqk"}> : () -> ()
    %cst_58 = arith.constant dense<0.000000e+00> : vector<2x8x8xf32>
    %179 = tpu.matmul %177, %178, %cst_58 {dimension_numbers = #tpu.dot_dimension_numbers<[2], [2], [1], [1], [0, 0, 0, 1, 1, 1], [0], [0]>} : vector<2x8x8xf32>, vector<2x8x8xf32>, vector<2x8x8xf32> -> vector<2x8x8xf32>
    "tpu.trace_stop"() : () -> ()
    %cst_59 = arith.constant dense<0xFF800000> : vector<2x8xf32>
    %180 = vector.multi_reduction <maximumf>, %179, %cst_59 [2] : vector<2x8x8xf32> to vector<2x8xf32>
    %181 = vector.shape_cast %180 : vector<2x8xf32> to vector<2x8x1xf32>
    %182 = vector.broadcast %181 : vector<2x8x1xf32> to vector<2x8x8xf32>
    %183 = arith.subf %179, %182 : vector<2x8x8xf32>
    %184 = math.exp %183 : vector<2x8x8xf32>
    %cst_60 = arith.constant dense<0.000000e+00> : vector<2x8xf32>
    %185 = vector.multi_reduction <add>, %184, %cst_60 [2] : vector<2x8x8xf32> to vector<2x8xf32>
    %186 = vector.shape_cast %185 : vector<2x8xf32> to vector<2x8x1xf32>
    %187 = vector.broadcast %186 : vector<2x8x1xf32> to vector<2x8x8xf32>
    %188 = arith.divf %184, %187 : vector<2x8x8xf32>
    %189 = vector.extract_strided_slice %148 {offsets = [0, 0, 16], sizes = [2, 8, 8], strides = [1, 1, 1]} : vector<2x8x32xf32> to vector<2x8x8xf32>
    "tpu.trace_start"() <{level = 10 : i32, message = "bqk,bkd->bqd"}> : () -> ()
    %cst_61 = arith.constant dense<0.000000e+00> : vector<2x8x8xf32>
    %190 = tpu.matmul %188, %189, %cst_61 {dimension_numbers = #tpu.dot_dimension_numbers<[2], [1], [1], [2], [0, 0, 0, 1, 1, 2], [0], [0]>} : vector<2x8x8xf32>, vector<2x8x8xf32>, vector<2x8x8xf32> -> vector<2x8x8xf32>
    "tpu.trace_stop"() : () -> ()
    %191 = vector.extract_strided_slice %144 {offsets = [0, 0, 24], sizes = [2, 8, 8], strides = [1, 1, 1]} : vector<2x8x32xf32> to vector<2x8x8xf32>
    %192 = vector.extract_strided_slice %146 {offsets = [0, 0, 24], sizes = [2, 8, 8], strides = [1, 1, 1]} : vector<2x8x32xf32> to vector<2x8x8xf32>
    "tpu.trace_start"() <{level = 10 : i32, message = "bqd,bkd->bqk"}> : () -> ()
    %cst_62 = arith.constant dense<0.000000e+00> : vector<2x8x8xf32>
    %193 = tpu.matmul %191, %192, %cst_62 {dimension_numbers = #tpu.dot_dimension_numbers<[2], [2], [1], [1], [0, 0, 0, 1, 1, 1], [0], [0]>} : vector<2x8x8xf32>, vector<2x8x8xf32>, vector<2x8x8xf32> -> vector<2x8x8xf32>
    "tpu.trace_stop"() : () -> ()
    %cst_63 = arith.constant dense<0xFF800000> : vector<2x8xf32>
    %194 = vector.multi_reduction <maximumf>, %193, %cst_63 [2] : vector<2x8x8xf32> to vector<2x8xf32>
    %195 = vector.shape_cast %194 : vector<2x8xf32> to vector<2x8x1xf32>
    %196 = vector.broadcast %195 : vector<2x8x1xf32> to vector<2x8x8xf32>
    %197 = arith.subf %193, %196 : vector<2x8x8xf32>
    %198 = math.exp %197 : vector<2x8x8xf32>
    %cst_64 = arith.constant dense<0.000000e+00> : vector<2x8xf32>
    %199 = vector.multi_reduction <add>, %198, %cst_64 [2] : vector<2x8x8xf32> to vector<2x8xf32>
    %200 = vector.shape_cast %199 : vector<2x8xf32> to vector<2x8x1xf32>
    %201 = vector.broadcast %200 : vector<2x8x1xf32> to vector<2x8x8xf32>
    %202 = arith.divf %198, %201 : vector<2x8x8xf32>
    %203 = vector.extract_strided_slice %148 {offsets = [0, 0, 24], sizes = [2, 8, 8], strides = [1, 1, 1]} : vector<2x8x32xf32> to vector<2x8x8xf32>
    "tpu.trace_start"() <{level = 10 : i32, message = "bqk,bkd->bqd"}> : () -> ()
    %cst_65 = arith.constant dense<0.000000e+00> : vector<2x8x8xf32>
    %204 = tpu.matmul %202, %203, %cst_65 {dimension_numbers = #tpu.dot_dimension_numbers<[2], [1], [1], [2], [0, 0, 0, 1, 1, 2], [0], [0]>} : vector<2x8x8xf32>, vector<2x8x8xf32>, vector<2x8x8xf32> -> vector<2x8x8xf32>
    "tpu.trace_stop"() : () -> ()
    %205 = tpu.concatenate %162, %176, %190, %204 in 2 : vector<2x8x8xf32>, vector<2x8x8xf32>, vector<2x8x8xf32>, vector<2x8x8xf32> -> vector<2x8x32xf32>
    %206 = vector.shape_cast %205 : vector<2x8x32xf32> to vector<16x32xf32>
    %c288 = arith.constant 288 : index
    %c0_66 = arith.constant 0 : index
    %207 = vector.load %arg2[%c288, %c0_66] : memref<472x128xf32, #tpu.memory_space<vmem>>, vector<32x32xf32>
    %cst_67 = arith.constant dense<0.000000e+00> : vector<16x32xf32>
    %208 = tpu.matmul %206, %207, %cst_67 {dimension_numbers = #tpu.dot_dimension_numbers<[1], [0], [0], [1], [0, 0, 1, 1], [], []>} : vector<16x32xf32>, vector<32x32xf32>, vector<16x32xf32> -> vector<16x32xf32>
    %c320 = arith.constant 320 : index
    %c0_68 = arith.constant 0 : index
    %209 = vector.load %arg2[%c320, %c0_68] : memref<472x128xf32, #tpu.memory_space<vmem>>, vector<1x32xf32>
    %210 = vector.broadcast %209 : vector<1x32xf32> to vector<16x32xf32>
    %211 = arith.addf %208, %210 : vector<16x32xf32>
    %212 = arith.addf %137, %211 : vector<16x32xf32>
    %c328 = arith.constant 328 : index
    %c0_69 = arith.constant 0 : index
    %213 = vector.load %arg2[%c328, %c0_69] : memref<472x128xf32, #tpu.memory_space<vmem>>, vector<1x32xf32>
    %c336 = arith.constant 336 : index
    %c0_70 = arith.constant 0 : index
    %214 = vector.load %arg2[%c336, %c0_70] : memref<472x128xf32, #tpu.memory_space<vmem>>, vector<1x32xf32>
    %cst_71 = arith.constant dense<0.000000e+00> : vector<16xf32>
    %215 = vector.multi_reduction <add>, %212, %cst_71 [1] : vector<16x32xf32> to vector<16xf32>
    %216 = vector.shape_cast %215 : vector<16xf32> to vector<16x1xf32>
    %cst_72 = arith.constant 3.200000e+01 : f32
    %217 = vector.broadcast %cst_72 : f32 to vector<16x1xf32>
    %218 = arith.divf %216, %217 : vector<16x1xf32>
    %219 = vector.broadcast %218 : vector<16x1xf32> to vector<16x32xf32>
    %220 = arith.subf %212, %219 : vector<16x32xf32>
    %221 = arith.mulf %220, %220 : vector<16x32xf32>
    %cst_73 = arith.constant dense<0.000000e+00> : vector<16xf32>
    %222 = vector.multi_reduction <add>, %221, %cst_73 [1] : vector<16x32xf32> to vector<16xf32>
    %223 = vector.shape_cast %222 : vector<16xf32> to vector<16x1xf32>
    %cst_74 = arith.constant 3.200000e+01 : f32
    %224 = vector.broadcast %cst_74 : f32 to vector<16x1xf32>
    %225 = arith.divf %223, %224 : vector<16x1xf32>
    %cst_75 = arith.constant 9.99999974E-6 : f32
    %226 = vector.broadcast %cst_75 : f32 to vector<16x1xf32>
    %227 = arith.addf %225, %226 : vector<16x1xf32>
    %228 = math.rsqrt %227 : vector<16x1xf32>
    %229 = vector.broadcast %228 : vector<16x1xf32> to vector<16x32xf32>
    %230 = arith.mulf %220, %229 : vector<16x32xf32>
    %231 = vector.broadcast %213 : vector<1x32xf32> to vector<16x32xf32>
    %232 = arith.mulf %230, %231 : vector<16x32xf32>
    %233 = vector.broadcast %214 : vector<1x32xf32> to vector<16x32xf32>
    %234 = arith.addf %232, %233 : vector<16x32xf32>
    %c344 = arith.constant 344 : index
    %c0_76 = arith.constant 0 : index
    %235 = vector.load %arg2[%c344, %c0_76] : memref<472x128xf32, #tpu.memory_space<vmem>>, vector<32x64xf32>
    %cst_77 = arith.constant dense<0.000000e+00> : vector<16x64xf32>
    %236 = tpu.matmul %234, %235, %cst_77 {dimension_numbers = #tpu.dot_dimension_numbers<[1], [0], [0], [1], [0, 0, 1, 1], [], []>} : vector<16x32xf32>, vector<32x64xf32>, vector<16x64xf32> -> vector<16x64xf32>
    %c376 = arith.constant 376 : index
    %c0_78 = arith.constant 0 : index
    %237 = vector.load %arg2[%c376, %c0_78] : memref<472x128xf32, #tpu.memory_space<vmem>>, vector<1x64xf32>
    %238 = vector.broadcast %237 : vector<1x64xf32> to vector<16x64xf32>
    %239 = arith.addf %236, %238 : vector<16x64xf32>
    %cst_79 = arith.constant 0.000000e+00 : f32
    %240 = vector.broadcast %cst_79 : f32 to vector<16x64xf32>
    %241 = arith.maximumf %239, %240 : vector<16x64xf32>
    %c384 = arith.constant 384 : index
    %c0_80 = arith.constant 0 : index
    %242 = vector.load %arg2[%c384, %c0_80] : memref<472x128xf32, #tpu.memory_space<vmem>>, vector<64x32xf32>
    %cst_81 = arith.constant dense<0.000000e+00> : vector<16x32xf32>
    %243 = tpu.matmul %241, %242, %cst_81 {dimension_numbers = #tpu.dot_dimension_numbers<[1], [0], [0], [1], [0, 0, 1, 1], [], []>} : vector<16x64xf32>, vector<64x32xf32>, vector<16x32xf32> -> vector<16x32xf32>
    %c448 = arith.constant 448 : index
    %c0_82 = arith.constant 0 : index
    %244 = vector.load %arg2[%c448, %c0_82] : memref<472x128xf32, #tpu.memory_space<vmem>>, vector<1x32xf32>
    %245 = vector.broadcast %244 : vector<1x32xf32> to vector<16x32xf32>
    %246 = arith.addf %243, %245 : vector<16x32xf32>
    %247 = arith.addf %234, %246 : vector<16x32xf32>
    %c456 = arith.constant 456 : index
    %c0_83 = arith.constant 0 : index
    %248 = vector.load %arg2[%c456, %c0_83] : memref<472x128xf32, #tpu.memory_space<vmem>>, vector<1x32xf32>
    %c464 = arith.constant 464 : index
    %c0_84 = arith.constant 0 : index
    %249 = vector.load %arg2[%c464, %c0_84] : memref<472x128xf32, #tpu.memory_space<vmem>>, vector<1x32xf32>
    %cst_85 = arith.constant dense<0.000000e+00> : vector<16xf32>
    %250 = vector.multi_reduction <add>, %247, %cst_85 [1] : vector<16x32xf32> to vector<16xf32>
    %251 = vector.shape_cast %250 : vector<16xf32> to vector<16x1xf32>
    %cst_86 = arith.constant 3.200000e+01 : f32
    %252 = vector.broadcast %cst_86 : f32 to vector<16x1xf32>
    %253 = arith.divf %251, %252 : vector<16x1xf32>
    %254 = vector.broadcast %253 : vector<16x1xf32> to vector<16x32xf32>
    %255 = arith.subf %247, %254 : vector<16x32xf32>
    %256 = arith.mulf %255, %255 : vector<16x32xf32>
    %cst_87 = arith.constant dense<0.000000e+00> : vector<16xf32>
    %257 = vector.multi_reduction <add>, %256, %cst_87 [1] : vector<16x32xf32> to vector<16xf32>
    %258 = vector.shape_cast %257 : vector<16xf32> to vector<16x1xf32>
    %cst_88 = arith.constant 3.200000e+01 : f32
    %259 = vector.broadcast %cst_88 : f32 to vector<16x1xf32>
    %260 = arith.divf %258, %259 : vector<16x1xf32>
    %cst_89 = arith.constant 9.99999974E-6 : f32
    %261 = vector.broadcast %cst_89 : f32 to vector<16x1xf32>
    %262 = arith.addf %260, %261 : vector<16x1xf32>
    %263 = math.rsqrt %262 : vector<16x1xf32>
    %264 = vector.broadcast %263 : vector<16x1xf32> to vector<16x32xf32>
    %265 = arith.mulf %255, %264 : vector<16x32xf32>
    %266 = vector.broadcast %248 : vector<1x32xf32> to vector<16x32xf32>
    %267 = arith.mulf %265, %266 : vector<16x32xf32>
    %268 = vector.broadcast %249 : vector<1x32xf32> to vector<16x32xf32>
    %269 = arith.addf %267, %268 : vector<16x32xf32>
    %c0_90 = arith.constant 0 : index
    %c0_91 = arith.constant 0 : index
    %270 = vector.load %arg3[%c0_90, %c0_91] : memref<16x32xf32, #tpu.memory_space<vmem>>, vector<16x32xf32>
    tpu.vector_store %arg3[%c0_90, %c0_91], %269 {strides = array<i32>} : memref<16x32xf32, #tpu.memory_space<vmem>>, vector<16x32xf32>,
    return
  }
  func.func @transform_0(%arg0: i32) -> (i32, i32) {
    %c0_i32 = arith.constant 0 : i32
    %c0_i32_0 = arith.constant 0 : i32
    %c0_i32_1 = arith.constant 0 : i32
    return %c0_i32, %c0_i32_0 : i32, i32
  }
  func.func @transform_1(%arg0: i32) -> (i32, i32) {
    %c0_i32 = arith.constant 0 : i32
    %c0_i32_0 = arith.constant 0 : i32
    %c0_i32_1 = arith.constant 0 : i32
    return %c0_i32, %c0_i32_0 : i32, i32
  }
  func.func @transform_2(%arg0: i32) -> (i32, i32) {
    %c0_i32 = arith.constant 0 : i32
    %c0_i32_0 = arith.constant 0 : i32
    %c0_i32_1 = arith.constant 0 : i32
    return %c0_i32, %c0_i32_0 : i32, i32
  }
}

</mosaic_0001>

<llo_original>
// kernel: tpu_custom_call.1
$region0: #{tpu_custom_call.1}
  #allocation0 [shape = 'u32[]', space=smem, size = 0x4, offset = 0x4, fixed_abs, tag = 'smem constant byte address 0x4 - core index']
  #allocation1 [shape = 'u32[144,128]{1,0:T(1,128)}', space=vmem, size = 0x12000, scoped, tag = 'internal scratch']
  %s0 = inlined_call_operand.hbm [shape: f32[16,16], index: 0, kind: input, shape index: {}]
  %s1 = inlined_call_operand.hbm [shape: f32[472,128], index: 1, kind: input, shape index: {}]
  %s2 = inlined_call_operand.hbm [shape: f32[16,32], index: 2, kind: output, shape index: {}]
  %s3 = sld [smem:[#allocation0]]
  $region26: #{tpu_custom_call.1} parent=0
    _
  %s5 = ssub.s32 1, %s3
  %s6 = scalar_select 0, %s5, %s3
  $region1: #{tpu_custom_call.1} parent=0
    #allocation2 [shape = 'u8[8192]{0}', space=vmem, size = 0x2000, scoped, tag = 'input window, operand 0, single buffered']
    #allocation3 [shape = 's32[1]{0}', space=sflag, size = 0x4, scoped, tag = 'scoped memory for tpu_custom_call.1']
    #allocation4 [shape = 's32[1]{0}', space=sflag, size = 0x4, scoped, tag = 'scoped memory for tpu_custom_call.1']
    #allocation5 [shape = 'u8[241664]{0}', space=vmem, size = 0x3b000, scoped, tag = 'input window, operand 1, single buffered']
    #allocation6 [shape = 's32[1]{0}', space=sflag, size = 0x4, scoped, tag = 'scoped memory for tpu_custom_call.1']
    #allocation7 [shape = 'u8[8192]{0}', space=vmem, size = 0x2000, scoped, tag = 'output window, operand 0, single buffered']
    %7 = vsyncpa [#allocation3], 0
    %8 = vsyncpa [#allocation6], 0
    %9 = vsyncpa [#allocation4], 0
    // Predicated region
    $region2: #{tpu_custom_call.1} parent=1 // pred_check
      _
    $region3: #{tpu_custom_call.1} parent=1 // pred_check_branch
      %11 = sbr.rel (0) target = $region5
    $region4: #{tpu_custom_call.1} parent=1 // pred_region
      %s13 = ssub.s32 256, 256
      %14 = vsyncadd [#allocation3], %s13
      %s15 = sshll.u32 [#allocation2], 4
      %s16 = int_to_ptr.vmem [resolvable:$true] %s15
      %21 = dma.hbm_to_vmem [thread:$0]  %s0, 256, %s16, [#allocation3], 128, 128, 8
    $region5: #{tpu_custom_call.1} parent=1 // pred_fallthru
      _
    // Predicated region
    $region6: #{tpu_custom_call.1} parent=1 // pred_check
      _
    $region7: #{tpu_custom_call.1} parent=1 // pred_check_branch
      %23 = sbr.rel (0) target = $region9
    $region8: #{tpu_custom_call.1} parent=1 // pred_region
      %s25 = ssub.s32 7552, 7552
      %26 = vsyncadd [#allocation6], %s25
      %s27 = sshll.u32 [#allocation5], 4
      %s28 = int_to_ptr.vmem [resolvable:$true] %s27
      %33 = dma.hbm_to_vmem [thread:$0]  %s1, 7552, %s28, [#allocation6], 128, 128, 8
    $region9: #{tpu_custom_call.1} parent=1 // pred_fallthru
      _
    // Predicated region
    $region10: #{tpu_custom_call.1} parent=1 // pred_check
      _
    $region11: #{tpu_custom_call.1} parent=1 // pred_check_branch
      %35 = sbr.rel (0) target = $region13
    $region12: #{tpu_custom_call.1} parent=1 // pred_region
      %36 = dma.done [#allocation3], 256
    $region13: #{tpu_custom_call.1} parent=1 // pred_fallthru
      _
    // Predicated region
    $region14: #{tpu_custom_call.1} parent=1 // pred_check
      _
    $region15: #{tpu_custom_call.1} parent=1 // pred_check_branch
      %38 = sbr.rel (0) target = $region17
    $region16: #{tpu_custom_call.1} parent=1 // pred_region
      %39 = dma.done [#allocation6], 7552
    $region17: #{tpu_custom_call.1} parent=1 // pred_fallthru
      _
    %v40 = vld [vmem:[#allocation2] sm:$0xff]
    %v41 = vld [vmem:[#allocation2 + $0x8] sm:$0xff]
    %v42 = vld [vmem:[#allocation5] sm:$0xff]
    %v43 = vld [vmem:[#allocation5 + $0x8] sm:$0xff]
    %v44 = vld [vmem:[#allocation5 + $0x10] sm:$0x1]
    %v45 = vlaneseq
    %v46 = vshrl.u32 %v45, 7
    %v47 = vsub.s32 0, %v46
    %v48 = vrot.slane %v44, %v47
    %vm49 = vcmask 130048
    %v51 = vsel %vm49, %v40, 0
    %v54 = vsel %vm49, %v41, 0
    %56 = vmatprep.subr.mxu0 0.0
    %57 = vmatpush1.msra.mxu0 0.0
    %58 = vmatprep.subr.mxu0 0.0
    %59 = vmatpush1.msra.mxu0 0.0
    %60 = vmatprep.subr.mxu0 0.0
    %61 = vmatpush1.msra.mxu0 0.0
    %62 = vmatprep.subr.mxu0 0.0
    %63 = vmatpush1.msra.mxu0 0.0
    %64 = vmatprep.subr.mxu0 0.0
    %65 = vmatpush1.msra.mxu0 0.0
    %66 = vmatprep.subr.mxu0 0.0
    %67 = vmatpush1.msra.mxu0 0.0
    %68 = vmatprep.subr.mxu0 0.0
    %69 = vmatpush1.msra.mxu0 0.0
    %70 = vmatprep.subr.mxu0 0.0
    %71 = vmatpush1.msra.mxu0 0.0
    %72 = vmatprep.subr.mxu0 0.0
    %73 = vmatpush1.msra.mxu0 0.0
    %74 = vmatprep.subr.mxu0 0.0
    %75 = vmatpush1.msra.mxu0 0.0
    %76 = vmatprep.subr.mxu0 0.0
    %77 = vmatpush1.msra.mxu0 0.0
    %78 = vmatprep.subr.mxu0 0.0
    %79 = vmatpush1.msra.mxu0 0.0
    %80 = vmatprep.subr.mxu0 0.0
    %81 = vmatpush1.msra.mxu0 0.0
    %82 = vmatprep.subr.mxu0 0.0
    %83 = vmatpush1.msra.mxu0 0.0
    %84 = vmatprep.subr.mxu0 0.0
    %85 = vmatpush1.msra.mxu0 %v43
    %86 = vmatprep.subr.mxu0 0.0
    %87 = vmatpush1.msra.mxu0 %v42
    %88 = vmatprep.subr.mxu0 0.0
    %89 = vmatpush2.msra.mxu0 0.0
    %90 = vmatprep.subr.mxu0 0.0
    %91 = vmatpush2.msra.mxu0 0.0
    %92 = vmatprep.subr.mxu0 0.0
    %93 = vmatpush2.msra.mxu0 0.0
    %94 = vmatprep.subr.mxu0 0.0
    %95 = vmatpush2.msra.mxu0 0.0
    %96 = vmatprep.subr.mxu0 0.0
    %97 = vmatpush2.msra.mxu0 0.0
    %98 = vmatprep.subr.mxu0 0.0
    %99 = vmatpush2.msra.mxu0 0.0
    %100 = vmatprep.subr.mxu0 0.0
    %101 = vmatpush2.msra.mxu0 0.0
    %102 = vmatprep.subr.mxu0 0.0
    %103 = vmatpush2.msra.mxu0 0.0
    %104 = vmatprep.subr.mxu0 0.0
    %105 = vmatpush2.msra.mxu0 0.0
    %106 = vmatprep.subr.mxu0 0.0
    %107 = vmatpush2.msra.mxu0 0.0
    %108 = vmatprep.subr.mxu0 0.0
    %109 = vmatpush2.msra.mxu0 0.0
    %110 = vmatprep.subr.mxu0 0.0
    %111 = vmatpush2.msra.mxu0 0.0
    %112 = vmatprep.subr.mxu0 0.0
    %113 = vmatpush2.msra.mxu0 0.0
    %114 = vmatprep.subr.mxu0 0.0
    %115 = vmatpush2.msra.mxu0 0.0
    %116 = vmatprep.subr.mxu0 0.0
    %117 = vmatpush2.msra.mxu0 0.0
    %118 = vmatprep.subr.mxu0 0.0
    %119 = vmatpush2.msra.mxu0 0.0
    %120 = vmatprep.mubr.f32.mxu0 0.0
    %121 = vmatmul.mubr.f32.gmra.mxu0 %v51
    %v122 = vpop.f32.mrf.mxu0
    %v123 = vadd.f32 %v48, %v122
    %v124 = vpop.f32.mrf.mxu0
    %125 = vmatprep.mubr.f32.mxu0 0.0
    %126 = vmatmul.mubr.f32.gmra.mxu0 %v54
    %v127 = vpop.f32.mrf.mxu0
    %v128 = vadd.f32 %v48, %v127
    %v129 = vpop.f32.mrf.mxu0
    %130 = vdwg.mxu0
    %v131 = vld [vmem:[#allocation5 + $0x18] sm:$0xff]
    %v132 = vld [vmem:[#allocation5 + $0x20] sm:$0xff]
    %v133 = vld [vmem:[#allocation5 + $0x28] sm:$0xff]
    %v134 = vld [vmem:[#allocation5 + $0x30] sm:$0xff]
    %v135 = vld [vmem:[#allocation5 + $0x38] sm:$0x1]
    %v136 = vlaneseq
    %v137 = vshrl.u32 %v136, 7
    %v138 = vsub.s32 0, %v137
    %v139 = vrot.slane %v135, %v138
    %vm140 = vcmask 261120
    %v142 = vsel %vm140, %v123, 0
    %v145 = vsel %vm140, %v128, 0
    %147 = vmatprep.subr.mxu0 0.0
    %148 = vmatpush1.msra.mxu0 0.0
    %149 = vmatprep.subr.mxu0 0.0
    %150 = vmatpush1.msra.mxu0 0.0
    %151 = vmatprep.subr.mxu0 0.0
    %152 = vmatpush1.msra.mxu0 0.0
    %153 = vmatprep.subr.mxu0 0.0
    %154 = vmatpush1.msra.mxu0 0.0
    %155 = vmatprep.subr.mxu0 0.0
    %156 = vmatpush1.msra.mxu0 0.0
    %157 = vmatprep.subr.mxu0 0.0
    %158 = vmatpush1.msra.mxu0 0.0
    %159 = vmatprep.subr.mxu0 0.0
    %160 = vmatpush1.msra.mxu0 0.0
    %161 = vmatprep.subr.mxu0 0.0
    %162 = vmatpush1.msra.mxu0 0.0
    %163 = vmatprep.subr.mxu0 0.0
    %164 = vmatpush1.msra.mxu0 0.0
    %165 = vmatprep.subr.mxu0 0.0
    %166 = vmatpush1.msra.mxu0 0.0
    %167 = vmatprep.subr.mxu0 0.0
    %168 = vmatpush1.msra.mxu0 0.0
    %169 = vmatprep.subr.mxu0 0.0
    %170 = vmatpush1.msra.mxu0 0.0
    %171 = vmatprep.subr.mxu0 0.0
    %172 = vmatpush1.msra.mxu0 %v134
    %173 = vmatprep.subr.mxu0 0.0
    %174 = vmatpush1.msra.mxu0 %v133
    %175 = vmatprep.subr.mxu0 0.0
    %176 = vmatpush1.msra.mxu0 %v132
    %177 = vmatprep.subr.mxu0 0.0
    %178 = vmatpush1.msra.mxu0 %v131
    %179 = vmatprep.subr.mxu0 0.0
    %180 = vmatpush2.msra.mxu0 0.0
    %181 = vmatprep.subr.mxu0 0.0
    %182 = vmatpush2.msra.mxu0 0.0
    %183 = vmatprep.subr.mxu0 0.0
    %184 = vmatpush2.msra.mxu0 0.0
    %185 = vmatprep.subr.mxu0 0.0
    %186 = vmatpush2.msra.mxu0 0.0
    %187 = vmatprep.subr.mxu0 0.0
    %188 = vmatpush2.msra.mxu0 0.0
    %189 = vmatprep.subr.mxu0 0.0
    %190 = vmatpush2.msra.mxu0 0.0
    %191 = vmatprep.subr.mxu0 0.0
    %192 = vmatpush2.msra.mxu0 0.0
    %193 = vmatprep.subr.mxu0 0.0
    %194 = vmatpush2.msra.mxu0 0.0
    %195 = vmatprep.subr.mxu0 0.0
    %196 = vmatpush2.msra.mxu0 0.0
    %197 = vmatprep.subr.mxu0 0.0
    %198 = vmatpush2.msra.mxu0 0.0
    %199 = vmatprep.subr.mxu0 0.0
    %200 = vmatpush2.msra.mxu0 0.0
    %201 = vmatprep.subr.mxu0 0.0
    %202 = vmatpush2.msra.mxu0 0.0
    %203 = vmatprep.subr.mxu0 0.0
    %204 = vmatpush2.msra.mxu0 0.0
    %205 = vmatprep.subr.mxu0 0.0
    %206 = vmatpush2.msra.mxu0 0.0
    %207 = vmatprep.subr.mxu0 0.0
    %208 = vmatpush2.msra.mxu0 0.0
    %209 = vmatprep.subr.mxu0 0.0
    %210 = vmatpush2.msra.mxu0 0.0
    %211 = vmatprep.mubr.f32.mxu0 0.0
    %212 = vmatmul.mubr.f32.gmra.mxu0 %v142
    %v213 = vpop.f32.mrf.mxu0
    %v214 = vadd.f32 %v139, %v213
    %v215 = vpop.f32.mrf.mxu0
    %216 = vmatprep.mubr.f32.mxu0 0.0
    %217 = vmatmul.mubr.f32.gmra.mxu0 %v145
    %v218 = vpop.f32.mrf.mxu0
    %v219 = vadd.f32 %v139, %v218
    %v220 = vpop.f32.mrf.mxu0
    %221 = vdwg.mxu0
    %223 = vrot.lane.b32.xlu0 %v214, 96
    %v224 = vpop.permute.xlu0 %223
    %vm225 = vcmask 64512
    %v226 = vsel %vm225, %v214, 0
    %v228 = vsel %vm225, %v224, 0
    %230 = vmatprep.subr.mxu0 0.0
    %231 = vmatpush1.xpose.msra.mxu0 0.0
    %232 = vmatprep.subr.mxu0 0.0
    %233 = vmatpush1.xpose.msra.mxu0 0.0
    %234 = vmatprep.subr.mxu0 0.0
    %235 = vmatpush1.xpose.msra.mxu0 0.0
    %236 = vmatprep.subr.mxu0 0.0
    %237 = vmatpush1.xpose.msra.mxu0 0.0
    %238 = vmatprep.subr.mxu0 0.0
    %239 = vmatpush1.xpose.msra.mxu0 0.0
    %240 = vmatprep.subr.mxu0 0.0
    %241 = vmatpush1.xpose.msra.mxu0 0.0
    %242 = vmatprep.subr.mxu0 0.0
    %243 = vmatpush1.xpose.msra.mxu0 0.0
    %244 = vmatprep.subr.mxu0 0.0
    %245 = vmatpush1.xpose.msra.mxu0 0.0
    %246 = vmatprep.subr.mxu0 0.0
    %247 = vmatpush1.xpose.msra.mxu0 0.0
    %248 = vmatprep.subr.mxu0 0.0
    %249 = vmatpush1.xpose.msra.mxu0 0.0
    %250 = vmatprep.subr.mxu0 0.0
    %251 = vmatpush1.xpose.msra.mxu0 0.0
    %252 = vmatprep.subr.mxu0 0.0
    %253 = vmatpush1.xpose.msra.mxu0 0.0
    %254 = vmatprep.subr.mxu0 0.0
    %255 = vmatpush1.xpose.msra.mxu0 0.0
    %256 = vmatprep.subr.mxu0 0.0
    %257 = vmatpush1.xpose.msra.mxu0 0.0
    %258 = vmatprep.subr.mxu0 0.0
    %259 = vmatpush1.xpose.msra.mxu0 0.0
    %260 = vmatprep.subr.mxu0 0.0
    %261 = vmatpush1.xpose.msra.mxu0 %v228
    %262 = vmatprep.subr.mxu0 0.0
    %263 = vmatpush2.xpose.msra.mxu0 0.0
    %264 = vmatprep.subr.mxu0 0.0
    %265 = vmatpush2.xpose.msra.mxu0 0.0
    %266 = vmatprep.subr.mxu0 0.0
    %267 = vmatpush2.xpose.msra.mxu0 0.0
    %268 = vmatprep.subr.mxu0 0.0
    %269 = vmatpush2.xpose.msra.mxu0 0.0
    %270 = vmatprep.subr.mxu0 0.0
    %271 = vmatpush2.xpose.msra.mxu0 0.0
    %272 = vmatprep.subr.mxu0 0.0
    %273 = vmatpush2.xpose.msra.mxu0 0.0
    %274 = vmatprep.subr.mxu0 0.0
    %275 = vmatpush2.xpose.msra.mxu0 0.0
    %276 = vmatprep.subr.mxu0 0.0
    %277 = vmatpush2.xpose.msra.mxu0 0.0
    %278 = vmatprep.subr.mxu0 0.0
    %279 = vmatpush2.xpose.msra.mxu0 0.0
    %280 = vmatprep.subr.mxu0 0.0
    %281 = vmatpush2.xpose.msra.mxu0 0.0
    %282 = vmatprep.subr.mxu0 0.0
    %283 = vmatpush2.xpose.msra.mxu0 0.0
    %284 = vmatprep.subr.mxu0 0.0
    %285 = vmatpush2.xpose.msra.mxu0 0.0
    %286 = vmatprep.subr.mxu0 0.0
    %287 = vmatpush2.xpose.msra.mxu0 0.0
    %288 = vmatprep.subr.mxu0 0.0
    %289 = vmatpush2.xpose.msra.mxu0 0.0
    %290 = vmatprep.subr.mxu0 0.0
    %291 = vmatpush2.xpose.msra.mxu0 0.0
    %292 = vmatprep.subr.mxu0 0.0
    %293 = vmatpush2.xpose.msra.mxu0 0.0
    %294 = vmatprep.mubr.f32.mxu0 0.0
    %295 = vmatmul.mubr.f32.gmra.mxu0 %v226
    %v296 = vpop.f32.mrf.mxu0
    %v297 = vadd.f32 0.0, %v296
    %v298 = vpop.f32.mrf.mxu0
    %299 = vdwg.mxu0
    %301 = vrot.lane.b32.xlu0 %v219, 96
    %v302 = vpop.permute.xlu0 %301
    %v303 = vsel %vm225, %v219, 0
    %v305 = vsel %vm225, %v302, 0
    %307 = vmatprep.subr.mxu0 0.0
    %308 = vmatpush1.xpose.msra.mxu0 0.0
    %309 = vmatprep.subr.mxu0 0.0
    %310 = vmatpush1.xpose.msra.mxu0 0.0
    %311 = vmatprep.subr.mxu0 0.0
    %312 = vmatpush1.xpose.msra.mxu0 0.0
    %313 = vmatprep.subr.mxu0 0.0
    %314 = vmatpush1.xpose.msra.mxu0 0.0
    %315 = vmatprep.subr.mxu0 0.0
    %316 = vmatpush1.xpose.msra.mxu0 0.0
    %317 = vmatprep.subr.mxu0 0.0
    %318 = vmatpush1.xpose.msra.mxu0 0.0
    %319 = vmatprep.subr.mxu0 0.0
    %320 = vmatpush1.xpose.msra.mxu0 0.0
    %321 = vmatprep.subr.mxu0 0.0
    %322 = vmatpush1.xpose.msra.mxu0 0.0
    %323 = vmatprep.subr.mxu0 0.0
    %324 = vmatpush1.xpose.msra.mxu0 0.0
    %325 = vmatprep.subr.mxu0 0.0
    %326 = vmatpush1.xpose.msra.mxu0 0.0
    %327 = vmatprep.subr.mxu0 0.0
    %328 = vmatpush1.xpose.msra.mxu0 0.0
    %329 = vmatprep.subr.mxu0 0.0
    %330 = vmatpush1.xpose.msra.mxu0 0.0
    %331 = vmatprep.subr.mxu0 0.0
    %332 = vmatpush1.xpose.msra.mxu0 0.0
    %333 = vmatprep.subr.mxu0 0.0
    %334 = vmatpush1.xpose.msra.mxu0 0.0
    %335 = vmatprep.subr.mxu0 0.0
    %336 = vmatpush1.xpose.msra.mxu0 0.0
    %337 = vmatprep.subr.mxu0 0.0
    %338 = vmatpush1.xpose.msra.mxu0 %v305
    %339 = vmatprep.subr.mxu0 0.0
    %340 = vmatpush2.xpose.msra.mxu0 0.0
    %341 = vmatprep.subr.mxu0 0.0
    %342 = vmatpush2.xpose.msra.mxu0 0.0
    %343 = vmatprep.subr.mxu0 0.0
    %344 = vmatpush2.xpose.msra.mxu0 0.0
    %345 = vmatprep.subr.mxu0 0.0
    %346 = vmatpush2.xpose.msra.mxu0 0.0
    %347 = vmatprep.subr.mxu0 0.0
    %348 = vmatpush2.xpose.msra.mxu0 0.0
    %349 = vmatprep.subr.mxu0 0.0
    %350 = vmatpush2.xpose.msra.mxu0 0.0
    %351 = vmatprep.subr.mxu0 0.0
    %352 = vmatpush2.xpose.msra.mxu0 0.0
    %353 = vmatprep.subr.mxu0 0.0
    %354 = vmatpush2.xpose.msra.mxu0 0.0
    %355 = vmatprep.subr.mxu0 0.0
    %356 = vmatpush2.xpose.msra.mxu0 0.0
    %357 = vmatprep.subr.mxu0 0.0
    %358 = vmatpush2.xpose.msra.mxu0 0.0
    %359 = vmatprep.subr.mxu0 0.0
    %360 = vmatpush2.xpose.msra.mxu0 0.0
    %361 = vmatprep.subr.mxu0 0.0
    %362 = vmatpush2.xpose.msra.mxu0 0.0
    %363 = vmatprep.subr.mxu0 0.0
    %364 = vmatpush2.xpose.msra.mxu0 0.0
    %365 = vmatprep.subr.mxu0 0.0
    %366 = vmatpush2.xpose.msra.mxu0 0.0
    %367 = vmatprep.subr.mxu0 0.0
    %368 = vmatpush2.xpose.msra.mxu0 0.0
    %369 = vmatprep.subr.mxu0 0.0
    %370 = vmatpush2.xpose.msra.mxu0 0.0
    %371 = vmatprep.mubr.f32.mxu0 0.0
    %372 = vmatmul.mubr.f32.gmra.mxu0 %v303
    %v373 = vpop.f32.mrf.mxu0
    %v374 = vadd.f32 0.0, %v373
    %v375 = vpop.f32.mrf.mxu0
    %376 = vdwg.mxu0
    %v377 = vsel %vm225, %v297, -inf
    %378 = vmax.xlane.f32.xlu0 %v377
    %v379 = vpop.xlane.xlu0 %378
    %v380 = vsel %vm225, %v374, -inf
    %381 = vmax.xlane.f32.xlu0 %v380
    %v382 = vpop.xlane.xlu0 %381
    %v383 = vsub.f32 %v297, %v379
    %v384 = vsub.f32 %v374, %v382
    %v385 = vmul.f32 %v383, 1.442695
    %v386 = vpow.pop %v385
    %v387 = vmul.f32 %v384, 1.442695
    %v388 = vpow.pop %v387
    %v389 = vsel %vm225, %v386, 0.0
    %390 = vadd.xlane.f32.xlu0 %v389
    %v391 = vpop.xlane.xlu0 %390
    %v392 = vsel %vm225, %v388, 0.0
    %393 = vadd.xlane.f32.xlu0 %v392
    %v394 = vpop.xlane.xlu0 %393
    %v395 = vrcp.pop %v391
    %v396 = vmul.f32 %v386, %v395
    %v397 = vrcp.pop %v394
    %v398 = vmul.f32 %v388, %v397
    %399 = vrot.lane.b32.xlu0 %v214, 64
    %v400 = vpop.permute.xlu0 %399
    %v403 = vsel %vm225, %v396, 0
    %405 = vmatprep.subr.mxu0 0.0
    %406 = vmatpush1.msra.mxu0 0.0
    %407 = vmatprep.subr.mxu0 0.0
    %408 = vmatpush1.msra.mxu0 0.0
    %409 = vmatprep.subr.mxu0 0.0
    %410 = vmatpush1.msra.mxu0 0.0
    %411 = vmatprep.subr.mxu0 0.0
    %412 = vmatpush1.msra.mxu0 0.0
    %413 = vmatprep.subr.mxu0 0.0
    %414 = vmatpush1.msra.mxu0 0.0
    %415 = vmatprep.subr.mxu0 0.0
    %416 = vmatpush1.msra.mxu0 0.0
    %417 = vmatprep.subr.mxu0 0.0
    %418 = vmatpush1.msra.mxu0 0.0
    %419 = vmatprep.subr.mxu0 0.0
    %420 = vmatpush1.msra.mxu0 0.0
    %421 = vmatprep.subr.mxu0 0.0
    %422 = vmatpush1.msra.mxu0 0.0
    %423 = vmatprep.subr.mxu0 0.0
    %424 = vmatpush1.msra.mxu0 0.0
    %425 = vmatprep.subr.mxu0 0.0
    %426 = vmatpush1.msra.mxu0 0.0
    %427 = vmatprep.subr.mxu0 0.0
    %428 = vmatpush1.msra.mxu0 0.0
    %429 = vmatprep.subr.mxu0 0.0
    %430 = vmatpush1.msra.mxu0 0.0
    %431 = vmatprep.subr.mxu0 0.0
    %432 = vmatpush1.msra.mxu0 0.0
    %433 = vmatprep.subr.mxu0 0.0
    %434 = vmatpush1.msra.mxu0 0.0
    %435 = vmatprep.subr.mxu0 0.0
    %436 = vmatpush1.msra.mxu0 %v400
    %437 = vmatprep.subr.mxu0 0.0
    %438 = vmatpush2.msra.mxu0 0.0
    %439 = vmatprep.subr.mxu0 0.0
    %440 = vmatpush2.msra.mxu0 0.0
    %441 = vmatprep.subr.mxu0 0.0
    %442 = vmatpush2.msra.mxu0 0.0
    %443 = vmatprep.subr.mxu0 0.0
    %444 = vmatpush2.msra.mxu0 0.0
    %445 = vmatprep.subr.mxu0 0.0
    %446 = vmatpush2.msra.mxu0 0.0
    %447 = vmatprep.subr.mxu0 0.0
    %448 = vmatpush2.msra.mxu0 0.0
    %449 = vmatprep.subr.mxu0 0.0
    %450 = vmatpush2.msra.mxu0 0.0
    %451 = vmatprep.subr.mxu0 0.0
    %452 = vmatpush2.msra.mxu0 0.0
    %453 = vmatprep.subr.mxu0 0.0
    %454 = vmatpush2.msra.mxu0 0.0
    %455 = vmatprep.subr.mxu0 0.0
    %456 = vmatpush2.msra.mxu0 0.0
    %457 = vmatprep.subr.mxu0 0.0
    %458 = vmatpush2.msra.mxu0 0.0
    %459 = vmatprep.subr.mxu0 0.0
    %460 = vmatpush2.msra.mxu0 0.0
    %461 = vmatprep.subr.mxu0 0.0
    %462 = vmatpush2.msra.mxu0 0.0
    %463 = vmatprep.subr.mxu0 0.0
    %464 = vmatpush2.msra.mxu0 0.0
    %465 = vmatprep.subr.mxu0 0.0
    %466 = vmatpush2.msra.mxu0 0.0
    %467 = vmatprep.subr.mxu0 0.0
    %468 = vmatpush2.msra.mxu0 0.0
    %469 = vmatprep.mubr.f32.mxu0 0.0
    %470 = vmatmul.mubr.f32.gmra.mxu0 %v403
    %v471 = vpop.f32.mrf.mxu0
    %v472 = vadd.f32 0.0, %v471
    %v473 = vpop.f32.mrf.mxu0
    %474 = vdwg.mxu0
    %475 = vrot.lane.b32.xlu0 %v219, 64
    %v476 = vpop.permute.xlu0 %475
    %v479 = vsel %vm225, %v398, 0
    %481 = vmatprep.subr.mxu0 0.0
    %482 = vmatpush1.msra.mxu0 0.0
    %483 = vmatprep.subr.mxu0 0.0
    %484 = vmatpush1.msra.mxu0 0.0
    %485 = vmatprep.subr.mxu0 0.0
    %486 = vmatpush1.msra.mxu0 0.0
    %487 = vmatprep.subr.mxu0 0.0
    %488 = vmatpush1.msra.mxu0 0.0
    %489 = vmatprep.subr.mxu0 0.0
    %490 = vmatpush1.msra.mxu0 0.0
    %491 = vmatprep.subr.mxu0 0.0
    %492 = vmatpush1.msra.mxu0 0.0
    %493 = vmatprep.subr.mxu0 0.0
    %494 = vmatpush1.msra.mxu0 0.0
    %495 = vmatprep.subr.mxu0 0.0
    %496 = vmatpush1.msra.mxu0 0.0
    %497 = vmatprep.subr.mxu0 0.0
    %498 = vmatpush1.msra.mxu0 0.0
    %499 = vmatprep.subr.mxu0 0.0
    %500 = vmatpush1.msra.mxu0 0.0
    %501 = vmatprep.subr.mxu0 0.0
    %502 = vmatpush1.msra.mxu0 0.0
    %503 = vmatprep.subr.mxu0 0.0
    %504 = vmatpush1.msra.mxu0 0.0
    %505 = vmatprep.subr.mxu0 0.0
    %506 = vmatpush1.msra.mxu0 0.0
    %507 = vmatprep.subr.mxu0 0.0
    %508 = vmatpush1.msra.mxu0 0.0
    %509 = vmatprep.subr.mxu0 0.0
    %510 = vmatpush1.msra.mxu0 0.0
    %511 = vmatprep.subr.mxu0 0.0
    %512 = vmatpush1.msra.mxu0 %v476
    %513 = vmatprep.subr.mxu0 0.0
    %514 = vmatpush2.msra.mxu0 0.0
    %515 = vmatprep.subr.mxu0 0.0
    %516 = vmatpush2.msra.mxu0 0.0
    %517 = vmatprep.subr.mxu0 0.0
    %518 = vmatpush2.msra.mxu0 0.0
    %519 = vmatprep.subr.mxu0 0.0
    %520 = vmatpush2.msra.mxu0 0.0
    %521 = vmatprep.subr.mxu0 0.0
    %522 = vmatpush2.msra.mxu0 0.0
    %523 = vmatprep.subr.mxu0 0.0
    %524 = vmatpush2.msra.mxu0 0.0
    %525 = vmatprep.subr.mxu0 0.0
    %526 = vmatpush2.msra.mxu0 0.0
    %527 = vmatprep.subr.mxu0 0.0
    %528 = vmatpush2.msra.mxu0 0.0
    %529 = vmatprep.subr.mxu0 0.0
    %530 = vmatpush2.msra.mxu0 0.0
    %531 = vmatprep.subr.mxu0 0.0
    %532 = vmatpush2.msra.mxu0 0.0
    %533 = vmatprep.subr.mxu0 0.0
    %534 = vmatpush2.msra.mxu0 0.0
    %535 = vmatprep.subr.mxu0 0.0
    %536 = vmatpush2.msra.mxu0 0.0
    %537 = vmatprep.subr.mxu0 0.0
    %538 = vmatpush2.msra.mxu0 0.0
    %539 = vmatprep.subr.mxu0 0.0
    %540 = vmatpush2.msra.mxu0 0.0
    %541 = vmatprep.subr.mxu0 0.0
    %542 = vmatpush2.msra.mxu0 0.0
    %543 = vmatprep.subr.mxu0 0.0
    %544 = vmatpush2.msra.mxu0 0.0
    %545 = vmatprep.mubr.f32.mxu0 0.0
    %546 = vmatmul.mubr.f32.gmra.mxu0 %v479
    %v547 = vpop.f32.mrf.mxu0
    %v548 = vadd.f32 0.0, %v547
    %v549 = vpop.f32.mrf.mxu0
    %550 = vdwg.mxu0
    %551 = vrot.lane.b32.xlu0 %v214, 120
    %v552 = vpop.permute.xlu0 %551
    %553 = vrot.lane.b32.xlu0 %v214, 88
    %v554 = vpop.permute.xlu0 %553
    %v555 = vsel %vm225, %v552, 0
    %v557 = vsel %vm225, %v554, 0
    %559 = vmatprep.subr.mxu0 0.0
    %560 = vmatpush1.xpose.msra.mxu0 0.0
    %561 = vmatprep.subr.mxu0 0.0
    %562 = vmatpush1.xpose.msra.mxu0 0.0
    %563 = vmatprep.subr.mxu0 0.0
    %564 = vmatpush1.xpose.msra.mxu0 0.0
    %565 = vmatprep.subr.mxu0 0.0
    %566 = vmatpush1.xpose.msra.mxu0 0.0
    %567 = vmatprep.subr.mxu0 0.0
    %568 = vmatpush1.xpose.msra.mxu0 0.0
    %569 = vmatprep.subr.mxu0 0.0
    %570 = vmatpush1.xpose.msra.mxu0 0.0
    %571 = vmatprep.subr.mxu0 0.0
    %572 = vmatpush1.xpose.msra.mxu0 0.0
    %573 = vmatprep.subr.mxu0 0.0
    %574 = vmatpush1.xpose.msra.mxu0 0.0
    %575 = vmatprep.subr.mxu0 0.0
    %576 = vmatpush1.xpose.msra.mxu0 0.0
    %577 = vmatprep.subr.mxu0 0.0
    %578 = vmatpush1.xpose.msra.mxu0 0.0
    %579 = vmatprep.subr.mxu0 0.0
    %580 = vmatpush1.xpose.msra.mxu0 0.0
    %581 = vmatprep.subr.mxu0 0.0
    %582 = vmatpush1.xpose.msra.mxu0 0.0
    %583 = vmatprep.subr.mxu0 0.0
    %584 = vmatpush1.xpose.msra.mxu0 0.0
    %585 = vmatprep.subr.mxu0 0.0
    %586 = vmatpush1.xpose.msra.mxu0 0.0
    %587 = vmatprep.subr.mxu0 0.0
    %588 = vmatpush1.xpose.msra.mxu0 0.0
    %589 = vmatprep.subr.mxu0 0.0
    %590 = vmatpush1.xpose.msra.mxu0 %v557
    %591 = vmatprep.subr.mxu0 0.0
    %592 = vmatpush2.xpose.msra.mxu0 0.0
    %593 = vmatprep.subr.mxu0 0.0
    %594 = vmatpush2.xpose.msra.mxu0 0.0
    %595 = vmatprep.subr.mxu0 0.0
    %596 = vmatpush2.xpose.msra.mxu0 0.0
    %597 = vmatprep.subr.mxu0 0.0
    %598 = vmatpush2.xpose.msra.mxu0 0.0
    %599 = vmatprep.subr.mxu0 0.0
    %600 = vmatpush2.xpose.msra.mxu0 0.0
    %601 = vmatprep.subr.mxu0 0.0
    %602 = vmatpush2.xpose.msra.mxu0 0.0
    %603 = vmatprep.subr.mxu0 0.0
    %604 = vmatpush2.xpose.msra.mxu0 0.0
    %605 = vmatprep.subr.mxu0 0.0
    %606 = vmatpush2.xpose.msra.mxu0 0.0
    %607 = vmatprep.subr.mxu0 0.0
    %608 = vmatpush2.xpose.msra.mxu0 0.0
    %609 = vmatprep.subr.mxu0 0.0
    %610 = vmatpush2.xpose.msra.mxu0 0.0
    %611 = vmatprep.subr.mxu0 0.0
    %612 = vmatpush2.xpose.msra.mxu0 0.0
    %613 = vmatprep.subr.mxu0 0.0
    %614 = vmatpush2.xpose.msra.mxu0 0.0
    %615 = vmatprep.subr.mxu0 0.0
    %616 = vmatpush2.xpose.msra.mxu0 0.0
    %617 = vmatprep.subr.mxu0 0.0
    %618 = vmatpush2.xpose.msra.mxu0 0.0
    %619 = vmatprep.subr.mxu0 0.0
    %620 = vmatpush2.xpose.msra.mxu0 0.0
    %621 = vmatprep.subr.mxu0 0.0
    %622 = vmatpush2.xpose.msra.mxu0 0.0
    %623 = vmatprep.mubr.f32.mxu0 0.0
    %624 = vmatmul.mubr.f32.gmra.mxu0 %v555
    %v625 = vpop.f32.mrf.mxu0
    %v626 = vadd.f32 0.0, %v625
    %v627 = vpop.f32.mrf.mxu0
    %628 = vdwg.mxu0
    %629 = vrot.lane.b32.xlu0 %v219, 120
    %v630 = vpop.permute.xlu0 %629
    %631 = vrot.lane.b32.xlu0 %v219, 88
    %v632 = vpop.permute.xlu0 %631
    %v633 = vsel %vm225, %v630, 0
    %v635 = vsel %vm225, %v632, 0
    %637 = vmatprep.subr.mxu0 0.0
    %638 = vmatpush1.xpose.msra.mxu0 0.0
    %639 = vmatprep.subr.mxu0 0.0
    %640 = vmatpush1.xpose.msra.mxu0 0.0
    %641 = vmatprep.subr.mxu0 0.0
    %642 = vmatpush1.xpose.msra.mxu0 0.0
    %643 = vmatprep.subr.mxu0 0.0
    %644 = vmatpush1.xpose.msra.mxu0 0.0
    %645 = vmatprep.subr.mxu0 0.0
    %646 = vmatpush1.xpose.msra.mxu0 0.0
    %647 = vmatprep.subr.mxu0 0.0
    %648 = vmatpush1.xpose.msra.mxu0 0.0
    %649 = vmatprep.subr.mxu0 0.0
    %650 = vmatpush1.xpose.msra.mxu0 0.0
    %651 = vmatprep.subr.mxu0 0.0
    %652 = vmatpush1.xpose.msra.mxu0 0.0
    %653 = vmatprep.subr.mxu0 0.0
    %654 = vmatpush1.xpose.msra.mxu0 0.0
    %655 = vmatprep.subr.mxu0 0.0
    %656 = vmatpush1.xpose.msra.mxu0 0.0
    %657 = vmatprep.subr.mxu0 0.0
    %658 = vmatpush1.xpose.msra.mxu0 0.0
    %659 = vmatprep.subr.mxu0 0.0
    %660 = vmatpush1.xpose.msra.mxu0 0.0
    %661 = vmatprep.subr.mxu0 0.0
    %662 = vmatpush1.xpose.msra.mxu0 0.0
    %663 = vmatprep.subr.mxu0 0.0
    %664 = vmatpush1.xpose.msra.mxu0 0.0
    %665 = vmatprep.subr.mxu0 0.0
    %666 = vmatpush1.xpose.msra.mxu0 0.0
    %667 = vmatprep.subr.mxu0 0.0
    %668 = vmatpush1.xpose.msra.mxu0 %v635
    %669 = vmatprep.subr.mxu0 0.0
    %670 = vmatpush2.xpose.msra.mxu0 0.0
    %671 = vmatprep.subr.mxu0 0.0
    %672 = vmatpush2.xpose.msra.mxu0 0.0
    %673 = vmatprep.subr.mxu0 0.0
    %674 = vmatpush2.xpose.msra.mxu0 0.0
    %675 = vmatprep.subr.mxu0 0.0
    %676 = vmatpush2.xpose.msra.mxu0 0.0
    %677 = vmatprep.subr.mxu0 0.0
    %678 = vmatpush2.xpose.msra.mxu0 0.0
    %679 = vmatprep.subr.mxu0 0.0
    %680 = vmatpush2.xpose.msra.mxu0 0.0
    %681 = vmatprep.subr.mxu0 0.0
    %682 = vmatpush2.xpose.msra.mxu0 0.0
    %683 = vmatprep.subr.mxu0 0.0
    %684 = vmatpush2.xpose.msra.mxu0 0.0
    %685 = vmatprep.subr.mxu0 0.0
    %686 = vmatpush2.xpose.msra.mxu0 0.0
    %687 = vmatprep.subr.mxu0 0.0
    %688 = vmatpush2.xpose.msra.mxu0 0.0
    %689 = vmatprep.subr.mxu0 0.0
    %690 = vmatpush2.xpose.msra.mxu0 0.0
    %691 = vmatprep.subr.mxu0 0.0
    %692 = vmatpush2.xpose.msra.mxu0 0.0
    %693 = vmatprep.subr.mxu0 0.0
    %694 = vmatpush2.xpose.msra.mxu0 0.0
    %695 = vmatprep.subr.mxu0 0.0
    %696 = vmatpush2.xpose.msra.mxu0 0.0
    %697 = vmatprep.subr.mxu0 0.0
    %698 = vmatpush2.xpose.msra.mxu0 0.0
    %699 = vmatprep.subr.mxu0 0.0
    %700 = vmatpush2.xpose.msra.mxu0 0.0
    %701 = vmatprep.mubr.f32.mxu0 0.0
    %702 = vmatmul.mubr.f32.gmra.mxu0 %v633
    %v703 = vpop.f32.mrf.mxu0
    %v704 = vadd.f32 0.0, %v703
    %v705 = vpop.f32.mrf.mxu0
    %706 = vdwg.mxu0
    %v707 = vsel %vm225, %v626, -inf
    %708 = vmax.xlane.f32.xlu0 %v707
    %v709 = vpop.xlane.xlu0 %708
    %v710 = vsel %vm225, %v704, -inf
    %711 = vmax.xlane.f32.xlu0 %v710
    %v712 = vpop.xlane.xlu0 %711
    %v713 = vsub.f32 %v626, %v709
    %v714 = vsub.f32 %v704, %v712
    %v715 = vmul.f32 %v713, 1.442695
    %v716 = vpow.pop %v715
    %v717 = vmul.f32 %v714, 1.442695
    %v718 = vpow.pop %v717
    %v719 = vsel %vm225, %v716, 0.0
    %720 = vadd.xlane.f32.xlu0 %v719
    %v721 = vpop.xlane.xlu0 %720
    %v722 = vsel %vm225, %v718, 0.0
    %723 = vadd.xlane.f32.xlu0 %v722
    %v724 = vpop.xlane.xlu0 %723
    %v725 = vrcp.pop %v721
    %v726 = vmul.f32 %v716, %v725
    %v727 = vrcp.pop %v724
    %v728 = vmul.f32 %v718, %v727
    %729 = vrot.lane.b32.xlu0 %v214, 56
    %v730 = vpop.permute.xlu0 %729
    %v733 = vsel %vm225, %v726, 0
    %735 = vmatprep.subr.mxu0 0.0
    %736 = vmatpush1.msra.mxu0 0.0
    %737 = vmatprep.subr.mxu0 0.0
    %738 = vmatpush1.msra.mxu0 0.0
    %739 = vmatprep.subr.mxu0 0.0
    %740 = vmatpush1.msra.mxu0 0.0
    %741 = vmatprep.subr.mxu0 0.0
    %742 = vmatpush1.msra.mxu0 0.0
    %743 = vmatprep.subr.mxu0 0.0
    %744 = vmatpush1.msra.mxu0 0.0
    %745 = vmatprep.subr.mxu0 0.0
    %746 = vmatpush1.msra.mxu0 0.0
    %747 = vmatprep.subr.mxu0 0.0
    %748 = vmatpush1.msra.mxu0 0.0
    %749 = vmatprep.subr.mxu0 0.0
    %750 = vmatpush1.msra.mxu0 0.0
    %751 = vmatprep.subr.mxu0 0.0
    %752 = vmatpush1.msra.mxu0 0.0
    %753 = vmatprep.subr.mxu0 0.0
    %754 = vmatpush1.msra.mxu0 0.0
    %755 = vmatprep.subr.mxu0 0.0
    %756 = vmatpush1.msra.mxu0 0.0
    %757 = vmatprep.subr.mxu0 0.0
    %758 = vmatpush1.msra.mxu0 0.0
    %759 = vmatprep.subr.mxu0 0.0
    %760 = vmatpush1.msra.mxu0 0.0
    %761 = vmatprep.subr.mxu0 0.0
    %762 = vmatpush1.msra.mxu0 0.0
    %763 = vmatprep.subr.mxu0 0.0
    %764 = vmatpush1.msra.mxu0 0.0
    %765 = vmatprep.subr.mxu0 0.0
    %766 = vmatpush1.msra.mxu0 %v730
    %767 = vmatprep.subr.mxu0 0.0
    %768 = vmatpush2.msra.mxu0 0.0
    %769 = vmatprep.subr.mxu0 0.0
    %770 = vmatpush2.msra.mxu0 0.0
    %771 = vmatprep.subr.mxu0 0.0
    %772 = vmatpush2.msra.mxu0 0.0
    %773 = vmatprep.subr.mxu0 0.0
    %774 = vmatpush2.msra.mxu0 0.0
    %775 = vmatprep.subr.mxu0 0.0
    %776 = vmatpush2.msra.mxu0 0.0
    %777 = vmatprep.subr.mxu0 0.0
    %778 = vmatpush2.msra.mxu0 0.0
    %779 = vmatprep.subr.mxu0 0.0
    %780 = vmatpush2.msra.mxu0 0.0
    %781 = vmatprep.subr.mxu0 0.0
    %782 = vmatpush2.msra.mxu0 0.0
    %783 = vmatprep.subr.mxu0 0.0
    %784 = vmatpush2.msra.mxu0 0.0
    %785 = vmatprep.subr.mxu0 0.0
    %786 = vmatpush2.msra.mxu0 0.0
    %787 = vmatprep.subr.mxu0 0.0
    %788 = vmatpush2.msra.mxu0 0.0
    %789 = vmatprep.subr.mxu0 0.0
    %790 = vmatpush2.msra.mxu0 0.0
    %791 = vmatprep.subr.mxu0 0.0
    %792 = vmatpush2.msra.mxu0 0.0
    %793 = vmatprep.subr.mxu0 0.0
    %794 = vmatpush2.msra.mxu0 0.0
    %795 = vmatprep.subr.mxu0 0.0
    %796 = vmatpush2.msra.mxu0 0.0
    %797 = vmatprep.subr.mxu0 0.0
    %798 = vmatpush2.msra.mxu0 0.0
    %799 = vmatprep.mubr.f32.mxu0 0.0
    %800 = vmatmul.mubr.f32.gmra.mxu0 %v733
    %v801 = vpop.f32.mrf.mxu0
    %v802 = vadd.f32 0.0, %v801
    %v803 = vpop.f32.mrf.mxu0
    %804 = vdwg.mxu0
    %805 = vrot.lane.b32.xlu0 %v219, 56
    %v806 = vpop.permute.xlu0 %805
    %v809 = vsel %vm225, %v728, 0
    %811 = vmatprep.subr.mxu0 0.0
    %812 = vmatpush1.msra.mxu0 0.0
    %813 = vmatprep.subr.mxu0 0.0
    %814 = vmatpush1.msra.mxu0 0.0
    %815 = vmatprep.subr.mxu0 0.0
    %816 = vmatpush1.msra.mxu0 0.0
    %817 = vmatprep.subr.mxu0 0.0
    %818 = vmatpush1.msra.mxu0 0.0
    %819 = vmatprep.subr.mxu0 0.0
    %820 = vmatpush1.msra.mxu0 0.0
    %821 = vmatprep.subr.mxu0 0.0
    %822 = vmatpush1.msra.mxu0 0.0
    %823 = vmatprep.subr.mxu0 0.0
    %824 = vmatpush1.msra.mxu0 0.0
    %825 = vmatprep.subr.mxu0 0.0
    %826 = vmatpush1.msra.mxu0 0.0
    %827 = vmatprep.subr.mxu0 0.0
    %828 = vmatpush1.msra.mxu0 0.0
    %829 = vmatprep.subr.mxu0 0.0
    %830 = vmatpush1.msra.mxu0 0.0
    %831 = vmatprep.subr.mxu0 0.0
    %832 = vmatpush1.msra.mxu0 0.0
    %833 = vmatprep.subr.mxu0 0.0
    %834 = vmatpush1.msra.mxu0 0.0
    %835 = vmatprep.subr.mxu0 0.0
    %836 = vmatpush1.msra.mxu0 0.0
    %837 = vmatprep.subr.mxu0 0.0
    %838 = vmatpush1.msra.mxu0 0.0
    %839 = vmatprep.subr.mxu0 0.0
    %840 = vmatpush1.msra.mxu0 0.0
    %841 = vmatprep.subr.mxu0 0.0
    %842 = vmatpush1.msra.mxu0 %v806
    %843 = vmatprep.subr.mxu0 0.0
    %844 = vmatpush2.msra.mxu0 0.0
    %845 = vmatprep.subr.mxu0 0.0
    %846 = vmatpush2.msra.mxu0 0.0
    %847 = vmatprep.subr.mxu0 0.0
    %848 = vmatpush2.msra.mxu0 0.0
    %849 = vmatprep.subr.mxu0 0.0
    %850 = vmatpush2.msra.mxu0 0.0
    %851 = vmatprep.subr.mxu0 0.0
    %852 = vmatpush2.msra.mxu0 0.0
    %853 = vmatprep.subr.mxu0 0.0
    %854 = vmatpush2.msra.mxu0 0.0
    %855 = vmatprep.subr.mxu0 0.0
    %856 = vmatpush2.msra.mxu0 0.0
    %857 = vmatprep.subr.mxu0 0.0
    %858 = vmatpush2.msra.mxu0 0.0
    %859 = vmatprep.subr.mxu0 0.0
    %860 = vmatpush2.msra.mxu0 0.0
    %861 = vmatprep.subr.mxu0 0.0
    %862 = vmatpush2.msra.mxu0 0.0
    %863 = vmatprep.subr.mxu0 0.0
    %864 = vmatpush2.msra.mxu0 0.0
    %865 = vmatprep.subr.mxu0 0.0
    %866 = vmatpush2.msra.mxu0 0.0
    %867 = vmatprep.subr.mxu0 0.0
    %868 = vmatpush2.msra.mxu0 0.0
    %869 = vmatprep.subr.mxu0 0.0
    %870 = vmatpush2.msra.mxu0 0.0
    %871 = vmatprep.subr.mxu0 0.0
    %872 = vmatpush2.msra.mxu0 0.0
    %873 = vmatprep.subr.mxu0 0.0
    %874 = vmatpush2.msra.mxu0 0.0
    %875 = vmatprep.mubr.f32.mxu0 0.0
    %876 = vmatmul.mubr.f32.gmra.mxu0 %v809
    %v877 = vpop.f32.mrf.mxu0
    %v878 = vadd.f32 0.0, %v877
    %v879 = vpop.f32.mrf.mxu0
    %880 = vdwg.mxu0
    %881 = vrot.lane.b32.xlu0 %v214, 112
    %v882 = vpop.permute.xlu0 %881
    %883 = vrot.lane.b32.xlu0 %v214, 80
    %v884 = vpop.permute.xlu0 %883
    %v885 = vsel %vm225, %v882, 0
    %v887 = vsel %vm225, %v884, 0
    %889 = vmatprep.subr.mxu0 0.0
    %890 = vmatpush1.xpose.msra.mxu0 0.0
    %891 = vmatprep.subr.mxu0 0.0
    %892 = vmatpush1.xpose.msra.mxu0 0.0
    %893 = vmatprep.subr.mxu0 0.0
    %894 = vmatpush1.xpose.msra.mxu0 0.0
    %895 = vmatprep.subr.mxu0 0.0
    %896 = vmatpush1.xpose.msra.mxu0 0.0
    %897 = vmatprep.subr.mxu0 0.0
    %898 = vmatpush1.xpose.msra.mxu0 0.0
    %899 = vmatprep.subr.mxu0 0.0
    %900 = vmatpush1.xpose.msra.mxu0 0.0
    %901 = vmatprep.subr.mxu0 0.0
    %902 = vmatpush1.xpose.msra.mxu0 0.0
    %903 = vmatprep.subr.mxu0 0.0
    %904 = vmatpush1.xpose.msra.mxu0 0.0
    %905 = vmatprep.subr.mxu0 0.0
    %906 = vmatpush1.xpose.msra.mxu0 0.0
    %907 = vmatprep.subr.mxu0 0.0
    %908 = vmatpush1.xpose.msra.mxu0 0.0
    %909 = vmatprep.subr.mxu0 0.0
    %910 = vmatpush1.xpose.msra.mxu0 0.0
    %911 = vmatprep.subr.mxu0 0.0
    %912 = vmatpush1.xpose.msra.mxu0 0.0
    %913 = vmatprep.subr.mxu0 0.0
    %914 = vmatpush1.xpose.msra.mxu0 0.0
    %915 = vmatprep.subr.mxu0 0.0
    %916 = vmatpush1.xpose.msra.mxu0 0.0
    %917 = vmatprep.subr.mxu0 0.0
    %918 = vmatpush1.xpose.msra.mxu0 0.0
    %919 = vmatprep.subr.mxu0 0.0
    %920 = vmatpush1.xpose.msra.mxu0 %v887
    %921 = vmatprep.subr.mxu0 0.0
    %922 = vmatpush2.xpose.msra.mxu0 0.0
    %923 = vmatprep.subr.mxu0 0.0
    %924 = vmatpush2.xpose.msra.mxu0 0.0
    %925 = vmatprep.subr.mxu0 0.0
    %926 = vmatpush2.xpose.msra.mxu0 0.0
    %927 = vmatprep.subr.mxu0 0.0
    %928 = vmatpush2.xpose.msra.mxu0 0.0
    %929 = vmatprep.subr.mxu0 0.0
    %930 = vmatpush2.xpose.msra.mxu0 0.0
    %931 = vmatprep.subr.mxu0 0.0
    %932 = vmatpush2.xpose.msra.mxu0 0.0
    %933 = vmatprep.subr.mxu0 0.0
    %934 = vmatpush2.xpose.msra.mxu0 0.0
    %935 = vmatprep.subr.mxu0 0.0
    %936 = vmatpush2.xpose.msra.mxu0 0.0
    %937 = vmatprep.subr.mxu0 0.0
    %938 = vmatpush2.xpose.msra.mxu0 0.0
    %939 = vmatprep.subr.mxu0 0.0
    %940 = vmatpush2.xpose.msra.mxu0 0.0
    %941 = vmatprep.subr.mxu0 0.0
    %942 = vmatpush2.xpose.msra.mxu0 0.0
    %943 = vmatprep.subr.mxu0 0.0
    %944 = vmatpush2.xpose.msra.mxu0 0.0
    %945 = vmatprep.subr.mxu0 0.0
    %946 = vmatpush2.xpose.msra.mxu0 0.0
    %947 = vmatprep.subr.mxu0 0.0
    %948 = vmatpush2.xpose.msra.mxu0 0.0
    %949 = vmatprep.subr.mxu0 0.0
    %950 = vmatpush2.xpose.msra.mxu0 0.0
    %951 = vmatprep.subr.mxu0 0.0
    %952 = vmatpush2.xpose.msra.mxu0 0.0
    %953 = vmatprep.mubr.f32.mxu0 0.0
    %954 = vmatmul.mubr.f32.gmra.mxu0 %v885
    %v955 = vpop.f32.mrf.mxu0
    %v956 = vadd.f32 0.0, %v955
    %v957 = vpop.f32.mrf.mxu0
    %958 = vdwg.mxu0
    %959 = vrot.lane.b32.xlu0 %v219, 112
    %v960 = vpop.permute.xlu0 %959
    %961 = vrot.lane.b32.xlu0 %v219, 80
    %v962 = vpop.permute.xlu0 %961
    %v963 = vsel %vm225, %v960, 0
    %v965 = vsel %vm225, %v962, 0
    %967 = vmatprep.subr.mxu0 0.0
    %968 = vmatpush1.xpose.msra.mxu0 0.0
    %969 = vmatprep.subr.mxu0 0.0
    %970 = vmatpush1.xpose.msra.mxu0 0.0
    %971 = vmatprep.subr.mxu0 0.0
    %972 = vmatpush1.xpose.msra.mxu0 0.0
    %973 = vmatprep.subr.mxu0 0.0
    %974 = vmatpush1.xpose.msra.mxu0 0.0
    %975 = vmatprep.subr.mxu0 0.0
    %976 = vmatpush1.xpose.msra.mxu0 0.0
    %977 = vmatprep.subr.mxu0 0.0
    %978 = vmatpush1.xpose.msra.mxu0 0.0
    %979 = vmatprep.subr.mxu0 0.0
    %980 = vmatpush1.xpose.msra.mxu0 0.0
    %981 = vmatprep.subr.mxu0 0.0
    %982 = vmatpush1.xpose.msra.mxu0 0.0
    %983 = vmatprep.subr.mxu0 0.0
    %984 = vmatpush1.xpose.msra.mxu0 0.0
    %985 = vmatprep.subr.mxu0 0.0
    %986 = vmatpush1.xpose.msra.mxu0 0.0
    %987 = vmatprep.subr.mxu0 0.0
    %988 = vmatpush1.xpose.msra.mxu0 0.0
    %989 = vmatprep.subr.mxu0 0.0
    %990 = vmatpush1.xpose.msra.mxu0 0.0
    %991 = vmatprep.subr.mxu0 0.0
    %992 = vmatpush1.xpose.msra.mxu0 0.0
    %993 = vmatprep.subr.mxu0 0.0
    %994 = vmatpush1.xpose.msra.mxu0 0.0
    %995 = vmatprep.subr.mxu0 0.0
    %996 = vmatpush1.xpose.msra.mxu0 0.0
    %997 = vmatprep.subr.mxu0 0.0
    %998 = vmatpush1.xpose.msra.mxu0 %v965
    %999 = vmatprep.subr.mxu0 0.0
    %1000 = vmatpush2.xpose.msra.mxu0 0.0
    %1001 = vmatprep.subr.mxu0 0.0
    %1002 = vmatpush2.xpose.msra.mxu0 0.0
    %1003 = vmatprep.subr.mxu0 0.0
    %1004 = vmatpush2.xpose.msra.mxu0 0.0
    %1005 = vmatprep.subr.mxu0 0.0
    %1006 = vmatpush2.xpose.msra.mxu0 0.0
    %1007 = vmatprep.subr.mxu0 0.0
    %1008 = vmatpush2.xpose.msra.mxu0 0.0
    %1009 = vmatprep.subr.mxu0 0.0
    %1010 = vmatpush2.xpose.msra.mxu0 0.0
    %1011 = vmatprep.subr.mxu0 0.0
    %1012 = vmatpush2.xpose.msra.mxu0 0.0
    %1013 = vmatprep.subr.mxu0 0.0
    %1014 = vmatpush2.xpose.msra.mxu0 0.0
    %1015 = vmatprep.subr.mxu0 0.0
    %1016 = vmatpush2.xpose.msra.mxu0 0.0
    %1017 = vmatprep.subr.mxu0 0.0
    %1018 = vmatpush2.xpose.msra.mxu0 0.0
    %1019 = vmatprep.subr.mxu0 0.0
    %1020 = vmatpush2.xpose.msra.mxu0 0.0
    %1021 = vmatprep.subr.mxu0 0.0
    %1022 = vmatpush2.xpose.msra.mxu0 0.0
    %1023 = vmatprep.subr.mxu0 0.0
    %1024 = vmatpush2.xpose.msra.mxu0 0.0
    %1025 = vmatprep.subr.mxu0 0.0
    %1026 = vmatpush2.xpose.msra.mxu0 0.0
    %1027 = vmatprep.subr.mxu0 0.0
    %1028 = vmatpush2.xpose.msra.mxu0 0.0
    %1029 = vmatprep.subr.mxu0 0.0
    %1030 = vmatpush2.xpose.msra.mxu0 0.0
    %1031 = vmatprep.mubr.f32.mxu0 0.0
    %1032 = vmatmul.mubr.f32.gmra.mxu0 %v963
    %v1033 = vpop.f32.mrf.mxu0
    %v1034 = vadd.f32 0.0, %v1033
    %v1035 = vpop.f32.mrf.mxu0
    %1036 = vdwg.mxu0
    %v1037 = vsel %vm225, %v956, -inf
    %1038 = vmax.xlane.f32.xlu0 %v1037
    %v1039 = vpop.xlane.xlu0 %1038
    %v1040 = vsel %vm225, %v1034, -inf
    %1041 = vmax.xlane.f32.xlu0 %v1040
    %v1042 = vpop.xlane.xlu0 %1041
    %v1043 = vsub.f32 %v956, %v1039
    %v1044 = vsub.f32 %v1034, %v1042
    %v1045 = vmul.f32 %v1043, 1.442695
    %v1046 = vpow.pop %v1045
    %v1047 = vmul.f32 %v1044, 1.442695
    %v1048 = vpow.pop %v1047
    %v1049 = vsel %vm225, %v1046, 0.0
    %1050 = vadd.xlane.f32.xlu0 %v1049
    %v1051 = vpop.xlane.xlu0 %1050
    %v1052 = vsel %vm225, %v1048, 0.0
    %1053 = vadd.xlane.f32.xlu0 %v1052
    %v1054 = vpop.xlane.xlu0 %1053
    %v1055 = vrcp.pop %v1051
    %v1056 = vmul.f32 %v1046, %v1055
    %v1057 = vrcp.pop %v1054
    %v1058 = vmul.f32 %v1048, %v1057
    %1059 = vrot.lane.b32.xlu0 %v214, 48
    %v1060 = vpop.permute.xlu0 %1059
    %v1063 = vsel %vm225, %v1056, 0
    %1065 = vmatprep.subr.mxu0 0.0
    %1066 = vmatpush1.msra.mxu0 0.0
    %1067 = vmatprep.subr.mxu0 0.0
    %1068 = vmatpush1.msra.mxu0 0.0
    %1069 = vmatprep.subr.mxu0 0.0
    %1070 = vmatpush1.msra.mxu0 0.0
    %1071 = vmatprep.subr.mxu0 0.0
    %1072 = vmatpush1.msra.mxu0 0.0
    %1073 = vmatprep.subr.mxu0 0.0
    %1074 = vmatpush1.msra.mxu0 0.0
    %1075 = vmatprep.subr.mxu0 0.0
    %1076 = vmatpush1.msra.mxu0 0.0
    %1077 = vmatprep.subr.mxu0 0.0
    %1078 = vmatpush1.msra.mxu0 0.0
    %1079 = vmatprep.subr.mxu0 0.0
    %1080 = vmatpush1.msra.mxu0 0.0
    %1081 = vmatprep.subr.mxu0 0.0
    %1082 = vmatpush1.msra.mxu0 0.0
    %1083 = vmatprep.subr.mxu0 0.0
    %1084 = vmatpush1.msra.mxu0 0.0
    %1085 = vmatprep.subr.mxu0 0.0
    %1086 = vmatpush1.msra.mxu0 0.0
    %1087 = vmatprep.subr.mxu0 0.0
    %1088 = vmatpush1.msra.mxu0 0.0
    %1089 = vmatprep.subr.mxu0 0.0
    %1090 = vmatpush1.msra.mxu0 0.0
    %1091 = vmatprep.subr.mxu0 0.0
    %1092 = vmatpush1.msra.mxu0 0.0
    %1093 = vmatprep.subr.mxu0 0.0
    %1094 = vmatpush1.msra.mxu0 0.0
    %1095 = vmatprep.subr.mxu0 0.0
    %1096 = vmatpush1.msra.mxu0 %v1060
    %1097 = vmatprep.subr.mxu0 0.0
    %1098 = vmatpush2.msra.mxu0 0.0
    %1099 = vmatprep.subr.mxu0 0.0
    %1100 = vmatpush2.msra.mxu0 0.0
    %1101 = vmatprep.subr.mxu0 0.0
    %1102 = vmatpush2.msra.mxu0 0.0
    %1103 = vmatprep.subr.mxu0 0.0
    %1104 = vmatpush2.msra.mxu0 0.0
    %1105 = vmatprep.subr.mxu0 0.0
    %1106 = vmatpush2.msra.mxu0 0.0
    %1107 = vmatprep.subr.mxu0 0.0
    %1108 = vmatpush2.msra.mxu0 0.0
    %1109 = vmatprep.subr.mxu0 0.0
    %1110 = vmatpush2.msra.mxu0 0.0
    %1111 = vmatprep.subr.mxu0 0.0
    %1112 = vmatpush2.msra.mxu0 0.0
    %1113 = vmatprep.subr.mxu0 0.0
    %1114 = vmatpush2.msra.mxu0 0.0
    %1115 = vmatprep.subr.mxu0 0.0
    %1116 = vmatpush2.msra.mxu0 0.0
    %1117 = vmatprep.subr.mxu0 0.0
    %1118 = vmatpush2.msra.mxu0 0.0
    %1119 = vmatprep.subr.mxu0 0.0
    %1120 = vmatpush2.msra.mxu0 0.0
    %1121 = vmatprep.subr.mxu0 0.0
    %1122 = vmatpush2.msra.mxu0 0.0
    %1123 = vmatprep.subr.mxu0 0.0
    %1124 = vmatpush2.msra.mxu0 0.0
    %1125 = vmatprep.subr.mxu0 0.0
    %1126 = vmatpush2.msra.mxu0 0.0
    %1127 = vmatprep.subr.mxu0 0.0
    %1128 = vmatpush2.msra.mxu0 0.0
    %1129 = vmatprep.mubr.f32.mxu0 0.0
    %1130 = vmatmul.mubr.f32.gmra.mxu0 %v1063
    %v1131 = vpop.f32.mrf.mxu0
    %v1132 = vadd.f32 0.0, %v1131
    %v1133 = vpop.f32.mrf.mxu0
    %1134 = vdwg.mxu0
    %1135 = vrot.lane.b32.xlu0 %v219, 48
    %v1136 = vpop.permute.xlu0 %1135
    %v1139 = vsel %vm225, %v1058, 0
    %1141 = vmatprep.subr.mxu0 0.0
    %1142 = vmatpush1.msra.mxu0 0.0
    %1143 = vmatprep.subr.mxu0 0.0
    %1144 = vmatpush1.msra.mxu0 0.0
    %1145 = vmatprep.subr.mxu0 0.0
    %1146 = vmatpush1.msra.mxu0 0.0
    %1147 = vmatprep.subr.mxu0 0.0
    %1148 = vmatpush1.msra.mxu0 0.0
    %1149 = vmatprep.subr.mxu0 0.0
    %1150 = vmatpush1.msra.mxu0 0.0
    %1151 = vmatprep.subr.mxu0 0.0
    %1152 = vmatpush1.msra.mxu0 0.0
    %1153 = vmatprep.subr.mxu0 0.0
    %1154 = vmatpush1.msra.mxu0 0.0
    %1155 = vmatprep.subr.mxu0 0.0
    %1156 = vmatpush1.msra.mxu0 0.0
    %1157 = vmatprep.subr.mxu0 0.0
    %1158 = vmatpush1.msra.mxu0 0.0
    %1159 = vmatprep.subr.mxu0 0.0
    %1160 = vmatpush1.msra.mxu0 0.0
    %1161 = vmatprep.subr.mxu0 0.0
    %1162 = vmatpush1.msra.mxu0 0.0
    %1163 = vmatprep.subr.mxu0 0.0
    %1164 = vmatpush1.msra.mxu0 0.0
    %1165 = vmatprep.subr.mxu0 0.0
    %1166 = vmatpush1.msra.mxu0 0.0
    %1167 = vmatprep.subr.mxu0 0.0
    %1168 = vmatpush1.msra.mxu0 0.0
    %1169 = vmatprep.subr.mxu0 0.0
    %1170 = vmatpush1.msra.mxu0 0.0
    %1171 = vmatprep.subr.mxu0 0.0
    %1172 = vmatpush1.msra.mxu0 %v1136
    %1173 = vmatprep.subr.mxu0 0.0
    %1174 = vmatpush2.msra.mxu0 0.0
    %1175 = vmatprep.subr.mxu0 0.0
    %1176 = vmatpush2.msra.mxu0 0.0
    %1177 = vmatprep.subr.mxu0 0.0
    %1178 = vmatpush2.msra.mxu0 0.0
    %1179 = vmatprep.subr.mxu0 0.0
    %1180 = vmatpush2.msra.mxu0 0.0
    %1181 = vmatprep.subr.mxu0 0.0
    %1182 = vmatpush2.msra.mxu0 0.0
    %1183 = vmatprep.subr.mxu0 0.0
    %1184 = vmatpush2.msra.mxu0 0.0
    %1185 = vmatprep.subr.mxu0 0.0
    %1186 = vmatpush2.msra.mxu0 0.0
    %1187 = vmatprep.subr.mxu0 0.0
    %1188 = vmatpush2.msra.mxu0 0.0
    %1189 = vmatprep.subr.mxu0 0.0
    %1190 = vmatpush2.msra.mxu0 0.0
    %1191 = vmatprep.subr.mxu0 0.0
    %1192 = vmatpush2.msra.mxu0 0.0
    %1193 = vmatprep.subr.mxu0 0.0
    %1194 = vmatpush2.msra.mxu0 0.0
    %1195 = vmatprep.subr.mxu0 0.0
    %1196 = vmatpush2.msra.mxu0 0.0
    %1197 = vmatprep.subr.mxu0 0.0
    %1198 = vmatpush2.msra.mxu0 0.0
    %1199 = vmatprep.subr.mxu0 0.0
    %1200 = vmatpush2.msra.mxu0 0.0
    %1201 = vmatprep.subr.mxu0 0.0
    %1202 = vmatpush2.msra.mxu0 0.0
    %1203 = vmatprep.subr.mxu0 0.0
    %1204 = vmatpush2.msra.mxu0 0.0
    %1205 = vmatprep.mubr.f32.mxu0 0.0
    %1206 = vmatmul.mubr.f32.gmra.mxu0 %v1139
    %v1207 = vpop.f32.mrf.mxu0
    %v1208 = vadd.f32 0.0, %v1207
    %v1209 = vpop.f32.mrf.mxu0
    %1210 = vdwg.mxu0
    %1211 = vrot.lane.b32.xlu0 %v214, 104
    %v1212 = vpop.permute.xlu0 %1211
    %1213 = vrot.lane.b32.xlu0 %v214, 72
    %v1214 = vpop.permute.xlu0 %1213
    %v1215 = vsel %vm225, %v1212, 0
    %v1217 = vsel %vm225, %v1214, 0
    %1219 = vmatprep.subr.mxu0 0.0
    %1220 = vmatpush1.xpose.msra.mxu0 0.0
    %1221 = vmatprep.subr.mxu0 0.0
    %1222 = vmatpush1.xpose.msra.mxu0 0.0
    %1223 = vmatprep.subr.mxu0 0.0
    %1224 = vmatpush1.xpose.msra.mxu0 0.0
    %1225 = vmatprep.subr.mxu0 0.0
    %1226 = vmatpush1.xpose.msra.mxu0 0.0
    %1227 = vmatprep.subr.mxu0 0.0
    %1228 = vmatpush1.xpose.msra.mxu0 0.0
    %1229 = vmatprep.subr.mxu0 0.0
    %1230 = vmatpush1.xpose.msra.mxu0 0.0
    %1231 = vmatprep.subr.mxu0 0.0
    %1232 = vmatpush1.xpose.msra.mxu0 0.0
    %1233 = vmatprep.subr.mxu0 0.0
    %1234 = vmatpush1.xpose.msra.mxu0 0.0
    %1235 = vmatprep.subr.mxu0 0.0
    %1236 = vmatpush1.xpose.msra.mxu0 0.0
    %1237 = vmatprep.subr.mxu0 0.0
    %1238 = vmatpush1.xpose.msra.mxu0 0.0
    %1239 = vmatprep.subr.mxu0 0.0
    %1240 = vmatpush1.xpose.msra.mxu0 0.0
    %1241 = vmatprep.subr.mxu0 0.0
    %1242 = vmatpush1.xpose.msra.mxu0 0.0
    %1243 = vmatprep.subr.mxu0 0.0
    %1244 = vmatpush1.xpose.msra.mxu0 0.0
    %1245 = vmatprep.subr.mxu0 0.0
    %1246 = vmatpush1.xpose.msra.mxu0 0.0
    %1247 = vmatprep.subr.mxu0 0.0
    %1248 = vmatpush1.xpose.msra.mxu0 0.0
    %1249 = vmatprep.subr.mxu0 0.0
    %1250 = vmatpush1.xpose.msra.mxu0 %v1217
    %1251 = vmatprep.subr.mxu0 0.0
    %1252 = vmatpush2.xpose.msra.mxu0 0.0
    %1253 = vmatprep.subr.mxu0 0.0
    %1254 = vmatpush2.xpose.msra.mxu0 0.0
    %1255 = vmatprep.subr.mxu0 0.0
    %1256 = vmatpush2.xpose.msra.mxu0 0.0
    %1257 = vmatprep.subr.mxu0 0.0
    %1258 = vmatpush2.xpose.msra.mxu0 0.0
    %1259 = vmatprep.subr.mxu0 0.0
    %1260 = vmatpush2.xpose.msra.mxu0 0.0
    %1261 = vmatprep.subr.mxu0 0.0
    %1262 = vmatpush2.xpose.msra.mxu0 0.0
    %1263 = vmatprep.subr.mxu0 0.0
    %1264 = vmatpush2.xpose.msra.mxu0 0.0
    %1265 = vmatprep.subr.mxu0 0.0
    %1266 = vmatpush2.xpose.msra.mxu0 0.0
    %1267 = vmatprep.subr.mxu0 0.0
    %1268 = vmatpush2.xpose.msra.mxu0 0.0
    %1269 = vmatprep.subr.mxu0 0.0
    %1270 = vmatpush2.xpose.msra.mxu0 0.0
    %1271 = vmatprep.subr.mxu0 0.0
    %1272 = vmatpush2.xpose.msra.mxu0 0.0
    %1273 = vmatprep.subr.mxu0 0.0
    %1274 = vmatpush2.xpose.msra.mxu0 0.0
    %1275 = vmatprep.subr.mxu0 0.0
    %1276 = vmatpush2.xpose.msra.mxu0 0.0
    %1277 = vmatprep.subr.mxu0 0.0
    %1278 = vmatpush2.xpose.msra.mxu0 0.0
    %1279 = vmatprep.subr.mxu0 0.0
    %1280 = vmatpush2.xpose.msra.mxu0 0.0
    %1281 = vmatprep.subr.mxu0 0.0
    %1282 = vmatpush2.xpose.msra.mxu0 0.0
    %1283 = vmatprep.mubr.f32.mxu0 0.0
    %1284 = vmatmul.mubr.f32.gmra.mxu0 %v1215
    %v1285 = vpop.f32.mrf.mxu0
    %v1286 = vadd.f32 0.0, %v1285
    %v1287 = vpop.f32.mrf.mxu0
    %1288 = vdwg.mxu0
    %1289 = vrot.lane.b32.xlu0 %v219, 104
    %v1290 = vpop.permute.xlu0 %1289
    %1291 = vrot.lane.b32.xlu0 %v219, 72
    %v1292 = vpop.permute.xlu0 %1291
    %v1293 = vsel %vm225, %v1290, 0
    %v1295 = vsel %vm225, %v1292, 0
    %1297 = vmatprep.subr.mxu0 0.0
    %1298 = vmatpush1.xpose.msra.mxu0 0.0
    %1299 = vmatprep.subr.mxu0 0.0
    %1300 = vmatpush1.xpose.msra.mxu0 0.0
    %1301 = vmatprep.subr.mxu0 0.0
    %1302 = vmatpush1.xpose.msra.mxu0 0.0
    %1303 = vmatprep.subr.mxu0 0.0
    %1304 = vmatpush1.xpose.msra.mxu0 0.0
    %1305 = vmatprep.subr.mxu0 0.0
    %1306 = vmatpush1.xpose.msra.mxu0 0.0
    %1307 = vmatprep.subr.mxu0 0.0
    %1308 = vmatpush1.xpose.msra.mxu0 0.0
    %1309 = vmatprep.subr.mxu0 0.0
    %1310 = vmatpush1.xpose.msra.mxu0 0.0
    %1311 = vmatprep.subr.mxu0 0.0
    %1312 = vmatpush1.xpose.msra.mxu0 0.0
    %1313 = vmatprep.subr.mxu0 0.0
    %1314 = vmatpush1.xpose.msra.mxu0 0.0
    %1315 = vmatprep.subr.mxu0 0.0
    %1316 = vmatpush1.xpose.msra.mxu0 0.0
    %1317 = vmatprep.subr.mxu0 0.0
    %1318 = vmatpush1.xpose.msra.mxu0 0.0
    %1319 = vmatprep.subr.mxu0 0.0
    %1320 = vmatpush1.xpose.msra.mxu0 0.0
    %1321 = vmatprep.subr.mxu0 0.0
    %1322 = vmatpush1.xpose.msra.mxu0 0.0
    %1323 = vmatprep.subr.mxu0 0.0
    %1324 = vmatpush1.xpose.msra.mxu0 0.0
    %1325 = vmatprep.subr.mxu0 0.0
    %1326 = vmatpush1.xpose.msra.mxu0 0.0
    %1327 = vmatprep.subr.mxu0 0.0
    %1328 = vmatpush1.xpose.msra.mxu0 %v1295
    %1329 = vmatprep.subr.mxu0 0.0
    %1330 = vmatpush2.xpose.msra.mxu0 0.0
    %1331 = vmatprep.subr.mxu0 0.0
    %1332 = vmatpush2.xpose.msra.mxu0 0.0
    %1333 = vmatprep.subr.mxu0 0.0
    %1334 = vmatpush2.xpose.msra.mxu0 0.0
    %1335 = vmatprep.subr.mxu0 0.0
    %1336 = vmatpush2.xpose.msra.mxu0 0.0
    %1337 = vmatprep.subr.mxu0 0.0
    %1338 = vmatpush2.xpose.msra.mxu0 0.0
    %1339 = vmatprep.subr.mxu0 0.0
    %1340 = vmatpush2.xpose.msra.mxu0 0.0
    %1341 = vmatprep.subr.mxu0 0.0
    %1342 = vmatpush2.xpose.msra.mxu0 0.0
    %1343 = vmatprep.subr.mxu0 0.0
    %1344 = vmatpush2.xpose.msra.mxu0 0.0
    %1345 = vmatprep.subr.mxu0 0.0
    %1346 = vmatpush2.xpose.msra.mxu0 0.0
    %1347 = vmatprep.subr.mxu0 0.0
    %1348 = vmatpush2.xpose.msra.mxu0 0.0
    %1349 = vmatprep.subr.mxu0 0.0
    %1350 = vmatpush2.xpose.msra.mxu0 0.0
    %1351 = vmatprep.subr.mxu0 0.0
    %1352 = vmatpush2.xpose.msra.mxu0 0.0
    %1353 = vmatprep.subr.mxu0 0.0
    %1354 = vmatpush2.xpose.msra.mxu0 0.0
    %1355 = vmatprep.subr.mxu0 0.0
    %1356 = vmatpush2.xpose.msra.mxu0 0.0
    %1357 = vmatprep.subr.mxu0 0.0
    %1358 = vmatpush2.xpose.msra.mxu0 0.0
    %1359 = vmatprep.subr.mxu0 0.0
    %1360 = vmatpush2.xpose.msra.mxu0 0.0
    %1361 = vmatprep.mubr.f32.mxu0 0.0
    %1362 = vmatmul.mubr.f32.gmra.mxu0 %v1293
    %v1363 = vpop.f32.mrf.mxu0
    %v1364 = vadd.f32 0.0, %v1363
    %v1365 = vpop.f32.mrf.mxu0
    %1366 = vdwg.mxu0
    %v1367 = vsel %vm225, %v1286, -inf
    %1368 = vmax.xlane.f32.xlu0 %v1367
    %v1369 = vpop.xlane.xlu0 %1368
    %v1370 = vsel %vm225, %v1364, -inf
    %1371 = vmax.xlane.f32.xlu0 %v1370
    %v1372 = vpop.xlane.xlu0 %1371
    %v1373 = vsub.f32 %v1286, %v1369
    %v1374 = vsub.f32 %v1364, %v1372
    %v1375 = vmul.f32 %v1373, 1.442695
    %v1376 = vpow.pop %v1375
    %v1377 = vmul.f32 %v1374, 1.442695
    %v1378 = vpow.pop %v1377
    %v1379 = vsel %vm225, %v1376, 0.0
    %1380 = vadd.xlane.f32.xlu0 %v1379
    %v1381 = vpop.xlane.xlu0 %1380
    %v1382 = vsel %vm225, %v1378, 0.0
    %1383 = vadd.xlane.f32.xlu0 %v1382
    %v1384 = vpop.xlane.xlu0 %1383
    %v1385 = vrcp.pop %v1381
    %v1386 = vmul.f32 %v1376, %v1385
    %v1387 = vrcp.pop %v1384
    %v1388 = vmul.f32 %v1378, %v1387
    %1389 = vrot.lane.b32.xlu0 %v214, 40
    %v1390 = vpop.permute.xlu0 %1389
    %v1393 = vsel %vm225, %v1386, 0
    %1395 = vmatprep.subr.mxu0 0.0
    %1396 = vmatpush1.msra.mxu0 0.0
    %1397 = vmatprep.subr.mxu0 0.0
    %1398 = vmatpush1.msra.mxu0 0.0
    %1399 = vmatprep.subr.mxu0 0.0
    %1400 = vmatpush1.msra.mxu0 0.0
    %1401 = vmatprep.subr.mxu0 0.0
    %1402 = vmatpush1.msra.mxu0 0.0
    %1403 = vmatprep.subr.mxu0 0.0
    %1404 = vmatpush1.msra.mxu0 0.0
    %1405 = vmatprep.subr.mxu0 0.0
    %1406 = vmatpush1.msra.mxu0 0.0
    %1407 = vmatprep.subr.mxu0 0.0
    %1408 = vmatpush1.msra.mxu0 0.0
    %1409 = vmatprep.subr.mxu0 0.0
    %1410 = vmatpush1.msra.mxu0 0.0
    %1411 = vmatprep.subr.mxu0 0.0
    %1412 = vmatpush1.msra.mxu0 0.0
    %1413 = vmatprep.subr.mxu0 0.0
    %1414 = vmatpush1.msra.mxu0 0.0
    %1415 = vmatprep.subr.mxu0 0.0
    %1416 = vmatpush1.msra.mxu0 0.0
    %1417 = vmatprep.subr.mxu0 0.0
    %1418 = vmatpush1.msra.mxu0 0.0
    %1419 = vmatprep.subr.mxu0 0.0
    %1420 = vmatpush1.msra.mxu0 0.0
    %1421 = vmatprep.subr.mxu0 0.0
    %1422 = vmatpush1.msra.mxu0 0.0
    %1423 = vmatprep.subr.mxu0 0.0
    %1424 = vmatpush1.msra.mxu0 0.0
    %1425 = vmatprep.subr.mxu0 0.0
    %1426 = vmatpush1.msra.mxu0 %v1390
    %1427 = vmatprep.subr.mxu0 0.0
    %1428 = vmatpush2.msra.mxu0 0.0
    %1429 = vmatprep.subr.mxu0 0.0
    %1430 = vmatpush2.msra.mxu0 0.0
    %1431 = vmatprep.subr.mxu0 0.0
    %1432 = vmatpush2.msra.mxu0 0.0
    %1433 = vmatprep.subr.mxu0 0.0
    %1434 = vmatpush2.msra.mxu0 0.0
    %1435 = vmatprep.subr.mxu0 0.0
    %1436 = vmatpush2.msra.mxu0 0.0
    %1437 = vmatprep.subr.mxu0 0.0
    %1438 = vmatpush2.msra.mxu0 0.0
    %1439 = vmatprep.subr.mxu0 0.0
    %1440 = vmatpush2.msra.mxu0 0.0
    %1441 = vmatprep.subr.mxu0 0.0
    %1442 = vmatpush2.msra.mxu0 0.0
    %1443 = vmatprep.subr.mxu0 0.0
    %1444 = vmatpush2.msra.mxu0 0.0
    %1445 = vmatprep.subr.mxu0 0.0
    %1446 = vmatpush2.msra.mxu0 0.0
    %1447 = vmatprep.subr.mxu0 0.0
    %1448 = vmatpush2.msra.mxu0 0.0
    %1449 = vmatprep.subr.mxu0 0.0
    %1450 = vmatpush2.msra.mxu0 0.0
    %1451 = vmatprep.subr.mxu0 0.0
    %1452 = vmatpush2.msra.mxu0 0.0
    %1453 = vmatprep.subr.mxu0 0.0
    %1454 = vmatpush2.msra.mxu0 0.0
    %1455 = vmatprep.subr.mxu0 0.0
    %1456 = vmatpush2.msra.mxu0 0.0
    %1457 = vmatprep.subr.mxu0 0.0
    %1458 = vmatpush2.msra.mxu0 0.0
    %1459 = vmatprep.mubr.f32.mxu0 0.0
    %1460 = vmatmul.mubr.f32.gmra.mxu0 %v1393
    %v1461 = vpop.f32.mrf.mxu0
    %v1462 = vadd.f32 0.0, %v1461
    %v1463 = vpop.f32.mrf.mxu0
    %1464 = vdwg.mxu0
    %1465 = vrot.lane.b32.xlu0 %v219, 40
    %v1466 = vpop.permute.xlu0 %1465
    %v1469 = vsel %vm225, %v1388, 0
    %1471 = vmatprep.subr.mxu0 0.0
    %1472 = vmatpush1.msra.mxu0 0.0
    %1473 = vmatprep.subr.mxu0 0.0
    %1474 = vmatpush1.msra.mxu0 0.0
    %1475 = vmatprep.subr.mxu0 0.0
    %1476 = vmatpush1.msra.mxu0 0.0
    %1477 = vmatprep.subr.mxu0 0.0
    %1478 = vmatpush1.msra.mxu0 0.0
    %1479 = vmatprep.subr.mxu0 0.0
    %1480 = vmatpush1.msra.mxu0 0.0
    %1481 = vmatprep.subr.mxu0 0.0
    %1482 = vmatpush1.msra.mxu0 0.0
    %1483 = vmatprep.subr.mxu0 0.0
    %1484 = vmatpush1.msra.mxu0 0.0
    %1485 = vmatprep.subr.mxu0 0.0
    %1486 = vmatpush1.msra.mxu0 0.0
    %1487 = vmatprep.subr.mxu0 0.0
    %1488 = vmatpush1.msra.mxu0 0.0
    %1489 = vmatprep.subr.mxu0 0.0
    %1490 = vmatpush1.msra.mxu0 0.0
    %1491 = vmatprep.subr.mxu0 0.0
    %1492 = vmatpush1.msra.mxu0 0.0
    %1493 = vmatprep.subr.mxu0 0.0
    %1494 = vmatpush1.msra.mxu0 0.0
    %1495 = vmatprep.subr.mxu0 0.0
    %1496 = vmatpush1.msra.mxu0 0.0
    %1497 = vmatprep.subr.mxu0 0.0
    %1498 = vmatpush1.msra.mxu0 0.0
    %1499 = vmatprep.subr.mxu0 0.0
    %1500 = vmatpush1.msra.mxu0 0.0
    %1501 = vmatprep.subr.mxu0 0.0
    %1502 = vmatpush1.msra.mxu0 %v1466
    %1503 = vmatprep.subr.mxu0 0.0
    %1504 = vmatpush2.msra.mxu0 0.0
    %1505 = vmatprep.subr.mxu0 0.0
    %1506 = vmatpush2.msra.mxu0 0.0
    %1507 = vmatprep.subr.mxu0 0.0
    %1508 = vmatpush2.msra.mxu0 0.0
    %1509 = vmatprep.subr.mxu0 0.0
    %1510 = vmatpush2.msra.mxu0 0.0
    %1511 = vmatprep.subr.mxu0 0.0
    %1512 = vmatpush2.msra.mxu0 0.0
    %1513 = vmatprep.subr.mxu0 0.0
    %1514 = vmatpush2.msra.mxu0 0.0
    %1515 = vmatprep.subr.mxu0 0.0
    %1516 = vmatpush2.msra.mxu0 0.0
    %1517 = vmatprep.subr.mxu0 0.0
    %1518 = vmatpush2.msra.mxu0 0.0
    %1519 = vmatprep.subr.mxu0 0.0
    %1520 = vmatpush2.msra.mxu0 0.0
    %1521 = vmatprep.subr.mxu0 0.0
    %1522 = vmatpush2.msra.mxu0 0.0
    %1523 = vmatprep.subr.mxu0 0.0
    %1524 = vmatpush2.msra.mxu0 0.0
    %1525 = vmatprep.subr.mxu0 0.0
    %1526 = vmatpush2.msra.mxu0 0.0
    %1527 = vmatprep.subr.mxu0 0.0
    %1528 = vmatpush2.msra.mxu0 0.0
    %1529 = vmatprep.subr.mxu0 0.0
    %1530 = vmatpush2.msra.mxu0 0.0
    %1531 = vmatprep.subr.mxu0 0.0
    %1532 = vmatpush2.msra.mxu0 0.0
    %1533 = vmatprep.subr.mxu0 0.0
    %1534 = vmatpush2.msra.mxu0 0.0
    %1535 = vmatprep.mubr.f32.mxu0 0.0
    %1536 = vmatmul.mubr.f32.gmra.mxu0 %v1469
    %v1537 = vpop.f32.mrf.mxu0
    %v1538 = vadd.f32 0.0, %v1537
    %v1539 = vpop.f32.mrf.mxu0
    %1540 = vdwg.mxu0
    %1543 = vrot.lane.b32.xlu0 %v802, 8
    %v1544 = vpop.permute.xlu0 %1543
    %1545 = vrot.lane.b32.xlu0 %v878, 8
    %v1546 = vpop.permute.xlu0 %1545
    %1551 = vrot.lane.b32.xlu0 %v1132, 16
    %v1552 = vpop.permute.xlu0 %1551
    %1553 = vrot.lane.b32.xlu0 %v1208, 16
    %v1554 = vpop.permute.xlu0 %1553
    %1559 = vrot.lane.b32.xlu0 %v1462, 24
    %v1560 = vpop.permute.xlu0 %1559
    %1561 = vrot.lane.b32.xlu0 %v1538, 24
    %v1562 = vpop.permute.xlu0 %1561
    %v1565 = vsel %vm225, %v472, %v1544
    %v1566 = vsel %vm225, %v548, %v1546
    %v1567 = vsel %vm49, %v1565, %v1552
    %v1568 = vsel %vm49, %v1566, %v1554
    %vm1569 = vcmask 195584
    %v1570 = vsel %vm1569, %v1567, %v1560
    %v1571 = vsel %vm1569, %v1568, %v1562
    %v1572 = vld [vmem:[#allocation5 + $0x40] sm:$0xff]
    %v1573 = vld [vmem:[#allocation5 + $0x48] sm:$0xff]
    %v1574 = vld [vmem:[#allocation5 + $0x50] sm:$0xff]
    %v1575 = vld [vmem:[#allocation5 + $0x58] sm:$0xff]
    %v1576 = vld [vmem:[#allocation5 + $0x60] sm:$0x1]
    %v1577 = vlaneseq
    %v1578 = vshrl.u32 %v1577, 7
    %v1579 = vsub.s32 0, %v1578
    %v1580 = vrot.slane %v1576, %v1579
    %v1582 = vsel %vm140, %v1570, 0
    %v1585 = vsel %vm140, %v1571, 0
    %1587 = vmatprep.subr.mxu0 0.0
    %1588 = vmatpush1.msra.mxu0 0.0
    %1589 = vmatprep.subr.mxu0 0.0
    %1590 = vmatpush1.msra.mxu0 0.0
    %1591 = vmatprep.subr.mxu0 0.0
    %1592 = vmatpush1.msra.mxu0 0.0
    %1593 = vmatprep.subr.mxu0 0.0
    %1594 = vmatpush1.msra.mxu0 0.0
    %1595 = vmatprep.subr.mxu0 0.0
    %1596 = vmatpush1.msra.mxu0 0.0
    %1597 = vmatprep.subr.mxu0 0.0
    %1598 = vmatpush1.msra.mxu0 0.0
    %1599 = vmatprep.subr.mxu0 0.0
    %1600 = vmatpush1.msra.mxu0 0.0
    %1601 = vmatprep.subr.mxu0 0.0
    %1602 = vmatpush1.msra.mxu0 0.0
    %1603 = vmatprep.subr.mxu0 0.0
    %1604 = vmatpush1.msra.mxu0 0.0
    %1605 = vmatprep.subr.mxu0 0.0
    %1606 = vmatpush1.msra.mxu0 0.0
    %1607 = vmatprep.subr.mxu0 0.0
    %1608 = vmatpush1.msra.mxu0 0.0
    %1609 = vmatprep.subr.mxu0 0.0
    %1610 = vmatpush1.msra.mxu0 0.0
    %1611 = vmatprep.subr.mxu0 0.0
    %1612 = vmatpush1.msra.mxu0 %v1575
    %1613 = vmatprep.subr.mxu0 0.0
    %1614 = vmatpush1.msra.mxu0 %v1574
    %1615 = vmatprep.subr.mxu0 0.0
    %1616 = vmatpush1.msra.mxu0 %v1573
    %1617 = vmatprep.subr.mxu0 0.0
    %1618 = vmatpush1.msra.mxu0 %v1572
    %1619 = vmatprep.subr.mxu0 0.0
    %1620 = vmatpush2.msra.mxu0 0.0
    %1621 = vmatprep.subr.mxu0 0.0
    %1622 = vmatpush2.msra.mxu0 0.0
    %1623 = vmatprep.subr.mxu0 0.0
    %1624 = vmatpush2.msra.mxu0 0.0
    %1625 = vmatprep.subr.mxu0 0.0
    %1626 = vmatpush2.msra.mxu0 0.0
    %1627 = vmatprep.subr.mxu0 0.0
    %1628 = vmatpush2.msra.mxu0 0.0
    %1629 = vmatprep.subr.mxu0 0.0
    %1630 = vmatpush2.msra.mxu0 0.0
    %1631 = vmatprep.subr.mxu0 0.0
    %1632 = vmatpush2.msra.mxu0 0.0
    %1633 = vmatprep.subr.mxu0 0.0
    %1634 = vmatpush2.msra.mxu0 0.0
    %1635 = vmatprep.subr.mxu0 0.0
    %1636 = vmatpush2.msra.mxu0 0.0
    %1637 = vmatprep.subr.mxu0 0.0
    %1638 = vmatpush2.msra.mxu0 0.0
    %1639 = vmatprep.subr.mxu0 0.0
    %1640 = vmatpush2.msra.mxu0 0.0
    %1641 = vmatprep.subr.mxu0 0.0
    %1642 = vmatpush2.msra.mxu0 0.0
    %1643 = vmatprep.subr.mxu0 0.0
    %1644 = vmatpush2.msra.mxu0 0.0
    %1645 = vmatprep.subr.mxu0 0.0
    %1646 = vmatpush2.msra.mxu0 0.0
    %1647 = vmatprep.subr.mxu0 0.0
    %1648 = vmatpush2.msra.mxu0 0.0
    %1649 = vmatprep.subr.mxu0 0.0
    %1650 = vmatpush2.msra.mxu0 0.0
    %1651 = vmatprep.mubr.f32.mxu0 0.0
    %1652 = vmatmul.mubr.f32.gmra.mxu0 %v1582
    %v1653 = vpop.f32.mrf.mxu0
    %v1654 = vadd.f32 %v1580, %v1653
    %v1655 = vpop.f32.mrf.mxu0
    %1656 = vmatprep.mubr.f32.mxu0 0.0
    %1657 = vmatmul.mubr.f32.gmra.mxu0 %v1585
    %v1658 = vpop.f32.mrf.mxu0
    %v1659 = vadd.f32 %v1580, %v1658
    %v1660 = vpop.f32.mrf.mxu0
    %1661 = vdwg.mxu0
    %v1662 = vadd.f32 %v123, %v1654
    %v1663 = vadd.f32 %v128, %v1659
    %v1664 = vld [vmem:[#allocation5 + $0x68] sm:$0x1]
    %v1665 = vld [vmem:[#allocation5 + $0x70] sm:$0x1]
    %v1666 = vsel %vm140, %v1662, 0.0
    %1667 = vadd.xlane.f32.xlu0 %v1666
    %v1668 = vpop.xlane.xlu0 %1667
    %v1669 = vsel %vm140, %v1663, 0.0
    %1670 = vadd.xlane.f32.xlu0 %v1669
    %v1671 = vpop.xlane.xlu0 %1670
    %v1672 = vrcp.pop 32.0
    %v1673 = vmul.f32 %v1668, %v1672
    %v1674 = vmul.f32 %v1671, %v1672
    %v1675 = vsub.f32 %v1662, %v1673
    %v1676 = vsub.f32 %v1663, %v1674
    %v1677 = vmul.f32 %v1675, %v1675
    %v1678 = vmul.f32 %v1676, %v1676
    %v1679 = vsel %vm140, %v1677, 0.0
    %1680 = vadd.xlane.f32.xlu0 %v1679
    %v1681 = vpop.xlane.xlu0 %1680
    %v1682 = vsel %vm140, %v1678, 0.0
    %1683 = vadd.xlane.f32.xlu0 %v1682
    %v1684 = vpop.xlane.xlu0 %1683
    %v1685 = vmul.f32 %v1681, %v1672
    %v1686 = vmul.f32 %v1684, %v1672
    %v1687 = vadd.f32 %v1685, 1e-05
    %v1688 = vadd.f32 %v1686, 1e-05
    %v1689 = vrsqrt.pop %v1687
    %v1690 = vrsqrt.pop %v1688
    %v1691 = vmul.f32 %v1675, %v1689
    %v1692 = vmul.f32 %v1676, %v1690
    %v1693 = vlaneseq
    %v1694 = vshrl.u32 %v1693, 7
    %v1695 = vsub.s32 0, %v1694
    %v1696 = vrot.slane %v1664, %v1695
    %v1697 = vmul.f32 %v1691, %v1696
    %v1698 = vmul.f32 %v1692, %v1696
    %v1699 = vlaneseq
    %v1700 = vshrl.u32 %v1699, 7
    %v1701 = vsub.s32 0, %v1700
    %v1702 = vrot.slane %v1665, %v1701
    %v1703 = vadd.f32 %v1697, %v1702
    %v1704 = vadd.f32 %v1698, %v1702
    %v1705 = vld [vmem:[#allocation5 + $0x78] sm:$0xff]
    %v1706 = vld [vmem:[#allocation5 + $0x80] sm:$0xff]
    %v1707 = vld [vmem:[#allocation5 + $0x88] sm:$0xff]
    %v1708 = vld [vmem:[#allocation5 + $0x90] sm:$0xff]
    %v1709 = vld [vmem:[#allocation5 + $0x98] sm:$0x1]
    %v1710 = vlaneseq
    %v1711 = vshrl.u32 %v1710, 7
    %v1712 = vsub.s32 0, %v1711
    %v1713 = vrot.slane %v1709, %v1712
    %v1715 = vsel %vm140, %v1703, 0
    %v1718 = vsel %vm140, %v1704, 0
    %1720 = vmatprep.subr.mxu0 0.0
    %1721 = vmatpush1.msra.mxu0 0.0
    %1722 = vmatprep.subr.mxu0 0.0
    %1723 = vmatpush1.msra.mxu0 0.0
    %1724 = vmatprep.subr.mxu0 0.0
    %1725 = vmatpush1.msra.mxu0 0.0
    %1726 = vmatprep.subr.mxu0 0.0
    %1727 = vmatpush1.msra.mxu0 0.0
    %1728 = vmatprep.subr.mxu0 0.0
    %1729 = vmatpush1.msra.mxu0 0.0
    %1730 = vmatprep.subr.mxu0 0.0
    %1731 = vmatpush1.msra.mxu0 0.0
    %1732 = vmatprep.subr.mxu0 0.0
    %1733 = vmatpush1.msra.mxu0 0.0
    %1734 = vmatprep.subr.mxu0 0.0
    %1735 = vmatpush1.msra.mxu0 0.0
    %1736 = vmatprep.subr.mxu0 0.0
    %1737 = vmatpush1.msra.mxu0 0.0
    %1738 = vmatprep.subr.mxu0 0.0
    %1739 = vmatpush1.msra.mxu0 0.0
    %1740 = vmatprep.subr.mxu0 0.0
    %1741 = vmatpush1.msra.mxu0 0.0
    %1742 = vmatprep.subr.mxu0 0.0
    %1743 = vmatpush1.msra.mxu0 0.0
    %1744 = vmatprep.subr.mxu0 0.0
    %1745 = vmatpush1.msra.mxu0 %v1708
    %1746 = vmatprep.subr.mxu0 0.0
    %1747 = vmatpush1.msra.mxu0 %v1707
    %1748 = vmatprep.subr.mxu0 0.0
    %1749 = vmatpush1.msra.mxu0 %v1706
    %1750 = vmatprep.subr.mxu0 0.0
    %1751 = vmatpush1.msra.mxu0 %v1705
    %1752 = vmatprep.subr.mxu0 0.0
    %1753 = vmatpush2.msra.mxu0 0.0
    %1754 = vmatprep.subr.mxu0 0.0
    %1755 = vmatpush2.msra.mxu0 0.0
    %1756 = vmatprep.subr.mxu0 0.0
    %1757 = vmatpush2.msra.mxu0 0.0
    %1758 = vmatprep.subr.mxu0 0.0
    %1759 = vmatpush2.msra.mxu0 0.0
    %1760 = vmatprep.subr.mxu0 0.0
    %1761 = vmatpush2.msra.mxu0 0.0
    %1762 = vmatprep.subr.mxu0 0.0
    %1763 = vmatpush2.msra.mxu0 0.0
    %1764 = vmatprep.subr.mxu0 0.0
    %1765 = vmatpush2.msra.mxu0 0.0
    %1766 = vmatprep.subr.mxu0 0.0
    %1767 = vmatpush2.msra.mxu0 0.0
    %1768 = vmatprep.subr.mxu0 0.0
    %1769 = vmatpush2.msra.mxu0 0.0
    %1770 = vmatprep.subr.mxu0 0.0
    %1771 = vmatpush2.msra.mxu0 0.0
    %1772 = vmatprep.subr.mxu0 0.0
    %1773 = vmatpush2.msra.mxu0 0.0
    %1774 = vmatprep.subr.mxu0 0.0
    %1775 = vmatpush2.msra.mxu0 0.0
    %1776 = vmatprep.subr.mxu0 0.0
    %1777 = vmatpush2.msra.mxu0 0.0
    %1778 = vmatprep.subr.mxu0 0.0
    %1779 = vmatpush2.msra.mxu0 0.0
    %1780 = vmatprep.subr.mxu0 0.0
    %1781 = vmatpush2.msra.mxu0 0.0
    %1782 = vmatprep.subr.mxu0 0.0
    %1783 = vmatpush2.msra.mxu0 0.0
    %1784 = vmatprep.mubr.f32.mxu0 0.0
    %1785 = vmatmul.mubr.f32.gmra.mxu0 %v1715
    %v1786 = vpop.f32.mrf.mxu0
    %v1787 = vadd.f32 %v1713, %v1786
    %v1788 = vpop.f32.mrf.mxu0
    %1789 = vmatprep.mubr.f32.mxu0 0.0
    %1790 = vmatmul.mubr.f32.gmra.mxu0 %v1718
    %v1791 = vpop.f32.mrf.mxu0
    %v1792 = vadd.f32 %v1713, %v1791
    %v1793 = vpop.f32.mrf.mxu0
    %1794 = vdwg.mxu0
    %v1795 = vmax.f32 %v1787, 0.0
    %v1796 = vmax.f32 %v1792, 0.0
    %v1797 = vld [vmem:[#allocation5 + $0xa0] sm:$0xff]
    %v1798 = vld [vmem:[#allocation5 + $0xa8] sm:$0xff]
    %v1799 = vld [vmem:[#allocation5 + $0xb0] sm:$0xff]
    %v1800 = vld [vmem:[#allocation5 + $0xb8] sm:$0xff]
    %v1801 = vld [vmem:[#allocation5 + $0xc0] sm:$0xff]
    %v1802 = vld [vmem:[#allocation5 + $0xc8] sm:$0xff]
    %v1803 = vld [vmem:[#allocation5 + $0xd0] sm:$0xff]
    %v1804 = vld [vmem:[#allocation5 + $0xd8] sm:$0xff]
    %v1805 = vld [vmem:[#allocation5 + $0xe0] sm:$0x1]
    %v1806 = vlaneseq
    %v1807 = vshrl.u32 %v1806, 7
    %v1808 = vsub.s32 0, %v1807
    %v1809 = vrot.slane %v1805, %v1808
    %vm1810 = vcmask 523264
    %v1812 = vsel %vm1810, %v1795, 0
    %v1815 = vsel %vm1810, %v1796, 0
    %1817 = vmatprep.subr.mxu0 0.0
    %1818 = vmatpush1.msra.mxu0 0.0
    %1819 = vmatprep.subr.mxu0 0.0
    %1820 = vmatpush1.msra.mxu0 0.0
    %1821 = vmatprep.subr.mxu0 0.0
    %1822 = vmatpush1.msra.mxu0 0.0
    %1823 = vmatprep.subr.mxu0 0.0
    %1824 = vmatpush1.msra.mxu0 0.0
    %1825 = vmatprep.subr.mxu0 0.0
    %1826 = vmatpush1.msra.mxu0 0.0
    %1827 = vmatprep.subr.mxu0 0.0
    %1828 = vmatpush1.msra.mxu0 0.0
    %1829 = vmatprep.subr.mxu0 0.0
    %1830 = vmatpush1.msra.mxu0 0.0
    %1831 = vmatprep.subr.mxu0 0.0
    %1832 = vmatpush1.msra.mxu0 0.0
    %1833 = vmatprep.subr.mxu0 0.0
    %1834 = vmatpush1.msra.mxu0 %v1804
    %1835 = vmatprep.subr.mxu0 0.0
    %1836 = vmatpush1.msra.mxu0 %v1803
    %1837 = vmatprep.subr.mxu0 0.0
    %1838 = vmatpush1.msra.mxu0 %v1802
    %1839 = vmatprep.subr.mxu0 0.0
    %1840 = vmatpush1.msra.mxu0 %v1801
    %1841 = vmatprep.subr.mxu0 0.0
    %1842 = vmatpush1.msra.mxu0 %v1800
    %1843 = vmatprep.subr.mxu0 0.0
    %1844 = vmatpush1.msra.mxu0 %v1799
    %1845 = vmatprep.subr.mxu0 0.0
    %1846 = vmatpush1.msra.mxu0 %v1798
    %1847 = vmatprep.subr.mxu0 0.0
    %1848 = vmatpush1.msra.mxu0 %v1797
    %1849 = vmatprep.subr.mxu0 0.0
    %1850 = vmatpush2.msra.mxu0 0.0
    %1851 = vmatprep.subr.mxu0 0.0
    %1852 = vmatpush2.msra.mxu0 0.0
    %1853 = vmatprep.subr.mxu0 0.0
    %1854 = vmatpush2.msra.mxu0 0.0
    %1855 = vmatprep.subr.mxu0 0.0
    %1856 = vmatpush2.msra.mxu0 0.0
    %1857 = vmatprep.subr.mxu0 0.0
    %1858 = vmatpush2.msra.mxu0 0.0
    %1859 = vmatprep.subr.mxu0 0.0
    %1860 = vmatpush2.msra.mxu0 0.0
    %1861 = vmatprep.subr.mxu0 0.0
    %1862 = vmatpush2.msra.mxu0 0.0
    %1863 = vmatprep.subr.mxu0 0.0
    %1864 = vmatpush2.msra.mxu0 0.0
    %1865 = vmatprep.subr.mxu0 0.0
    %1866 = vmatpush2.msra.mxu0 0.0
    %1867 = vmatprep.subr.mxu0 0.0
    %1868 = vmatpush2.msra.mxu0 0.0
    %1869 = vmatprep.subr.mxu0 0.0
    %1870 = vmatpush2.msra.mxu0 0.0
    %1871 = vmatprep.subr.mxu0 0.0
    %1872 = vmatpush2.msra.mxu0 0.0
    %1873 = vmatprep.subr.mxu0 0.0
    %1874 = vmatpush2.msra.mxu0 0.0
    %1875 = vmatprep.subr.mxu0 0.0
    %1876 = vmatpush2.msra.mxu0 0.0
    %1877 = vmatprep.subr.mxu0 0.0
    %1878 = vmatpush2.msra.mxu0 0.0
    %1879 = vmatprep.subr.mxu0 0.0
    %1880 = vmatpush2.msra.mxu0 0.0
    %1881 = vmatprep.mubr.f32.mxu0 0.0
    %1882 = vmatmul.mubr.f32.gmra.mxu0 %v1812
    %v1883 = vpop.f32.mrf.mxu0
    %v1884 = vadd.f32 %v1809, %v1883
    %v1885 = vpop.f32.mrf.mxu0
    %1886 = vmatprep.mubr.f32.mxu0 0.0
    %1887 = vmatmul.mubr.f32.gmra.mxu0 %v1815
    %v1888 = vpop.f32.mrf.mxu0
    %v1889 = vadd.f32 %v1809, %v1888
    %v1890 = vpop.f32.mrf.mxu0
    %1891 = vdwg.mxu0
    %v1892 = vadd.f32 %v1703, %v1884
    %v1893 = vadd.f32 %v1704, %v1889
    %v1894 = vld [vmem:[#allocation5 + $0xe8] sm:$0x1]
    %v1895 = vld [vmem:[#allocation5 + $0xf0] sm:$0x1]
    %v1896 = vsel %vm140, %v1892, 0.0
    %1897 = vadd.xlane.f32.xlu0 %v1896
    %v1898 = vpop.xlane.xlu0 %1897
    %v1899 = vsel %vm140, %v1893, 0.0
    %1900 = vadd.xlane.f32.xlu0 %v1899
    %v1901 = vpop.xlane.xlu0 %1900
    %v1902 = vmul.f32 %v1898, %v1672
    %v1903 = vmul.f32 %v1901, %v1672
    %v1904 = vsub.f32 %v1892, %v1902
    %v1905 = vsub.f32 %v1893, %v1903
    %v1906 = vmul.f32 %v1904, %v1904
    %v1907 = vmul.f32 %v1905, %v1905
    %v1908 = vsel %vm140, %v1906, 0.0
    %1909 = vadd.xlane.f32.xlu0 %v1908
    %v1910 = vpop.xlane.xlu0 %1909
    %v1911 = vsel %vm140, %v1907, 0.0
    %1912 = vadd.xlane.f32.xlu0 %v1911
    %v1913 = vpop.xlane.xlu0 %1912
    %v1914 = vmul.f32 %v1910, %v1672
    %v1915 = vmul.f32 %v1913, %v1672
    %v1916 = vadd.f32 %v1914, 1e-05
    %v1917 = vadd.f32 %v1915, 1e-05
    %v1918 = vrsqrt.pop %v1916
    %v1919 = vrsqrt.pop %v1917
    %v1920 = vmul.f32 %v1904, %v1918
    %v1921 = vmul.f32 %v1905, %v1919
    %v1922 = vlaneseq
    %v1923 = vshrl.u32 %v1922, 7
    %v1924 = vsub.s32 0, %v1923
    %v1925 = vrot.slane %v1894, %v1924
    %v1926 = vmul.f32 %v1920, %v1925
    %v1927 = vmul.f32 %v1921, %v1925
    %v1928 = vlaneseq
    %v1929 = vshrl.u32 %v1928, 7
    %v1930 = vsub.s32 0, %v1929
    %v1931 = vrot.slane %v1895, %v1930
    %v1932 = vadd.f32 %v1926, %v1931
    %v1933 = vadd.f32 %v1927, %v1931
    %v1934 = vld [vmem:[#allocation5 + $0xf8] sm:$0xff]
    %v1935 = vld [vmem:[#allocation5 + $0x100] sm:$0xff]
    %v1936 = vld [vmem:[#allocation5 + $0x108] sm:$0xff]
    %v1937 = vld [vmem:[#allocation5 + $0x110] sm:$0xff]
    %v1938 = vld [vmem:[#allocation5 + $0x118] sm:$0x1]
    %v1939 = vlaneseq
    %v1940 = vshrl.u32 %v1939, 7
    %v1941 = vsub.s32 0, %v1940
    %v1942 = vrot.slane %v1938, %v1941
    %v1944 = vsel %vm140, %v1932, 0
    %v1947 = vsel %vm140, %v1933, 0
    %1949 = vmatprep.subr.mxu0 0.0
    %1950 = vmatpush1.msra.mxu0 0.0
    %1951 = vmatprep.subr.mxu0 0.0
    %1952 = vmatpush1.msra.mxu0 0.0
    %1953 = vmatprep.subr.mxu0 0.0
    %1954 = vmatpush1.msra.mxu0 0.0
    %1955 = vmatprep.subr.mxu0 0.0
    %1956 = vmatpush1.msra.mxu0 0.0
    %1957 = vmatprep.subr.mxu0 0.0
    %1958 = vmatpush1.msra.mxu0 0.0
    %1959 = vmatprep.subr.mxu0 0.0
    %1960 = vmatpush1.msra.mxu0 0.0
    %1961 = vmatprep.subr.mxu0 0.0
    %1962 = vmatpush1.msra.mxu0 0.0
    %1963 = vmatprep.subr.mxu0 0.0
    %1964 = vmatpush1.msra.mxu0 0.0
    %1965 = vmatprep.subr.mxu0 0.0
    %1966 = vmatpush1.msra.mxu0 0.0
    %1967 = vmatprep.subr.mxu0 0.0
    %1968 = vmatpush1.msra.mxu0 0.0
    %1969 = vmatprep.subr.mxu0 0.0
    %1970 = vmatpush1.msra.mxu0 0.0
    %1971 = vmatprep.subr.mxu0 0.0
    %1972 = vmatpush1.msra.mxu0 0.0
    %1973 = vmatprep.subr.mxu0 0.0
    %1974 = vmatpush1.msra.mxu0 %v1937
    %1975 = vmatprep.subr.mxu0 0.0
    %1976 = vmatpush1.msra.mxu0 %v1936
    %1977 = vmatprep.subr.mxu0 0.0
    %1978 = vmatpush1.msra.mxu0 %v1935
    %1979 = vmatprep.subr.mxu0 0.0
    %1980 = vmatpush1.msra.mxu0 %v1934
    %1981 = vmatprep.subr.mxu0 0.0
    %1982 = vmatpush2.msra.mxu0 0.0
    %1983 = vmatprep.subr.mxu0 0.0
    %1984 = vmatpush2.msra.mxu0 0.0
    %1985 = vmatprep.subr.mxu0 0.0
    %1986 = vmatpush2.msra.mxu0 0.0
    %1987 = vmatprep.subr.mxu0 0.0
    %1988 = vmatpush2.msra.mxu0 0.0
    %1989 = vmatprep.subr.mxu0 0.0
    %1990 = vmatpush2.msra.mxu0 0.0
    %1991 = vmatprep.subr.mxu0 0.0
    %1992 = vmatpush2.msra.mxu0 0.0
    %1993 = vmatprep.subr.mxu0 0.0
    %1994 = vmatpush2.msra.mxu0 0.0
    %1995 = vmatprep.subr.mxu0 0.0
    %1996 = vmatpush2.msra.mxu0 0.0
    %1997 = vmatprep.subr.mxu0 0.0
    %1998 = vmatpush2.msra.mxu0 0.0
    %1999 = vmatprep.subr.mxu0 0.0
    %2000 = vmatpush2.msra.mxu0 0.0
    %2001 = vmatprep.subr.mxu0 0.0
    %2002 = vmatpush2.msra.mxu0 0.0
    %2003 = vmatprep.subr.mxu0 0.0
    %2004 = vmatpush2.msra.mxu0 0.0
    %2005 = vmatprep.subr.mxu0 0.0
    %2006 = vmatpush2.msra.mxu0 0.0
    %2007 = vmatprep.subr.mxu0 0.0
    %2008 = vmatpush2.msra.mxu0 0.0
    %2009 = vmatprep.subr.mxu0 0.0
    %2010 = vmatpush2.msra.mxu0 0.0
    %2011 = vmatprep.subr.mxu0 0.0
    %2012 = vmatpush2.msra.mxu0 0.0
    %2013 = vmatprep.mubr.f32.mxu0 0.0
    %2014 = vmatmul.mubr.f32.gmra.mxu0 %v1944
    %v2015 = vpop.f32.mrf.mxu0
    %v2016 = vadd.f32 %v1942, %v2015
    %v2017 = vpop.f32.mrf.mxu0
    %2018 = vmatprep.mubr.f32.mxu0 0.0
    %2019 = vmatmul.mubr.f32.gmra.mxu0 %v1947
    %v2020 = vpop.f32.mrf.mxu0
    %v2021 = vadd.f32 %v1942, %v2020
    %v2022 = vpop.f32.mrf.mxu0
    %2023 = vdwg.mxu0
    %2025 = vrot.lane.b32.xlu0 %v2016, 96
    %v2026 = vpop.permute.xlu0 %2025
    %v2027 = vsel %vm225, %v2016, 0
    %v2029 = vsel %vm225, %v2026, 0
    %2031 = vmatprep.subr.mxu0 0.0
    %2032 = vmatpush1.xpose.msra.mxu0 0.0
    %2033 = vmatprep.subr.mxu0 0.0
    %2034 = vmatpush1.xpose.msra.mxu0 0.0
    %2035 = vmatprep.subr.mxu0 0.0
    %2036 = vmatpush1.xpose.msra.mxu0 0.0
    %2037 = vmatprep.subr.mxu0 0.0
    %2038 = vmatpush1.xpose.msra.mxu0 0.0
    %2039 = vmatprep.subr.mxu0 0.0
    %2040 = vmatpush1.xpose.msra.mxu0 0.0
    %2041 = vmatprep.subr.mxu0 0.0
    %2042 = vmatpush1.xpose.msra.mxu0 0.0
    %2043 = vmatprep.subr.mxu0 0.0
    %2044 = vmatpush1.xpose.msra.mxu0 0.0
    %2045 = vmatprep.subr.mxu0 0.0
    %2046 = vmatpush1.xpose.msra.mxu0 0.0
    %2047 = vmatprep.subr.mxu0 0.0
    %2048 = vmatpush1.xpose.msra.mxu0 0.0
    %2049 = vmatprep.subr.mxu0 0.0
    %2050 = vmatpush1.xpose.msra.mxu0 0.0
    %2051 = vmatprep.subr.mxu0 0.0
    %2052 = vmatpush1.xpose.msra.mxu0 0.0
    %2053 = vmatprep.subr.mxu0 0.0
    %2054 = vmatpush1.xpose.msra.mxu0 0.0
    %2055 = vmatprep.subr.mxu0 0.0
    %2056 = vmatpush1.xpose.msra.mxu0 0.0
    %2057 = vmatprep.subr.mxu0 0.0
    %2058 = vmatpush1.xpose.msra.mxu0 0.0
    %2059 = vmatprep.subr.mxu0 0.0
    %2060 = vmatpush1.xpose.msra.mxu0 0.0
    %2061 = vmatprep.subr.mxu0 0.0
    %2062 = vmatpush1.xpose.msra.mxu0 %v2029
    %2063 = vmatprep.subr.mxu0 0.0
    %2064 = vmatpush2.xpose.msra.mxu0 0.0
    %2065 = vmatprep.subr.mxu0 0.0
    %2066 = vmatpush2.xpose.msra.mxu0 0.0
    %2067 = vmatprep.subr.mxu0 0.0
    %2068 = vmatpush2.xpose.msra.mxu0 0.0
    %2069 = vmatprep.subr.mxu0 0.0
    %2070 = vmatpush2.xpose.msra.mxu0 0.0
    %2071 = vmatprep.subr.mxu0 0.0
    %2072 = vmatpush2.xpose.msra.mxu0 0.0
    %2073 = vmatprep.subr.mxu0 0.0
    %2074 = vmatpush2.xpose.msra.mxu0 0.0
    %2075 = vmatprep.subr.mxu0 0.0
    %2076 = vmatpush2.xpose.msra.mxu0 0.0
    %2077 = vmatprep.subr.mxu0 0.0
    %2078 = vmatpush2.xpose.msra.mxu0 0.0
    %2079 = vmatprep.subr.mxu0 0.0
    %2080 = vmatpush2.xpose.msra.mxu0 0.0
    %2081 = vmatprep.subr.mxu0 0.0
    %2082 = vmatpush2.xpose.msra.mxu0 0.0
    %2083 = vmatprep.subr.mxu0 0.0
    %2084 = vmatpush2.xpose.msra.mxu0 0.0
    %2085 = vmatprep.subr.mxu0 0.0
    %2086 = vmatpush2.xpose.msra.mxu0 0.0
    %2087 = vmatprep.subr.mxu0 0.0
    %2088 = vmatpush2.xpose.msra.mxu0 0.0
    %2089 = vmatprep.subr.mxu0 0.0
    %2090 = vmatpush2.xpose.msra.mxu0 0.0
    %2091 = vmatprep.subr.mxu0 0.0
    %2092 = vmatpush2.xpose.msra.mxu0 0.0
    %2093 = vmatprep.subr.mxu0 0.0
    %2094 = vmatpush2.xpose.msra.mxu0 0.0
    %2095 = vmatprep.mubr.f32.mxu0 0.0
    %2096 = vmatmul.mubr.f32.gmra.mxu0 %v2027
    %v2097 = vpop.f32.mrf.mxu0
    %v2098 = vadd.f32 0.0, %v2097
    %v2099 = vpop.f32.mrf.mxu0
    %2100 = vdwg.mxu0
    %2102 = vrot.lane.b32.xlu0 %v2021, 96
    %v2103 = vpop.permute.xlu0 %2102
    %v2104 = vsel %vm225, %v2021, 0
    %v2106 = vsel %vm225, %v2103, 0
    %2108 = vmatprep.subr.mxu0 0.0
    %2109 = vmatpush1.xpose.msra.mxu0 0.0
    %2110 = vmatprep.subr.mxu0 0.0
    %2111 = vmatpush1.xpose.msra.mxu0 0.0
    %2112 = vmatprep.subr.mxu0 0.0
    %2113 = vmatpush1.xpose.msra.mxu0 0.0
    %2114 = vmatprep.subr.mxu0 0.0
    %2115 = vmatpush1.xpose.msra.mxu0 0.0
    %2116 = vmatprep.subr.mxu0 0.0
    %2117 = vmatpush1.xpose.msra.mxu0 0.0
    %2118 = vmatprep.subr.mxu0 0.0
    %2119 = vmatpush1.xpose.msra.mxu0 0.0
    %2120 = vmatprep.subr.mxu0 0.0
    %2121 = vmatpush1.xpose.msra.mxu0 0.0
    %2122 = vmatprep.subr.mxu0 0.0
    %2123 = vmatpush1.xpose.msra.mxu0 0.0
    %2124 = vmatprep.subr.mxu0 0.0
    %2125 = vmatpush1.xpose.msra.mxu0 0.0
    %2126 = vmatprep.subr.mxu0 0.0
    %2127 = vmatpush1.xpose.msra.mxu0 0.0
    %2128 = vmatprep.subr.mxu0 0.0
    %2129 = vmatpush1.xpose.msra.mxu0 0.0
    %2130 = vmatprep.subr.mxu0 0.0
    %2131 = vmatpush1.xpose.msra.mxu0 0.0
    %2132 = vmatprep.subr.mxu0 0.0
    %2133 = vmatpush1.xpose.msra.mxu0 0.0
    %2134 = vmatprep.subr.mxu0 0.0
    %2135 = vmatpush1.xpose.msra.mxu0 0.0
    %2136 = vmatprep.subr.mxu0 0.0
    %2137 = vmatpush1.xpose.msra.mxu0 0.0
    %2138 = vmatprep.subr.mxu0 0.0
    %2139 = vmatpush1.xpose.msra.mxu0 %v2106
    %2140 = vmatprep.subr.mxu0 0.0
    %2141 = vmatpush2.xpose.msra.mxu0 0.0
    %2142 = vmatprep.subr.mxu0 0.0
    %2143 = vmatpush2.xpose.msra.mxu0 0.0
    %2144 = vmatprep.subr.mxu0 0.0
    %2145 = vmatpush2.xpose.msra.mxu0 0.0
    %2146 = vmatprep.subr.mxu0 0.0
    %2147 = vmatpush2.xpose.msra.mxu0 0.0
    %2148 = vmatprep.subr.mxu0 0.0
    %2149 = vmatpush2.xpose.msra.mxu0 0.0
    %2150 = vmatprep.subr.mxu0 0.0
    %2151 = vmatpush2.xpose.msra.mxu0 0.0
    %2152 = vmatprep.subr.mxu0 0.0
    %2153 = vmatpush2.xpose.msra.mxu0 0.0
    %2154 = vmatprep.subr.mxu0 0.0
    %2155 = vmatpush2.xpose.msra.mxu0 0.0
    %2156 = vmatprep.subr.mxu0 0.0
    %2157 = vmatpush2.xpose.msra.mxu0 0.0
    %2158 = vmatprep.subr.mxu0 0.0
    %2159 = vmatpush2.xpose.msra.mxu0 0.0
    %2160 = vmatprep.subr.mxu0 0.0
    %2161 = vmatpush2.xpose.msra.mxu0 0.0
    %2162 = vmatprep.subr.mxu0 0.0
    %2163 = vmatpush2.xpose.msra.mxu0 0.0
    %2164 = vmatprep.subr.mxu0 0.0
    %2165 = vmatpush2.xpose.msra.mxu0 0.0
    %2166 = vmatprep.subr.mxu0 0.0
    %2167 = vmatpush2.xpose.msra.mxu0 0.0
    %2168 = vmatprep.subr.mxu0 0.0
    %2169 = vmatpush2.xpose.msra.mxu0 0.0
    %2170 = vmatprep.subr.mxu0 0.0
    %2171 = vmatpush2.xpose.msra.mxu0 0.0
    %2172 = vmatprep.mubr.f32.mxu0 0.0
    %2173 = vmatmul.mubr.f32.gmra.mxu0 %v2104
    %v2174 = vpop.f32.mrf.mxu0
    %v2175 = vadd.f32 0.0, %v2174
    %v2176 = vpop.f32.mrf.mxu0
    %2177 = vdwg.mxu0
    %v2178 = vsel %vm225, %v2098, -inf
    %2179 = vmax.xlane.f32.xlu0 %v2178
    %v2180 = vpop.xlane.xlu0 %2179
    %v2181 = vsel %vm225, %v2175, -inf
    %2182 = vmax.xlane.f32.xlu0 %v2181
    %v2183 = vpop.xlane.xlu0 %2182
    %v2184 = vsub.f32 %v2098, %v2180
    %v2185 = vsub.f32 %v2175, %v2183
    %v2186 = vmul.f32 %v2184, 1.442695
    %v2187 = vpow.pop %v2186
    %v2188 = vmul.f32 %v2185, 1.442695
    %v2189 = vpow.pop %v2188
    %v2190 = vsel %vm225, %v2187, 0.0
    %2191 = vadd.xlane.f32.xlu0 %v2190
    %v2192 = vpop.xlane.xlu0 %2191
    %v2193 = vsel %vm225, %v2189, 0.0
    %2194 = vadd.xlane.f32.xlu0 %v2193
    %v2195 = vpop.xlane.xlu0 %2194
    %v2196 = vrcp.pop %v2192
    %v2197 = vmul.f32 %v2187, %v2196
    %v2198 = vrcp.pop %v2195
    %v2199 = vmul.f32 %v2189, %v2198
    %2200 = vrot.lane.b32.xlu0 %v2016, 64
    %v2201 = vpop.permute.xlu0 %2200
    %v2204 = vsel %vm225, %v2197, 0
    %2206 = vmatprep.subr.mxu0 0.0
    %2207 = vmatpush1.msra.mxu0 0.0
    %2208 = vmatprep.subr.mxu0 0.0
    %2209 = vmatpush1.msra.mxu0 0.0
    %2210 = vmatprep.subr.mxu0 0.0
    %2211 = vmatpush1.msra.mxu0 0.0
    %2212 = vmatprep.subr.mxu0 0.0
    %2213 = vmatpush1.msra.mxu0 0.0
    %2214 = vmatprep.subr.mxu0 0.0
    %2215 = vmatpush1.msra.mxu0 0.0
    %2216 = vmatprep.subr.mxu0 0.0
    %2217 = vmatpush1.msra.mxu0 0.0
    %2218 = vmatprep.subr.mxu0 0.0
    %2219 = vmatpush1.msra.mxu0 0.0
    %2220 = vmatprep.subr.mxu0 0.0
    %2221 = vmatpush1.msra.mxu0 0.0
    %2222 = vmatprep.subr.mxu0 0.0
    %2223 = vmatpush1.msra.mxu0 0.0
    %2224 = vmatprep.subr.mxu0 0.0
    %2225 = vmatpush1.msra.mxu0 0.0
    %2226 = vmatprep.subr.mxu0 0.0
    %2227 = vmatpush1.msra.mxu0 0.0
    %2228 = vmatprep.subr.mxu0 0.0
    %2229 = vmatpush1.msra.mxu0 0.0
    %2230 = vmatprep.subr.mxu0 0.0
    %2231 = vmatpush1.msra.mxu0 0.0
    %2232 = vmatprep.subr.mxu0 0.0
    %2233 = vmatpush1.msra.mxu0 0.0
    %2234 = vmatprep.subr.mxu0 0.0
    %2235 = vmatpush1.msra.mxu0 0.0
    %2236 = vmatprep.subr.mxu0 0.0
    %2237 = vmatpush1.msra.mxu0 %v2201
    %2238 = vmatprep.subr.mxu0 0.0
    %2239 = vmatpush2.msra.mxu0 0.0
    %2240 = vmatprep.subr.mxu0 0.0
    %2241 = vmatpush2.msra.mxu0 0.0
    %2242 = vmatprep.subr.mxu0 0.0
    %2243 = vmatpush2.msra.mxu0 0.0
    %2244 = vmatprep.subr.mxu0 0.0
    %2245 = vmatpush2.msra.mxu0 0.0
    %2246 = vmatprep.subr.mxu0 0.0
    %2247 = vmatpush2.msra.mxu0 0.0
    %2248 = vmatprep.subr.mxu0 0.0
    %2249 = vmatpush2.msra.mxu0 0.0
    %2250 = vmatprep.subr.mxu0 0.0
    %2251 = vmatpush2.msra.mxu0 0.0
    %2252 = vmatprep.subr.mxu0 0.0
    %2253 = vmatpush2.msra.mxu0 0.0
    %2254 = vmatprep.subr.mxu0 0.0
    %2255 = vmatpush2.msra.mxu0 0.0
    %2256 = vmatprep.subr.mxu0 0.0
    %2257 = vmatpush2.msra.mxu0 0.0
    %2258 = vmatprep.subr.mxu0 0.0
    %2259 = vmatpush2.msra.mxu0 0.0
    %2260 = vmatprep.subr.mxu0 0.0
    %2261 = vmatpush2.msra.mxu0 0.0
    %2262 = vmatprep.subr.mxu0 0.0
    %2263 = vmatpush2.msra.mxu0 0.0
    %2264 = vmatprep.subr.mxu0 0.0
    %2265 = vmatpush2.msra.mxu0 0.0
    %2266 = vmatprep.subr.mxu0 0.0
    %2267 = vmatpush2.msra.mxu0 0.0
    %2268 = vmatprep.subr.mxu0 0.0
    %2269 = vmatpush2.msra.mxu0 0.0
    %2270 = vmatprep.mubr.f32.mxu0 0.0
    %2271 = vmatmul.mubr.f32.gmra.mxu0 %v2204
    %v2272 = vpop.f32.mrf.mxu0
    %v2273 = vadd.f32 0.0, %v2272
    %v2274 = vpop.f32.mrf.mxu0
    %2275 = vdwg.mxu0
    %2276 = vrot.lane.b32.xlu0 %v2021, 64
    %v2277 = vpop.permute.xlu0 %2276
    %v2280 = vsel %vm225, %v2199, 0
    %2282 = vmatprep.subr.mxu0 0.0
    %2283 = vmatpush1.msra.mxu0 0.0
    %2284 = vmatprep.subr.mxu0 0.0
    %2285 = vmatpush1.msra.mxu0 0.0
    %2286 = vmatprep.subr.mxu0 0.0
    %2287 = vmatpush1.msra.mxu0 0.0
    %2288 = vmatprep.subr.mxu0 0.0
    %2289 = vmatpush1.msra.mxu0 0.0
    %2290 = vmatprep.subr.mxu0 0.0
    %2291 = vmatpush1.msra.mxu0 0.0
    %2292 = vmatprep.subr.mxu0 0.0
    %2293 = vmatpush1.msra.mxu0 0.0
    %2294 = vmatprep.subr.mxu0 0.0
    %2295 = vmatpush1.msra.mxu0 0.0
    %2296 = vmatprep.subr.mxu0 0.0
    %2297 = vmatpush1.msra.mxu0 0.0
    %2298 = vmatprep.subr.mxu0 0.0
    %2299 = vmatpush1.msra.mxu0 0.0
    %2300 = vmatprep.subr.mxu0 0.0
    %2301 = vmatpush1.msra.mxu0 0.0
    %2302 = vmatprep.subr.mxu0 0.0
    %2303 = vmatpush1.msra.mxu0 0.0
    %2304 = vmatprep.subr.mxu0 0.0
    %2305 = vmatpush1.msra.mxu0 0.0
    %2306 = vmatprep.subr.mxu0 0.0
    %2307 = vmatpush1.msra.mxu0 0.0
    %2308 = vmatprep.subr.mxu0 0.0
    %2309 = vmatpush1.msra.mxu0 0.0
    %2310 = vmatprep.subr.mxu0 0.0
    %2311 = vmatpush1.msra.mxu0 0.0
    %2312 = vmatprep.subr.mxu0 0.0
    %2313 = vmatpush1.msra.mxu0 %v2277
    %2314 = vmatprep.subr.mxu0 0.0
    %2315 = vmatpush2.msra.mxu0 0.0
    %2316 = vmatprep.subr.mxu0 0.0
    %2317 = vmatpush2.msra.mxu0 0.0
    %2318 = vmatprep.subr.mxu0 0.0
    %2319 = vmatpush2.msra.mxu0 0.0
    %2320 = vmatprep.subr.mxu0 0.0
    %2321 = vmatpush2.msra.mxu0 0.0
    %2322 = vmatprep.subr.mxu0 0.0
    %2323 = vmatpush2.msra.mxu0 0.0
    %2324 = vmatprep.subr.mxu0 0.0
    %2325 = vmatpush2.msra.mxu0 0.0
    %2326 = vmatprep.subr.mxu0 0.0
    %2327 = vmatpush2.msra.mxu0 0.0
    %2328 = vmatprep.subr.mxu0 0.0
    %2329 = vmatpush2.msra.mxu0 0.0
    %2330 = vmatprep.subr.mxu0 0.0
    %2331 = vmatpush2.msra.mxu0 0.0
    %2332 = vmatprep.subr.mxu0 0.0
    %2333 = vmatpush2.msra.mxu0 0.0
    %2334 = vmatprep.subr.mxu0 0.0
    %2335 = vmatpush2.msra.mxu0 0.0
    %2336 = vmatprep.subr.mxu0 0.0
    %2337 = vmatpush2.msra.mxu0 0.0
    %2338 = vmatprep.subr.mxu0 0.0
    %2339 = vmatpush2.msra.mxu0 0.0
    %2340 = vmatprep.subr.mxu0 0.0
    %2341 = vmatpush2.msra.mxu0 0.0
    %2342 = vmatprep.subr.mxu0 0.0
    %2343 = vmatpush2.msra.mxu0 0.0
    %2344 = vmatprep.subr.mxu0 0.0
    %2345 = vmatpush2.msra.mxu0 0.0
    %2346 = vmatprep.mubr.f32.mxu0 0.0
    %2347 = vmatmul.mubr.f32.gmra.mxu0 %v2280
    %v2348 = vpop.f32.mrf.mxu0
    %v2349 = vadd.f32 0.0, %v2348
    %v2350 = vpop.f32.mrf.mxu0
    %2351 = vdwg.mxu0
    %2352 = vrot.lane.b32.xlu0 %v2016, 120
    %v2353 = vpop.permute.xlu0 %2352
    %2354 = vrot.lane.b32.xlu0 %v2016, 88
    %v2355 = vpop.permute.xlu0 %2354
    %v2356 = vsel %vm225, %v2353, 0
    %v2358 = vsel %vm225, %v2355, 0
    %2360 = vmatprep.subr.mxu0 0.0
    %2361 = vmatpush1.xpose.msra.mxu0 0.0
    %2362 = vmatprep.subr.mxu0 0.0
    %2363 = vmatpush1.xpose.msra.mxu0 0.0
    %2364 = vmatprep.subr.mxu0 0.0
    %2365 = vmatpush1.xpose.msra.mxu0 0.0
    %2366 = vmatprep.subr.mxu0 0.0
    %2367 = vmatpush1.xpose.msra.mxu0 0.0
    %2368 = vmatprep.subr.mxu0 0.0
    %2369 = vmatpush1.xpose.msra.mxu0 0.0
    %2370 = vmatprep.subr.mxu0 0.0
    %2371 = vmatpush1.xpose.msra.mxu0 0.0
    %2372 = vmatprep.subr.mxu0 0.0
    %2373 = vmatpush1.xpose.msra.mxu0 0.0
    %2374 = vmatprep.subr.mxu0 0.0
    %2375 = vmatpush1.xpose.msra.mxu0 0.0
    %2376 = vmatprep.subr.mxu0 0.0
    %2377 = vmatpush1.xpose.msra.mxu0 0.0
    %2378 = vmatprep.subr.mxu0 0.0
    %2379 = vmatpush1.xpose.msra.mxu0 0.0
    %2380 = vmatprep.subr.mxu0 0.0
    %2381 = vmatpush1.xpose.msra.mxu0 0.0
    %2382 = vmatprep.subr.mxu0 0.0
    %2383 = vmatpush1.xpose.msra.mxu0 0.0
    %2384 = vmatprep.subr.mxu0 0.0
    %2385 = vmatpush1.xpose.msra.mxu0 0.0
    %2386 = vmatprep.subr.mxu0 0.0
    %2387 = vmatpush1.xpose.msra.mxu0 0.0
    %2388 = vmatprep.subr.mxu0 0.0
    %2389 = vmatpush1.xpose.msra.mxu0 0.0
    %2390 = vmatprep.subr.mxu0 0.0
    %2391 = vmatpush1.xpose.msra.mxu0 %v2358
    %2392 = vmatprep.subr.mxu0 0.0
    %2393 = vmatpush2.xpose.msra.mxu0 0.0
    %2394 = vmatprep.subr.mxu0 0.0
    %2395 = vmatpush2.xpose.msra.mxu0 0.0
    %2396 = vmatprep.subr.mxu0 0.0
    %2397 = vmatpush2.xpose.msra.mxu0 0.0
    %2398 = vmatprep.subr.mxu0 0.0
    %2399 = vmatpush2.xpose.msra.mxu0 0.0
    %2400 = vmatprep.subr.mxu0 0.0
    %2401 = vmatpush2.xpose.msra.mxu0 0.0
    %2402 = vmatprep.subr.mxu0 0.0
    %2403 = vmatpush2.xpose.msra.mxu0 0.0
    %2404 = vmatprep.subr.mxu0 0.0
    %2405 = vmatpush2.xpose.msra.mxu0 0.0
    %2406 = vmatprep.subr.mxu0 0.0
    %2407 = vmatpush2.xpose.msra.mxu0 0.0
    %2408 = vmatprep.subr.mxu0 0.0
    %2409 = vmatpush2.xpose.msra.mxu0 0.0
    %2410 = vmatprep.subr.mxu0 0.0
    %2411 = vmatpush2.xpose.msra.mxu0 0.0
    %2412 = vmatprep.subr.mxu0 0.0
    %2413 = vmatpush2.xpose.msra.mxu0 0.0
    %2414 = vmatprep.subr.mxu0 0.0
    %2415 = vmatpush2.xpose.msra.mxu0 0.0
    %2416 = vmatprep.subr.mxu0 0.0
    %2417 = vmatpush2.xpose.msra.mxu0 0.0
    %2418 = vmatprep.subr.mxu0 0.0
    %2419 = vmatpush2.xpose.msra.mxu0 0.0
    %2420 = vmatprep.subr.mxu0 0.0
    %2421 = vmatpush2.xpose.msra.mxu0 0.0
    %2422 = vmatprep.subr.mxu0 0.0
    %2423 = vmatpush2.xpose.msra.mxu0 0.0
    %2424 = vmatprep.mubr.f32.mxu0 0.0
    %2425 = vmatmul.mubr.f32.gmra.mxu0 %v2356
    %v2426 = vpop.f32.mrf.mxu0
    %v2427 = vadd.f32 0.0, %v2426
    %v2428 = vpop.f32.mrf.mxu0
    %2429 = vdwg.mxu0
    %2430 = vrot.lane.b32.xlu0 %v2021, 120
    %v2431 = vpop.permute.xlu0 %2430
    %2432 = vrot.lane.b32.xlu0 %v2021, 88
    %v2433 = vpop.permute.xlu0 %2432
    %v2434 = vsel %vm225, %v2431, 0
    %v2436 = vsel %vm225, %v2433, 0
    %2438 = vmatprep.subr.mxu0 0.0
    %2439 = vmatpush1.xpose.msra.mxu0 0.0
    %2440 = vmatprep.subr.mxu0 0.0
    %2441 = vmatpush1.xpose.msra.mxu0 0.0
    %2442 = vmatprep.subr.mxu0 0.0
    %2443 = vmatpush1.xpose.msra.mxu0 0.0
    %2444 = vmatprep.subr.mxu0 0.0
    %2445 = vmatpush1.xpose.msra.mxu0 0.0
    %2446 = vmatprep.subr.mxu0 0.0
    %2447 = vmatpush1.xpose.msra.mxu0 0.0
    %2448 = vmatprep.subr.mxu0 0.0
    %2449 = vmatpush1.xpose.msra.mxu0 0.0
    %2450 = vmatprep.subr.mxu0 0.0
    %2451 = vmatpush1.xpose.msra.mxu0 0.0
    %2452 = vmatprep.subr.mxu0 0.0
    %2453 = vmatpush1.xpose.msra.mxu0 0.0
    %2454 = vmatprep.subr.mxu0 0.0
    %2455 = vmatpush1.xpose.msra.mxu0 0.0
    %2456 = vmatprep.subr.mxu0 0.0
    %2457 = vmatpush1.xpose.msra.mxu0 0.0
    %2458 = vmatprep.subr.mxu0 0.0
    %2459 = vmatpush1.xpose.msra.mxu0 0.0
    %2460 = vmatprep.subr.mxu0 0.0
    %2461 = vmatpush1.xpose.msra.mxu0 0.0
    %2462 = vmatprep.subr.mxu0 0.0
    %2463 = vmatpush1.xpose.msra.mxu0 0.0
    %2464 = vmatprep.subr.mxu0 0.0
    %2465 = vmatpush1.xpose.msra.mxu0 0.0
    %2466 = vmatprep.subr.mxu0 0.0
    %2467 = vmatpush1.xpose.msra.mxu0 0.0
    %2468 = vmatprep.subr.mxu0 0.0
    %2469 = vmatpush1.xpose.msra.mxu0 %v2436
    %2470 = vmatprep.subr.mxu0 0.0
    %2471 = vmatpush2.xpose.msra.mxu0 0.0
    %2472 = vmatprep.subr.mxu0 0.0
    %2473 = vmatpush2.xpose.msra.mxu0 0.0
    %2474 = vmatprep.subr.mxu0 0.0
    %2475 = vmatpush2.xpose.msra.mxu0 0.0
    %2476 = vmatprep.subr.mxu0 0.0
    %2477 = vmatpush2.xpose.msra.mxu0 0.0
    %2478 = vmatprep.subr.mxu0 0.0
    %2479 = vmatpush2.xpose.msra.mxu0 0.0
    %2480 = vmatprep.subr.mxu0 0.0
    %2481 = vmatpush2.xpose.msra.mxu0 0.0
    %2482 = vmatprep.subr.mxu0 0.0
    %2483 = vmatpush2.xpose.msra.mxu0 0.0
    %2484 = vmatprep.subr.mxu0 0.0
    %2485 = vmatpush2.xpose.msra.mxu0 0.0
    %2486 = vmatprep.subr.mxu0 0.0
    %2487 = vmatpush2.xpose.msra.mxu0 0.0
    %2488 = vmatprep.subr.mxu0 0.0
    %2489 = vmatpush2.xpose.msra.mxu0 0.0
    %2490 = vmatprep.subr.mxu0 0.0
    %2491 = vmatpush2.xpose.msra.mxu0 0.0
    %2492 = vmatprep.subr.mxu0 0.0
    %2493 = vmatpush2.xpose.msra.mxu0 0.0
    %2494 = vmatprep.subr.mxu0 0.0
    %2495 = vmatpush2.xpose.msra.mxu0 0.0
    %2496 = vmatprep.subr.mxu0 0.0
    %2497 = vmatpush2.xpose.msra.mxu0 0.0
    %2498 = vmatprep.subr.mxu0 0.0
    %2499 = vmatpush2.xpose.msra.mxu0 0.0
    %2500 = vmatprep.subr.mxu0 0.0
    %2501 = vmatpush2.xpose.msra.mxu0 0.0
    %2502 = vmatprep.mubr.f32.mxu0 0.0
    %2503 = vmatmul.mubr.f32.gmra.mxu0 %v2434
    %v2504 = vpop.f32.mrf.mxu0
    %v2505 = vadd.f32 0.0, %v2504
    %v2506 = vpop.f32.mrf.mxu0
    %2507 = vdwg.mxu0
    %v2508 = vsel %vm225, %v2427, -inf
    %2509 = vmax.xlane.f32.xlu0 %v2508
    %v2510 = vpop.xlane.xlu0 %2509
    %v2511 = vsel %vm225, %v2505, -inf
    %2512 = vmax.xlane.f32.xlu0 %v2511
    %v2513 = vpop.xlane.xlu0 %2512
    %v2514 = vsub.f32 %v2427, %v2510
    %v2515 = vsub.f32 %v2505, %v2513
    %v2516 = vmul.f32 %v2514, 1.442695
    %v2517 = vpow.pop %v2516
    %v2518 = vmul.f32 %v2515, 1.442695
    %v2519 = vpow.pop %v2518
    %v2520 = vsel %vm225, %v2517, 0.0
    %2521 = vadd.xlane.f32.xlu0 %v2520
    %v2522 = vpop.xlane.xlu0 %2521
    %v2523 = vsel %vm225, %v2519, 0.0
    %2524 = vadd.xlane.f32.xlu0 %v2523
    %v2525 = vpop.xlane.xlu0 %2524
    %v2526 = vrcp.pop %v2522
    %v2527 = vmul.f32 %v2517, %v2526
    %v2528 = vrcp.pop %v2525
    %v2529 = vmul.f32 %v2519, %v2528
    %2530 = vrot.lane.b32.xlu0 %v2016, 56
    %v2531 = vpop.permute.xlu0 %2530
    %v2534 = vsel %vm225, %v2527, 0
    %2536 = vmatprep.subr.mxu0 0.0
    %2537 = vmatpush1.msra.mxu0 0.0
    %2538 = vmatprep.subr.mxu0 0.0
    %2539 = vmatpush1.msra.mxu0 0.0
    %2540 = vmatprep.subr.mxu0 0.0
    %2541 = vmatpush1.msra.mxu0 0.0
    %2542 = vmatprep.subr.mxu0 0.0
    %2543 = vmatpush1.msra.mxu0 0.0
    %2544 = vmatprep.subr.mxu0 0.0
    %2545 = vmatpush1.msra.mxu0 0.0
    %2546 = vmatprep.subr.mxu0 0.0
    %2547 = vmatpush1.msra.mxu0 0.0
    %2548 = vmatprep.subr.mxu0 0.0
    %2549 = vmatpush1.msra.mxu0 0.0
    %2550 = vmatprep.subr.mxu0 0.0
    %2551 = vmatpush1.msra.mxu0 0.0
    %2552 = vmatprep.subr.mxu0 0.0
    %2553 = vmatpush1.msra.mxu0 0.0
    %2554 = vmatprep.subr.mxu0 0.0
    %2555 = vmatpush1.msra.mxu0 0.0
    %2556 = vmatprep.subr.mxu0 0.0
    %2557 = vmatpush1.msra.mxu0 0.0
    %2558 = vmatprep.subr.mxu0 0.0
    %2559 = vmatpush1.msra.mxu0 0.0
    %2560 = vmatprep.subr.mxu0 0.0
    %2561 = vmatpush1.msra.mxu0 0.0
    %2562 = vmatprep.subr.mxu0 0.0
    %2563 = vmatpush1.msra.mxu0 0.0
    %2564 = vmatprep.subr.mxu0 0.0
    %2565 = vmatpush1.msra.mxu0 0.0
    %2566 = vmatprep.subr.mxu0 0.0
    %2567 = vmatpush1.msra.mxu0 %v2531
    %2568 = vmatprep.subr.mxu0 0.0
    %2569 = vmatpush2.msra.mxu0 0.0
    %2570 = vmatprep.subr.mxu0 0.0
    %2571 = vmatpush2.msra.mxu0 0.0
    %2572 = vmatprep.subr.mxu0 0.0
    %2573 = vmatpush2.msra.mxu0 0.0
    %2574 = vmatprep.subr.mxu0 0.0
    %2575 = vmatpush2.msra.mxu0 0.0
    %2576 = vmatprep.subr.mxu0 0.0
    %2577 = vmatpush2.msra.mxu0 0.0
    %2578 = vmatprep.subr.mxu0 0.0
    %2579 = vmatpush2.msra.mxu0 0.0
    %2580 = vmatprep.subr.mxu0 0.0
    %2581 = vmatpush2.msra.mxu0 0.0
    %2582 = vmatprep.subr.mxu0 0.0
    %2583 = vmatpush2.msra.mxu0 0.0
    %2584 = vmatprep.subr.mxu0 0.0
    %2585 = vmatpush2.msra.mxu0 0.0
    %2586 = vmatprep.subr.mxu0 0.0
    %2587 = vmatpush2.msra.mxu0 0.0
    %2588 = vmatprep.subr.mxu0 0.0
    %2589 = vmatpush2.msra.mxu0 0.0
    %2590 = vmatprep.subr.mxu0 0.0
    %2591 = vmatpush2.msra.mxu0 0.0
    %2592 = vmatprep.subr.mxu0 0.0
    %2593 = vmatpush2.msra.mxu0 0.0
    %2594 = vmatprep.subr.mxu0 0.0
    %2595 = vmatpush2.msra.mxu0 0.0
    %2596 = vmatprep.subr.mxu0 0.0
    %2597 = vmatpush2.msra.mxu0 0.0
    %2598 = vmatprep.subr.mxu0 0.0
    %2599 = vmatpush2.msra.mxu0 0.0
    %2600 = vmatprep.mubr.f32.mxu0 0.0
    %2601 = vmatmul.mubr.f32.gmra.mxu0 %v2534
    %v2602 = vpop.f32.mrf.mxu0
    %v2603 = vadd.f32 0.0, %v2602
    %v2604 = vpop.f32.mrf.mxu0
    %2605 = vdwg.mxu0
    %2606 = vrot.lane.b32.xlu0 %v2021, 56
    %v2607 = vpop.permute.xlu0 %2606
    %v2610 = vsel %vm225, %v2529, 0
    %2612 = vmatprep.subr.mxu0 0.0
    %2613 = vmatpush1.msra.mxu0 0.0
    %2614 = vmatprep.subr.mxu0 0.0
    %2615 = vmatpush1.msra.mxu0 0.0
    %2616 = vmatprep.subr.mxu0 0.0
    %2617 = vmatpush1.msra.mxu0 0.0
    %2618 = vmatprep.subr.mxu0 0.0
    %2619 = vmatpush1.msra.mxu0 0.0
    %2620 = vmatprep.subr.mxu0 0.0
    %2621 = vmatpush1.msra.mxu0 0.0
    %2622 = vmatprep.subr.mxu0 0.0
    %2623 = vmatpush1.msra.mxu0 0.0
    %2624 = vmatprep.subr.mxu0 0.0
    %2625 = vmatpush1.msra.mxu0 0.0
    %2626 = vmatprep.subr.mxu0 0.0
    %2627 = vmatpush1.msra.mxu0 0.0
    %2628 = vmatprep.subr.mxu0 0.0
    %2629 = vmatpush1.msra.mxu0 0.0
    %2630 = vmatprep.subr.mxu0 0.0
    %2631 = vmatpush1.msra.mxu0 0.0
    %2632 = vmatprep.subr.mxu0 0.0
    %2633 = vmatpush1.msra.mxu0 0.0
    %2634 = vmatprep.subr.mxu0 0.0
    %2635 = vmatpush1.msra.mxu0 0.0
    %2636 = vmatprep.subr.mxu0 0.0
    %2637 = vmatpush1.msra.mxu0 0.0
    %2638 = vmatprep.subr.mxu0 0.0
    %2639 = vmatpush1.msra.mxu0 0.0
    %2640 = vmatprep.subr.mxu0 0.0
    %2641 = vmatpush1.msra.mxu0 0.0
    %2642 = vmatprep.subr.mxu0 0.0
    %2643 = vmatpush1.msra.mxu0 %v2607
    %2644 = vmatprep.subr.mxu0 0.0
    %2645 = vmatpush2.msra.mxu0 0.0
    %2646 = vmatprep.subr.mxu0 0.0
    %2647 = vmatpush2.msra.mxu0 0.0
    %2648 = vmatprep.subr.mxu0 0.0
    %2649 = vmatpush2.msra.mxu0 0.0
    %2650 = vmatprep.subr.mxu0 0.0
    %2651 = vmatpush2.msra.mxu0 0.0
    %2652 = vmatprep.subr.mxu0 0.0
    %2653 = vmatpush2.msra.mxu0 0.0
    %2654 = vmatprep.subr.mxu0 0.0
    %2655 = vmatpush2.msra.mxu0 0.0
    %2656 = vmatprep.subr.mxu0 0.0
    %2657 = vmatpush2.msra.mxu0 0.0
    %2658 = vmatprep.subr.mxu0 0.0
    %2659 = vmatpush2.msra.mxu0 0.0
    %2660 = vmatprep.subr.mxu0 0.0
    %2661 = vmatpush2.msra.mxu0 0.0
    %2662 = vmatprep.subr.mxu0 0.0
    %2663 = vmatpush2.msra.mxu0 0.0
    %2664 = vmatprep.subr.mxu0 0.0
    %2665 = vmatpush2.msra.mxu0 0.0
    %2666 = vmatprep.subr.mxu0 0.0
    %2667 = vmatpush2.msra.mxu0 0.0
    %2668 = vmatprep.subr.mxu0 0.0
    %2669 = vmatpush2.msra.mxu0 0.0
    %2670 = vmatprep.subr.mxu0 0.0
    %2671 = vmatpush2.msra.mxu0 0.0
    %2672 = vmatprep.subr.mxu0 0.0
    %2673 = vmatpush2.msra.mxu0 0.0
    %2674 = vmatprep.subr.mxu0 0.0
    %2675 = vmatpush2.msra.mxu0 0.0
    %2676 = vmatprep.mubr.f32.mxu0 0.0
    %2677 = vmatmul.mubr.f32.gmra.mxu0 %v2610
    %v2678 = vpop.f32.mrf.mxu0
    %v2679 = vadd.f32 0.0, %v2678
    %v2680 = vpop.f32.mrf.mxu0
    %2681 = vdwg.mxu0
    %2682 = vrot.lane.b32.xlu0 %v2016, 112
    %v2683 = vpop.permute.xlu0 %2682
    %2684 = vrot.lane.b32.xlu0 %v2016, 80
    %v2685 = vpop.permute.xlu0 %2684
    %v2686 = vsel %vm225, %v2683, 0
    %v2688 = vsel %vm225, %v2685, 0
    %2690 = vmatprep.subr.mxu0 0.0
    %2691 = vmatpush1.xpose.msra.mxu0 0.0
    %2692 = vmatprep.subr.mxu0 0.0
    %2693 = vmatpush1.xpose.msra.mxu0 0.0
    %2694 = vmatprep.subr.mxu0 0.0
    %2695 = vmatpush1.xpose.msra.mxu0 0.0
    %2696 = vmatprep.subr.mxu0 0.0
    %2697 = vmatpush1.xpose.msra.mxu0 0.0
    %2698 = vmatprep.subr.mxu0 0.0
    %2699 = vmatpush1.xpose.msra.mxu0 0.0
    %2700 = vmatprep.subr.mxu0 0.0
    %2701 = vmatpush1.xpose.msra.mxu0 0.0
    %2702 = vmatprep.subr.mxu0 0.0
    %2703 = vmatpush1.xpose.msra.mxu0 0.0
    %2704 = vmatprep.subr.mxu0 0.0
    %2705 = vmatpush1.xpose.msra.mxu0 0.0
    %2706 = vmatprep.subr.mxu0 0.0
    %2707 = vmatpush1.xpose.msra.mxu0 0.0
    %2708 = vmatprep.subr.mxu0 0.0
    %2709 = vmatpush1.xpose.msra.mxu0 0.0
    %2710 = vmatprep.subr.mxu0 0.0
    %2711 = vmatpush1.xpose.msra.mxu0 0.0
    %2712 = vmatprep.subr.mxu0 0.0
    %2713 = vmatpush1.xpose.msra.mxu0 0.0
    %2714 = vmatprep.subr.mxu0 0.0
    %2715 = vmatpush1.xpose.msra.mxu0 0.0
    %2716 = vmatprep.subr.mxu0 0.0
    %2717 = vmatpush1.xpose.msra.mxu0 0.0
    %2718 = vmatprep.subr.mxu0 0.0
    %2719 = vmatpush1.xpose.msra.mxu0 0.0
    %2720 = vmatprep.subr.mxu0 0.0
    %2721 = vmatpush1.xpose.msra.mxu0 %v2688
    %2722 = vmatprep.subr.mxu0 0.0
    %2723 = vmatpush2.xpose.msra.mxu0 0.0
    %2724 = vmatprep.subr.mxu0 0.0
    %2725 = vmatpush2.xpose.msra.mxu0 0.0
    %2726 = vmatprep.subr.mxu0 0.0
    %2727 = vmatpush2.xpose.msra.mxu0 0.0
    %2728 = vmatprep.subr.mxu0 0.0
    %2729 = vmatpush2.xpose.msra.mxu0 0.0
    %2730 = vmatprep.subr.mxu0 0.0
    %2731 = vmatpush2.xpose.msra.mxu0 0.0
    %2732 = vmatprep.subr.mxu0 0.0
    %2733 = vmatpush2.xpose.msra.mxu0 0.0
    %2734 = vmatprep.subr.mxu0 0.0
    %2735 = vmatpush2.xpose.msra.mxu0 0.0
    %2736 = vmatprep.subr.mxu0 0.0
    %2737 = vmatpush2.xpose.msra.mxu0 0.0
    %2738 = vmatprep.subr.mxu0 0.0
    %2739 = vmatpush2.xpose.msra.mxu0 0.0
    %2740 = vmatprep.subr.mxu0 0.0
    %2741 = vmatpush2.xpose.msra.mxu0 0.0
    %2742 = vmatprep.subr.mxu0 0.0
    %2743 = vmatpush2.xpose.msra.mxu0 0.0
    %2744 = vmatprep.subr.mxu0 0.0
    %2745 = vmatpush2.xpose.msra.mxu0 0.0
    %2746 = vmatprep.subr.mxu0 0.0
    %2747 = vmatpush2.xpose.msra.mxu0 0.0
    %2748 = vmatprep.subr.mxu0 0.0
    %2749 = vmatpush2.xpose.msra.mxu0 0.0
    %2750 = vmatprep.subr.mxu0 0.0
    %2751 = vmatpush2.xpose.msra.mxu0 0.0
    %2752 = vmatprep.subr.mxu0 0.0
    %2753 = vmatpush2.xpose.msra.mxu0 0.0
    %2754 = vmatprep.mubr.f32.mxu0 0.0
    %2755 = vmatmul.mubr.f32.gmra.mxu0 %v2686
    %v2756 = vpop.f32.mrf.mxu0
    %v2757 = vadd.f32 0.0, %v2756
    %v2758 = vpop.f32.mrf.mxu0
    %2759 = vdwg.mxu0
    %2760 = vrot.lane.b32.xlu0 %v2021, 112
    %v2761 = vpop.permute.xlu0 %2760
    %2762 = vrot.lane.b32.xlu0 %v2021, 80
    %v2763 = vpop.permute.xlu0 %2762
    %v2764 = vsel %vm225, %v2761, 0
    %v2766 = vsel %vm225, %v2763, 0
    %2768 = vmatprep.subr.mxu0 0.0
    %2769 = vmatpush1.xpose.msra.mxu0 0.0
    %2770 = vmatprep.subr.mxu0 0.0
    %2771 = vmatpush1.xpose.msra.mxu0 0.0
    %2772 = vmatprep.subr.mxu0 0.0
    %2773 = vmatpush1.xpose.msra.mxu0 0.0
    %2774 = vmatprep.subr.mxu0 0.0
    %2775 = vmatpush1.xpose.msra.mxu0 0.0
    %2776 = vmatprep.subr.mxu0 0.0
    %2777 = vmatpush1.xpose.msra.mxu0 0.0
    %2778 = vmatprep.subr.mxu0 0.0
    %2779 = vmatpush1.xpose.msra.mxu0 0.0
    %2780 = vmatprep.subr.mxu0 0.0
    %2781 = vmatpush1.xpose.msra.mxu0 0.0
    %2782 = vmatprep.subr.mxu0 0.0
    %2783 = vmatpush1.xpose.msra.mxu0 0.0
    %2784 = vmatprep.subr.mxu0 0.0
    %2785 = vmatpush1.xpose.msra.mxu0 0.0
    %2786 = vmatprep.subr.mxu0 0.0
    %2787 = vmatpush1.xpose.msra.mxu0 0.0
    %2788 = vmatprep.subr.mxu0 0.0
    %2789 = vmatpush1.xpose.msra.mxu0 0.0
    %2790 = vmatprep.subr.mxu0 0.0
    %2791 = vmatpush1.xpose.msra.mxu0 0.0
    %2792 = vmatprep.subr.mxu0 0.0
    %2793 = vmatpush1.xpose.msra.mxu0 0.0
    %2794 = vmatprep.subr.mxu0 0.0
    %2795 = vmatpush1.xpose.msra.mxu0 0.0
    %2796 = vmatprep.subr.mxu0 0.0
    %2797 = vmatpush1.xpose.msra.mxu0 0.0
    %2798 = vmatprep.subr.mxu0 0.0
    %2799 = vmatpush1.xpose.msra.mxu0 %v2766
    %2800 = vmatprep.subr.mxu0 0.0
    %2801 = vmatpush2.xpose.msra.mxu0 0.0
    %2802 = vmatprep.subr.mxu0 0.0
    %2803 = vmatpush2.xpose.msra.mxu0 0.0
    %2804 = vmatprep.subr.mxu0 0.0
    %2805 = vmatpush2.xpose.msra.mxu0 0.0
    %2806 = vmatprep.subr.mxu0 0.0
    %2807 = vmatpush2.xpose.msra.mxu0 0.0
    %2808 = vmatprep.subr.mxu0 0.0
    %2809 = vmatpush2.xpose.msra.mxu0 0.0
    %2810 = vmatprep.subr.mxu0 0.0
    %2811 = vmatpush2.xpose.msra.mxu0 0.0
    %2812 = vmatprep.subr.mxu0 0.0
    %2813 = vmatpush2.xpose.msra.mxu0 0.0
    %2814 = vmatprep.subr.mxu0 0.0
    %2815 = vmatpush2.xpose.msra.mxu0 0.0
    %2816 = vmatprep.subr.mxu0 0.0
    %2817 = vmatpush2.xpose.msra.mxu0 0.0
    %2818 = vmatprep.subr.mxu0 0.0
    %2819 = vmatpush2.xpose.msra.mxu0 0.0
    %2820 = vmatprep.subr.mxu0 0.0
    %2821 = vmatpush2.xpose.msra.mxu0 0.0
    %2822 = vmatprep.subr.mxu0 0.0
    %2823 = vmatpush2.xpose.msra.mxu0 0.0
    %2824 = vmatprep.subr.mxu0 0.0
    %2825 = vmatpush2.xpose.msra.mxu0 0.0
    %2826 = vmatprep.subr.mxu0 0.0
    %2827 = vmatpush2.xpose.msra.mxu0 0.0
    %2828 = vmatprep.subr.mxu0 0.0
    %2829 = vmatpush2.xpose.msra.mxu0 0.0
    %2830 = vmatprep.subr.mxu0 0.0
    %2831 = vmatpush2.xpose.msra.mxu0 0.0
    %2832 = vmatprep.mubr.f32.mxu0 0.0
    %2833 = vmatmul.mubr.f32.gmra.mxu0 %v2764
    %v2834 = vpop.f32.mrf.mxu0
    %v2835 = vadd.f32 0.0, %v2834
    %v2836 = vpop.f32.mrf.mxu0
    %2837 = vdwg.mxu0
    %v2838 = vsel %vm225, %v2757, -inf
    %2839 = vmax.xlane.f32.xlu0 %v2838
    %v2840 = vpop.xlane.xlu0 %2839
    %v2841 = vsel %vm225, %v2835, -inf
    %2842 = vmax.xlane.f32.xlu0 %v2841
    %v2843 = vpop.xlane.xlu0 %2842
    %v2844 = vsub.f32 %v2757, %v2840
    %v2845 = vsub.f32 %v2835, %v2843
    %v2846 = vmul.f32 %v2844, 1.442695
    %v2847 = vpow.pop %v2846
    %v2848 = vmul.f32 %v2845, 1.442695
    %v2849 = vpow.pop %v2848
    %v2850 = vsel %vm225, %v2847, 0.0
    %2851 = vadd.xlane.f32.xlu0 %v2850
    %v2852 = vpop.xlane.xlu0 %2851
    %v2853 = vsel %vm225, %v2849, 0.0
    %2854 = vadd.xlane.f32.xlu0 %v2853
    %v2855 = vpop.xlane.xlu0 %2854
    %v2856 = vrcp.pop %v2852
    %v2857 = vmul.f32 %v2847, %v2856
    %v2858 = vrcp.pop %v2855
    %v2859 = vmul.f32 %v2849, %v2858
    %2860 = vrot.lane.b32.xlu0 %v2016, 48
    %v2861 = vpop.permute.xlu0 %2860
    %v2864 = vsel %vm225, %v2857, 0
    %2866 = vmatprep.subr.mxu0 0.0
    %2867 = vmatpush1.msra.mxu0 0.0
    %2868 = vmatprep.subr.mxu0 0.0
    %2869 = vmatpush1.msra.mxu0 0.0
    %2870 = vmatprep.subr.mxu0 0.0
    %2871 = vmatpush1.msra.mxu0 0.0
    %2872 = vmatprep.subr.mxu0 0.0
    %2873 = vmatpush1.msra.mxu0 0.0
    %2874 = vmatprep.subr.mxu0 0.0
    %2875 = vmatpush1.msra.mxu0 0.0
    %2876 = vmatprep.subr.mxu0 0.0
    %2877 = vmatpush1.msra.mxu0 0.0
    %2878 = vmatprep.subr.mxu0 0.0
    %2879 = vmatpush1.msra.mxu0 0.0
    %2880 = vmatprep.subr.mxu0 0.0
    %2881 = vmatpush1.msra.mxu0 0.0
    %2882 = vmatprep.subr.mxu0 0.0
    %2883 = vmatpush1.msra.mxu0 0.0
    %2884 = vmatprep.subr.mxu0 0.0
    %2885 = vmatpush1.msra.mxu0 0.0
    %2886 = vmatprep.subr.mxu0 0.0
    %2887 = vmatpush1.msra.mxu0 0.0
    %2888 = vmatprep.subr.mxu0 0.0
    %2889 = vmatpush1.msra.mxu0 0.0
    %2890 = vmatprep.subr.mxu0 0.0
    %2891 = vmatpush1.msra.mxu0 0.0
    %2892 = vmatprep.subr.mxu0 0.0
    %2893 = vmatpush1.msra.mxu0 0.0
    %2894 = vmatprep.subr.mxu0 0.0
    %2895 = vmatpush1.msra.mxu0 0.0
    %2896 = vmatprep.subr.mxu0 0.0
    %2897 = vmatpush1.msra.mxu0 %v2861
    %2898 = vmatprep.subr.mxu0 0.0
    %2899 = vmatpush2.msra.mxu0 0.0
    %2900 = vmatprep.subr.mxu0 0.0
    %2901 = vmatpush2.msra.mxu0 0.0
    %2902 = vmatprep.subr.mxu0 0.0
    %2903 = vmatpush2.msra.mxu0 0.0
    %2904 = vmatprep.subr.mxu0 0.0
    %2905 = vmatpush2.msra.mxu0 0.0
    %2906 = vmatprep.subr.mxu0 0.0
    %2907 = vmatpush2.msra.mxu0 0.0
    %2908 = vmatprep.subr.mxu0 0.0
    %2909 = vmatpush2.msra.mxu0 0.0
    %2910 = vmatprep.subr.mxu0 0.0
    %2911 = vmatpush2.msra.mxu0 0.0
    %2912 = vmatprep.subr.mxu0 0.0
    %2913 = vmatpush2.msra.mxu0 0.0
    %2914 = vmatprep.subr.mxu0 0.0
    %2915 = vmatpush2.msra.mxu0 0.0
    %2916 = vmatprep.subr.mxu0 0.0
    %2917 = vmatpush2.msra.mxu0 0.0
    %2918 = vmatprep.subr.mxu0 0.0
    %2919 = vmatpush2.msra.mxu0 0.0
    %2920 = vmatprep.subr.mxu0 0.0
    %2921 = vmatpush2.msra.mxu0 0.0
    %2922 = vmatprep.subr.mxu0 0.0
    %2923 = vmatpush2.msra.mxu0 0.0
    %2924 = vmatprep.subr.mxu0 0.0
    %2925 = vmatpush2.msra.mxu0 0.0
    %2926 = vmatprep.subr.mxu0 0.0
    %2927 = vmatpush2.msra.mxu0 0.0
    %2928 = vmatprep.subr.mxu0 0.0
    %2929 = vmatpush2.msra.mxu0 0.0
    %2930 = vmatprep.mubr.f32.mxu0 0.0
    %2931 = vmatmul.mubr.f32.gmra.mxu0 %v2864
    %v2932 = vpop.f32.mrf.mxu0
    %v2933 = vadd.f32 0.0, %v2932
    %v2934 = vpop.f32.mrf.mxu0
    %2935 = vdwg.mxu0
    %2936 = vrot.lane.b32.xlu0 %v2021, 48
    %v2937 = vpop.permute.xlu0 %2936
    %v2940 = vsel %vm225, %v2859, 0
    %2942 = vmatprep.subr.mxu0 0.0
    %2943 = vmatpush1.msra.mxu0 0.0
    %2944 = vmatprep.subr.mxu0 0.0
    %2945 = vmatpush1.msra.mxu0 0.0
    %2946 = vmatprep.subr.mxu0 0.0
    %2947 = vmatpush1.msra.mxu0 0.0
    %2948 = vmatprep.subr.mxu0 0.0
    %2949 = vmatpush1.msra.mxu0 0.0
    %2950 = vmatprep.subr.mxu0 0.0
    %2951 = vmatpush1.msra.mxu0 0.0
    %2952 = vmatprep.subr.mxu0 0.0
    %2953 = vmatpush1.msra.mxu0 0.0
    %2954 = vmatprep.subr.mxu0 0.0
    %2955 = vmatpush1.msra.mxu0 0.0
    %2956 = vmatprep.subr.mxu0 0.0
    %2957 = vmatpush1.msra.mxu0 0.0
    %2958 = vmatprep.subr.mxu0 0.0
    %2959 = vmatpush1.msra.mxu0 0.0
    %2960 = vmatprep.subr.mxu0 0.0
    %2961 = vmatpush1.msra.mxu0 0.0
    %2962 = vmatprep.subr.mxu0 0.0
    %2963 = vmatpush1.msra.mxu0 0.0
    %2964 = vmatprep.subr.mxu0 0.0
    %2965 = vmatpush1.msra.mxu0 0.0
    %2966 = vmatprep.subr.mxu0 0.0
    %2967 = vmatpush1.msra.mxu0 0.0
    %2968 = vmatprep.subr.mxu0 0.0
    %2969 = vmatpush1.msra.mxu0 0.0
    %2970 = vmatprep.subr.mxu0 0.0
    %2971 = vmatpush1.msra.mxu0 0.0
    %2972 = vmatprep.subr.mxu0 0.0
    %2973 = vmatpush1.msra.mxu0 %v2937
    %2974 = vmatprep.subr.mxu0 0.0
    %2975 = vmatpush2.msra.mxu0 0.0
    %2976 = vmatprep.subr.mxu0 0.0
    %2977 = vmatpush2.msra.mxu0 0.0
    %2978 = vmatprep.subr.mxu0 0.0
    %2979 = vmatpush2.msra.mxu0 0.0
    %2980 = vmatprep.subr.mxu0 0.0
    %2981 = vmatpush2.msra.mxu0 0.0
    %2982 = vmatprep.subr.mxu0 0.0
    %2983 = vmatpush2.msra.mxu0 0.0
    %2984 = vmatprep.subr.mxu0 0.0
    %2985 = vmatpush2.msra.mxu0 0.0
    %2986 = vmatprep.subr.mxu0 0.0
    %2987 = vmatpush2.msra.mxu0 0.0
    %2988 = vmatprep.subr.mxu0 0.0
    %2989 = vmatpush2.msra.mxu0 0.0
    %2990 = vmatprep.subr.mxu0 0.0
    %2991 = vmatpush2.msra.mxu0 0.0
    %2992 = vmatprep.subr.mxu0 0.0
    %2993 = vmatpush2.msra.mxu0 0.0
    %2994 = vmatprep.subr.mxu0 0.0
    %2995 = vmatpush2.msra.mxu0 0.0
    %2996 = vmatprep.subr.mxu0 0.0
    %2997 = vmatpush2.msra.mxu0 0.0
    %2998 = vmatprep.subr.mxu0 0.0
    %2999 = vmatpush2.msra.mxu0 0.0
    %3000 = vmatprep.subr.mxu0 0.0
    %3001 = vmatpush2.msra.mxu0 0.0
    %3002 = vmatprep.subr.mxu0 0.0
    %3003 = vmatpush2.msra.mxu0 0.0
    %3004 = vmatprep.subr.mxu0 0.0
    %3005 = vmatpush2.msra.mxu0 0.0
    %3006 = vmatprep.mubr.f32.mxu0 0.0
    %3007 = vmatmul.mubr.f32.gmra.mxu0 %v2940
    %v3008 = vpop.f32.mrf.mxu0
    %v3009 = vadd.f32 0.0, %v3008
    %v3010 = vpop.f32.mrf.mxu0
    %3011 = vdwg.mxu0
    %3012 = vrot.lane.b32.xlu0 %v2016, 104
    %v3013 = vpop.permute.xlu0 %3012
    %3014 = vrot.lane.b32.xlu0 %v2016, 72
    %v3015 = vpop.permute.xlu0 %3014
    %v3016 = vsel %vm225, %v3013, 0
    %v3018 = vsel %vm225, %v3015, 0
    %3020 = vmatprep.subr.mxu0 0.0
    %3021 = vmatpush1.xpose.msra.mxu0 0.0
    %3022 = vmatprep.subr.mxu0 0.0
    %3023 = vmatpush1.xpose.msra.mxu0 0.0
    %3024 = vmatprep.subr.mxu0 0.0
    %3025 = vmatpush1.xpose.msra.mxu0 0.0
    %3026 = vmatprep.subr.mxu0 0.0
    %3027 = vmatpush1.xpose.msra.mxu0 0.0
    %3028 = vmatprep.subr.mxu0 0.0
    %3029 = vmatpush1.xpose.msra.mxu0 0.0
    %3030 = vmatprep.subr.mxu0 0.0
    %3031 = vmatpush1.xpose.msra.mxu0 0.0
    %3032 = vmatprep.subr.mxu0 0.0
    %3033 = vmatpush1.xpose.msra.mxu0 0.0
    %3034 = vmatprep.subr.mxu0 0.0
    %3035 = vmatpush1.xpose.msra.mxu0 0.0
    %3036 = vmatprep.subr.mxu0 0.0
    %3037 = vmatpush1.xpose.msra.mxu0 0.0
    %3038 = vmatprep.subr.mxu0 0.0
    %3039 = vmatpush1.xpose.msra.mxu0 0.0
    %3040 = vmatprep.subr.mxu0 0.0
    %3041 = vmatpush1.xpose.msra.mxu0 0.0
    %3042 = vmatprep.subr.mxu0 0.0
    %3043 = vmatpush1.xpose.msra.mxu0 0.0
    %3044 = vmatprep.subr.mxu0 0.0
    %3045 = vmatpush1.xpose.msra.mxu0 0.0
    %3046 = vmatprep.subr.mxu0 0.0
    %3047 = vmatpush1.xpose.msra.mxu0 0.0
    %3048 = vmatprep.subr.mxu0 0.0
    %3049 = vmatpush1.xpose.msra.mxu0 0.0
    %3050 = vmatprep.subr.mxu0 0.0
    %3051 = vmatpush1.xpose.msra.mxu0 %v3018
    %3052 = vmatprep.subr.mxu0 0.0
    %3053 = vmatpush2.xpose.msra.mxu0 0.0
    %3054 = vmatprep.subr.mxu0 0.0
    %3055 = vmatpush2.xpose.msra.mxu0 0.0
    %3056 = vmatprep.subr.mxu0 0.0
    %3057 = vmatpush2.xpose.msra.mxu0 0.0
    %3058 = vmatprep.subr.mxu0 0.0
    %3059 = vmatpush2.xpose.msra.mxu0 0.0
    %3060 = vmatprep.subr.mxu0 0.0
    %3061 = vmatpush2.xpose.msra.mxu0 0.0
    %3062 = vmatprep.subr.mxu0 0.0
    %3063 = vmatpush2.xpose.msra.mxu0 0.0
    %3064 = vmatprep.subr.mxu0 0.0
    %3065 = vmatpush2.xpose.msra.mxu0 0.0
    %3066 = vmatprep.subr.mxu0 0.0
    %3067 = vmatpush2.xpose.msra.mxu0 0.0
    %3068 = vmatprep.subr.mxu0 0.0
    %3069 = vmatpush2.xpose.msra.mxu0 0.0
    %3070 = vmatprep.subr.mxu0 0.0
    %3071 = vmatpush2.xpose.msra.mxu0 0.0
    %3072 = vmatprep.subr.mxu0 0.0
    %3073 = vmatpush2.xpose.msra.mxu0 0.0
    %3074 = vmatprep.subr.mxu0 0.0
    %3075 = vmatpush2.xpose.msra.mxu0 0.0
    %3076 = vmatprep.subr.mxu0 0.0
    %3077 = vmatpush2.xpose.msra.mxu0 0.0
    %3078 = vmatprep.subr.mxu0 0.0
    %3079 = vmatpush2.xpose.msra.mxu0 0.0
    %3080 = vmatprep.subr.mxu0 0.0
    %3081 = vmatpush2.xpose.msra.mxu0 0.0
    %3082 = vmatprep.subr.mxu0 0.0
    %3083 = vmatpush2.xpose.msra.mxu0 0.0
    %3084 = vmatprep.mubr.f32.mxu0 0.0
    %3085 = vmatmul.mubr.f32.gmra.mxu0 %v3016
    %v3086 = vpop.f32.mrf.mxu0
    %v3087 = vadd.f32 0.0, %v3086
    %v3088 = vpop.f32.mrf.mxu0
    %3089 = vdwg.mxu0
    %3090 = vrot.lane.b32.xlu0 %v2021, 104
    %v3091 = vpop.permute.xlu0 %3090
    %3092 = vrot.lane.b32.xlu0 %v2021, 72
    %v3093 = vpop.permute.xlu0 %3092
    %v3094 = vsel %vm225, %v3091, 0
    %v3096 = vsel %vm225, %v3093, 0
    %3098 = vmatprep.subr.mxu0 0.0
    %3099 = vmatpush1.xpose.msra.mxu0 0.0
    %3100 = vmatprep.subr.mxu0 0.0
    %3101 = vmatpush1.xpose.msra.mxu0 0.0
    %3102 = vmatprep.subr.mxu0 0.0
    %3103 = vmatpush1.xpose.msra.mxu0 0.0
    %3104 = vmatprep.subr.mxu0 0.0
    %3105 = vmatpush1.xpose.msra.mxu0 0.0
    %3106 = vmatprep.subr.mxu0 0.0
    %3107 = vmatpush1.xpose.msra.mxu0 0.0
    %3108 = vmatprep.subr.mxu0 0.0
    %3109 = vmatpush1.xpose.msra.mxu0 0.0
    %3110 = vmatprep.subr.mxu0 0.0
    %3111 = vmatpush1.xpose.msra.mxu0 0.0
    %3112 = vmatprep.subr.mxu0 0.0
    %3113 = vmatpush1.xpose.msra.mxu0 0.0
    %3114 = vmatprep.subr.mxu0 0.0
    %3115 = vmatpush1.xpose.msra.mxu0 0.0
    %3116 = vmatprep.subr.mxu0 0.0
    %3117 = vmatpush1.xpose.msra.mxu0 0.0
    %3118 = vmatprep.subr.mxu0 0.0
    %3119 = vmatpush1.xpose.msra.mxu0 0.0
    %3120 = vmatprep.subr.mxu0 0.0
    %3121 = vmatpush1.xpose.msra.mxu0 0.0
    %3122 = vmatprep.subr.mxu0 0.0
    %3123 = vmatpush1.xpose.msra.mxu0 0.0
    %3124 = vmatprep.subr.mxu0 0.0
    %3125 = vmatpush1.xpose.msra.mxu0 0.0
    %3126 = vmatprep.subr.mxu0 0.0
    %3127 = vmatpush1.xpose.msra.mxu0 0.0
    %3128 = vmatprep.subr.mxu0 0.0
    %3129 = vmatpush1.xpose.msra.mxu0 %v3096
    %3130 = vmatprep.subr.mxu0 0.0
    %3131 = vmatpush2.xpose.msra.mxu0 0.0
    %3132 = vmatprep.subr.mxu0 0.0
    %3133 = vmatpush2.xpose.msra.mxu0 0.0
    %3134 = vmatprep.subr.mxu0 0.0
    %3135 = vmatpush2.xpose.msra.mxu0 0.0
    %3136 = vmatprep.subr.mxu0 0.0
    %3137 = vmatpush2.xpose.msra.mxu0 0.0
    %3138 = vmatprep.subr.mxu0 0.0
    %3139 = vmatpush2.xpose.msra.mxu0 0.0
    %3140 = vmatprep.subr.mxu0 0.0
    %3141 = vmatpush2.xpose.msra.mxu0 0.0
    %3142 = vmatprep.subr.mxu0 0.0
    %3143 = vmatpush2.xpose.msra.mxu0 0.0
    %3144 = vmatprep.subr.mxu0 0.0
    %3145 = vmatpush2.xpose.msra.mxu0 0.0
    %3146 = vmatprep.subr.mxu0 0.0
    %3147 = vmatpush2.xpose.msra.mxu0 0.0
    %3148 = vmatprep.subr.mxu0 0.0
    %3149 = vmatpush2.xpose.msra.mxu0 0.0
    %3150 = vmatprep.subr.mxu0 0.0
    %3151 = vmatpush2.xpose.msra.mxu0 0.0
    %3152 = vmatprep.subr.mxu0 0.0
    %3153 = vmatpush2.xpose.msra.mxu0 0.0
    %3154 = vmatprep.subr.mxu0 0.0
    %3155 = vmatpush2.xpose.msra.mxu0 0.0
    %3156 = vmatprep.subr.mxu0 0.0
    %3157 = vmatpush2.xpose.msra.mxu0 0.0
    %3158 = vmatprep.subr.mxu0 0.0
    %3159 = vmatpush2.xpose.msra.mxu0 0.0
    %3160 = vmatprep.subr.mxu0 0.0
    %3161 = vmatpush2.xpose.msra.mxu0 0.0
    %3162 = vmatprep.mubr.f32.mxu0 0.0
    %3163 = vmatmul.mubr.f32.gmra.mxu0 %v3094
    %v3164 = vpop.f32.mrf.mxu0
    %v3165 = vadd.f32 0.0, %v3164
    %v3166 = vpop.f32.mrf.mxu0
    %3167 = vdwg.mxu0
    %v3168 = vsel %vm225, %v3087, -inf
    %3169 = vmax.xlane.f32.xlu0 %v3168
    %v3170 = vpop.xlane.xlu0 %3169
    %v3171 = vsel %vm225, %v3165, -inf
    %3172 = vmax.xlane.f32.xlu0 %v3171
    %v3173 = vpop.xlane.xlu0 %3172
    %v3174 = vsub.f32 %v3087, %v3170
    %v3175 = vsub.f32 %v3165, %v3173
    %v3176 = vmul.f32 %v3174, 1.442695
    %v3177 = vpow.pop %v3176
    %v3178 = vmul.f32 %v3175, 1.442695
    %v3179 = vpow.pop %v3178
    %v3180 = vsel %vm225, %v3177, 0.0
    %3181 = vadd.xlane.f32.xlu0 %v3180
    %v3182 = vpop.xlane.xlu0 %3181
    %v3183 = vsel %vm225, %v3179, 0.0
    %3184 = vadd.xlane.f32.xlu0 %v3183
    %v3185 = vpop.xlane.xlu0 %3184
    %v3186 = vrcp.pop %v3182
    %v3187 = vmul.f32 %v3177, %v3186
    %v3188 = vrcp.pop %v3185
    %v3189 = vmul.f32 %v3179, %v3188
    %3190 = vrot.lane.b32.xlu0 %v2016, 40
    %v3191 = vpop.permute.xlu0 %3190
    %v3194 = vsel %vm225, %v3187, 0
    %3196 = vmatprep.subr.mxu0 0.0
    %3197 = vmatpush1.msra.mxu0 0.0
    %3198 = vmatprep.subr.mxu0 0.0
    %3199 = vmatpush1.msra.mxu0 0.0
    %3200 = vmatprep.subr.mxu0 0.0
    %3201 = vmatpush1.msra.mxu0 0.0
    %3202 = vmatprep.subr.mxu0 0.0
    %3203 = vmatpush1.msra.mxu0 0.0
    %3204 = vmatprep.subr.mxu0 0.0
    %3205 = vmatpush1.msra.mxu0 0.0
    %3206 = vmatprep.subr.mxu0 0.0
    %3207 = vmatpush1.msra.mxu0 0.0
    %3208 = vmatprep.subr.mxu0 0.0
    %3209 = vmatpush1.msra.mxu0 0.0
    %3210 = vmatprep.subr.mxu0 0.0
    %3211 = vmatpush1.msra.mxu0 0.0
    %3212 = vmatprep.subr.mxu0 0.0
    %3213 = vmatpush1.msra.mxu0 0.0
    %3214 = vmatprep.subr.mxu0 0.0
    %3215 = vmatpush1.msra.mxu0 0.0
    %3216 = vmatprep.subr.mxu0 0.0
    %3217 = vmatpush1.msra.mxu0 0.0
    %3218 = vmatprep.subr.mxu0 0.0
    %3219 = vmatpush1.msra.mxu0 0.0
    %3220 = vmatprep.subr.mxu0 0.0
    %3221 = vmatpush1.msra.mxu0 0.0
    %3222 = vmatprep.subr.mxu0 0.0
    %3223 = vmatpush1.msra.mxu0 0.0
    %3224 = vmatprep.subr.mxu0 0.0
    %3225 = vmatpush1.msra.mxu0 0.0
    %3226 = vmatprep.subr.mxu0 0.0
    %3227 = vmatpush1.msra.mxu0 %v3191
    %3228 = vmatprep.subr.mxu0 0.0
    %3229 = vmatpush2.msra.mxu0 0.0
    %3230 = vmatprep.subr.mxu0 0.0
    %3231 = vmatpush2.msra.mxu0 0.0
    %3232 = vmatprep.subr.mxu0 0.0
    %3233 = vmatpush2.msra.mxu0 0.0
    %3234 = vmatprep.subr.mxu0 0.0
    %3235 = vmatpush2.msra.mxu0 0.0
    %3236 = vmatprep.subr.mxu0 0.0
    %3237 = vmatpush2.msra.mxu0 0.0
    %3238 = vmatprep.subr.mxu0 0.0
    %3239 = vmatpush2.msra.mxu0 0.0
    %3240 = vmatprep.subr.mxu0 0.0
    %3241 = vmatpush2.msra.mxu0 0.0
    %3242 = vmatprep.subr.mxu0 0.0
    %3243 = vmatpush2.msra.mxu0 0.0
    %3244 = vmatprep.subr.mxu0 0.0
    %3245 = vmatpush2.msra.mxu0 0.0
    %3246 = vmatprep.subr.mxu0 0.0
    %3247 = vmatpush2.msra.mxu0 0.0
    %3248 = vmatprep.subr.mxu0 0.0
    %3249 = vmatpush2.msra.mxu0 0.0
    %3250 = vmatprep.subr.mxu0 0.0
    %3251 = vmatpush2.msra.mxu0 0.0
    %3252 = vmatprep.subr.mxu0 0.0
    %3253 = vmatpush2.msra.mxu0 0.0
    %3254 = vmatprep.subr.mxu0 0.0
    %3255 = vmatpush2.msra.mxu0 0.0
    %3256 = vmatprep.subr.mxu0 0.0
    %3257 = vmatpush2.msra.mxu0 0.0
    %3258 = vmatprep.subr.mxu0 0.0
    %3259 = vmatpush2.msra.mxu0 0.0
    %3260 = vmatprep.mubr.f32.mxu0 0.0
    %3261 = vmatmul.mubr.f32.gmra.mxu0 %v3194
    %v3262 = vpop.f32.mrf.mxu0
    %v3263 = vadd.f32 0.0, %v3262
    %v3264 = vpop.f32.mrf.mxu0
    %3265 = vdwg.mxu0
    %3266 = vrot.lane.b32.xlu0 %v2021, 40
    %v3267 = vpop.permute.xlu0 %3266
    %v3270 = vsel %vm225, %v3189, 0
    %3272 = vmatprep.subr.mxu0 0.0
    %3273 = vmatpush1.msra.mxu0 0.0
    %3274 = vmatprep.subr.mxu0 0.0
    %3275 = vmatpush1.msra.mxu0 0.0
    %3276 = vmatprep.subr.mxu0 0.0
    %3277 = vmatpush1.msra.mxu0 0.0
    %3278 = vmatprep.subr.mxu0 0.0
    %3279 = vmatpush1.msra.mxu0 0.0
    %3280 = vmatprep.subr.mxu0 0.0
    %3281 = vmatpush1.msra.mxu0 0.0
    %3282 = vmatprep.subr.mxu0 0.0
    %3283 = vmatpush1.msra.mxu0 0.0
    %3284 = vmatprep.subr.mxu0 0.0
    %3285 = vmatpush1.msra.mxu0 0.0
    %3286 = vmatprep.subr.mxu0 0.0
    %3287 = vmatpush1.msra.mxu0 0.0
    %3288 = vmatprep.subr.mxu0 0.0
    %3289 = vmatpush1.msra.mxu0 0.0
    %3290 = vmatprep.subr.mxu0 0.0
    %3291 = vmatpush1.msra.mxu0 0.0
    %3292 = vmatprep.subr.mxu0 0.0
    %3293 = vmatpush1.msra.mxu0 0.0
    %3294 = vmatprep.subr.mxu0 0.0
    %3295 = vmatpush1.msra.mxu0 0.0
    %3296 = vmatprep.subr.mxu0 0.0
    %3297 = vmatpush1.msra.mxu0 0.0
    %3298 = vmatprep.subr.mxu0 0.0
    %3299 = vmatpush1.msra.mxu0 0.0
    %3300 = vmatprep.subr.mxu0 0.0
    %3301 = vmatpush1.msra.mxu0 0.0
    %3302 = vmatprep.subr.mxu0 0.0
    %3303 = vmatpush1.msra.mxu0 %v3267
    %3304 = vmatprep.subr.mxu0 0.0
    %3305 = vmatpush2.msra.mxu0 0.0
    %3306 = vmatprep.subr.mxu0 0.0
    %3307 = vmatpush2.msra.mxu0 0.0
    %3308 = vmatprep.subr.mxu0 0.0
    %3309 = vmatpush2.msra.mxu0 0.0
    %3310 = vmatprep.subr.mxu0 0.0
    %3311 = vmatpush2.msra.mxu0 0.0
    %3312 = vmatprep.subr.mxu0 0.0
    %3313 = vmatpush2.msra.mxu0 0.0
    %3314 = vmatprep.subr.mxu0 0.0
    %3315 = vmatpush2.msra.mxu0 0.0
    %3316 = vmatprep.subr.mxu0 0.0
    %3317 = vmatpush2.msra.mxu0 0.0
    %3318 = vmatprep.subr.mxu0 0.0
    %3319 = vmatpush2.msra.mxu0 0.0
    %3320 = vmatprep.subr.mxu0 0.0
    %3321 = vmatpush2.msra.mxu0 0.0
    %3322 = vmatprep.subr.mxu0 0.0
    %3323 = vmatpush2.msra.mxu0 0.0
    %3324 = vmatprep.subr.mxu0 0.0
    %3325 = vmatpush2.msra.mxu0 0.0
    %3326 = vmatprep.subr.mxu0 0.0
    %3327 = vmatpush2.msra.mxu0 0.0
    %3328 = vmatprep.subr.mxu0 0.0
    %3329 = vmatpush2.msra.mxu0 0.0
    %3330 = vmatprep.subr.mxu0 0.0
    %3331 = vmatpush2.msra.mxu0 0.0
    %3332 = vmatprep.subr.mxu0 0.0
    %3333 = vmatpush2.msra.mxu0 0.0
    %3334 = vmatprep.subr.mxu0 0.0
    %3335 = vmatpush2.msra.mxu0 0.0
    %3336 = vmatprep.mubr.f32.mxu0 0.0
    %3337 = vmatmul.mubr.f32.gmra.mxu0 %v3270
    %v3338 = vpop.f32.mrf.mxu0
    %v3339 = vadd.f32 0.0, %v3338
    %v3340 = vpop.f32.mrf.mxu0
    %3341 = vdwg.mxu0
    %3344 = vrot.lane.b32.xlu0 %v2603, 8
    %v3345 = vpop.permute.xlu0 %3344
    %3346 = vrot.lane.b32.xlu0 %v2679, 8
    %v3347 = vpop.permute.xlu0 %3346
    %3352 = vrot.lane.b32.xlu0 %v2933, 16
    %v3353 = vpop.permute.xlu0 %3352
    %3354 = vrot.lane.b32.xlu0 %v3009, 16
    %v3355 = vpop.permute.xlu0 %3354
    %3360 = vrot.lane.b32.xlu0 %v3263, 24
    %v3361 = vpop.permute.xlu0 %3360
    %3362 = vrot.lane.b32.xlu0 %v3339, 24
    %v3363 = vpop.permute.xlu0 %3362
    %v3366 = vsel %vm225, %v2273, %v3345
    %v3367 = vsel %vm225, %v2349, %v3347
    %v3368 = vsel %vm49, %v3366, %v3353
    %v3369 = vsel %vm49, %v3367, %v3355
    %v3370 = vsel %vm1569, %v3368, %v3361
    %v3371 = vsel %vm1569, %v3369, %v3363
    %v3372 = vld [vmem:[#allocation5 + $0x120] sm:$0xff]
    %v3373 = vld [vmem:[#allocation5 + $0x128] sm:$0xff]
    %v3374 = vld [vmem:[#allocation5 + $0x130] sm:$0xff]
    %v3375 = vld [vmem:[#allocation5 + $0x138] sm:$0xff]
    %v3376 = vld [vmem:[#allocation5 + $0x140] sm:$0x1]
    %v3377 = vlaneseq
    %v3378 = vshrl.u32 %v3377, 7
    %v3379 = vsub.s32 0, %v3378
    %v3380 = vrot.slane %v3376, %v3379
    %v3382 = vsel %vm140, %v3370, 0
    %v3385 = vsel %vm140, %v3371, 0
    %3387 = vmatprep.subr.mxu0 0.0
    %3388 = vmatpush1.msra.mxu0 0.0
    %3389 = vmatprep.subr.mxu0 0.0
    %3390 = vmatpush1.msra.mxu0 0.0
    %3391 = vmatprep.subr.mxu0 0.0
    %3392 = vmatpush1.msra.mxu0 0.0
    %3393 = vmatprep.subr.mxu0 0.0
    %3394 = vmatpush1.msra.mxu0 0.0
    %3395 = vmatprep.subr.mxu0 0.0
    %3396 = vmatpush1.msra.mxu0 0.0
    %3397 = vmatprep.subr.mxu0 0.0
    %3398 = vmatpush1.msra.mxu0 0.0
    %3399 = vmatprep.subr.mxu0 0.0
    %3400 = vmatpush1.msra.mxu0 0.0
    %3401 = vmatprep.subr.mxu0 0.0
    %3402 = vmatpush1.msra.mxu0 0.0
    %3403 = vmatprep.subr.mxu0 0.0
    %3404 = vmatpush1.msra.mxu0 0.0
    %3405 = vmatprep.subr.mxu0 0.0
    %3406 = vmatpush1.msra.mxu0 0.0
    %3407 = vmatprep.subr.mxu0 0.0
    %3408 = vmatpush1.msra.mxu0 0.0
    %3409 = vmatprep.subr.mxu0 0.0
    %3410 = vmatpush1.msra.mxu0 0.0
    %3411 = vmatprep.subr.mxu0 0.0
    %3412 = vmatpush1.msra.mxu0 %v3375
    %3413 = vmatprep.subr.mxu0 0.0
    %3414 = vmatpush1.msra.mxu0 %v3374
    %3415 = vmatprep.subr.mxu0 0.0
    %3416 = vmatpush1.msra.mxu0 %v3373
    %3417 = vmatprep.subr.mxu0 0.0
    %3418 = vmatpush1.msra.mxu0 %v3372
    %3419 = vmatprep.subr.mxu0 0.0
    %3420 = vmatpush2.msra.mxu0 0.0
    %3421 = vmatprep.subr.mxu0 0.0
    %3422 = vmatpush2.msra.mxu0 0.0
    %3423 = vmatprep.subr.mxu0 0.0
    %3424 = vmatpush2.msra.mxu0 0.0
    %3425 = vmatprep.subr.mxu0 0.0
    %3426 = vmatpush2.msra.mxu0 0.0
    %3427 = vmatprep.subr.mxu0 0.0
    %3428 = vmatpush2.msra.mxu0 0.0
    %3429 = vmatprep.subr.mxu0 0.0
    %3430 = vmatpush2.msra.mxu0 0.0
    %3431 = vmatprep.subr.mxu0 0.0
    %3432 = vmatpush2.msra.mxu0 0.0
    %3433 = vmatprep.subr.mxu0 0.0
    %3434 = vmatpush2.msra.mxu0 0.0
    %3435 = vmatprep.subr.mxu0 0.0
    %3436 = vmatpush2.msra.mxu0 0.0
    %3437 = vmatprep.subr.mxu0 0.0
    %3438 = vmatpush2.msra.mxu0 0.0
    %3439 = vmatprep.subr.mxu0 0.0
    %3440 = vmatpush2.msra.mxu0 0.0
    %3441 = vmatprep.subr.mxu0 0.0
    %3442 = vmatpush2.msra.mxu0 0.0
    %3443 = vmatprep.subr.mxu0 0.0
    %3444 = vmatpush2.msra.mxu0 0.0
    %3445 = vmatprep.subr.mxu0 0.0
    %3446 = vmatpush2.msra.mxu0 0.0
    %3447 = vmatprep.subr.mxu0 0.0
    %3448 = vmatpush2.msra.mxu0 0.0
    %3449 = vmatprep.subr.mxu0 0.0
    %3450 = vmatpush2.msra.mxu0 0.0
    %3451 = vmatprep.mubr.f32.mxu0 0.0
    %3452 = vmatmul.mubr.f32.gmra.mxu0 %v3382
    %v3453 = vpop.f32.mrf.mxu0
    %v3454 = vadd.f32 %v3380, %v3453
    %v3455 = vpop.f32.mrf.mxu0
    %3456 = vmatprep.mubr.f32.mxu0 0.0
    %3457 = vmatmul.mubr.f32.gmra.mxu0 %v3385
    %v3458 = vpop.f32.mrf.mxu0
    %v3459 = vadd.f32 %v3380, %v3458
    %v3460 = vpop.f32.mrf.mxu0
    %3461 = vdwg.mxu0
    %v3462 = vadd.f32 %v1932, %v3454
    %v3463 = vadd.f32 %v1933, %v3459
    %v3464 = vld [vmem:[#allocation5 + $0x148] sm:$0x1]
    %v3465 = vld [vmem:[#allocation5 + $0x150] sm:$0x1]
    %v3466 = vsel %vm140, %v3462, 0.0
    %3467 = vadd.xlane.f32.xlu0 %v3466
    %v3468 = vpop.xlane.xlu0 %3467
    %v3469 = vsel %vm140, %v3463, 0.0
    %3470 = vadd.xlane.f32.xlu0 %v3469
    %v3471 = vpop.xlane.xlu0 %3470
    %v3472 = vmul.f32 %v3468, %v1672
    %v3473 = vmul.f32 %v3471, %v1672
    %v3474 = vsub.f32 %v3462, %v3472
    %v3475 = vsub.f32 %v3463, %v3473
    %v3476 = vmul.f32 %v3474, %v3474
    %v3477 = vmul.f32 %v3475, %v3475
    %v3478 = vsel %vm140, %v3476, 0.0
    %3479 = vadd.xlane.f32.xlu0 %v3478
    %v3480 = vpop.xlane.xlu0 %3479
    %v3481 = vsel %vm140, %v3477, 0.0
    %3482 = vadd.xlane.f32.xlu0 %v3481
    %v3483 = vpop.xlane.xlu0 %3482
    %v3484 = vmul.f32 %v3480, %v1672
    %v3485 = vmul.f32 %v3483, %v1672
    %v3486 = vadd.f32 %v3484, 1e-05
    %v3487 = vadd.f32 %v3485, 1e-05
    %v3488 = vrsqrt.pop %v3486
    %v3489 = vrsqrt.pop %v3487
    %v3490 = vmul.f32 %v3474, %v3488
    %v3491 = vmul.f32 %v3475, %v3489
    %v3492 = vlaneseq
    %v3493 = vshrl.u32 %v3492, 7
    %v3494 = vsub.s32 0, %v3493
    %v3495 = vrot.slane %v3464, %v3494
    %v3496 = vmul.f32 %v3490, %v3495
    %v3497 = vmul.f32 %v3491, %v3495
    %v3498 = vlaneseq
    %v3499 = vshrl.u32 %v3498, 7
    %v3500 = vsub.s32 0, %v3499
    %v3501 = vrot.slane %v3465, %v3500
    %v3502 = vadd.f32 %v3496, %v3501
    %v3503 = vadd.f32 %v3497, %v3501
    %v3504 = vld [vmem:[#allocation5 + $0x158] sm:$0xff]
    %v3505 = vld [vmem:[#allocation5 + $0x160] sm:$0xff]
    %v3506 = vld [vmem:[#allocation5 + $0x168] sm:$0xff]
    %v3507 = vld [vmem:[#allocation5 + $0x170] sm:$0xff]
    %v3508 = vld [vmem:[#allocation5 + $0x178] sm:$0x1]
    %v3509 = vlaneseq
    %v3510 = vshrl.u32 %v3509, 7
    %v3511 = vsub.s32 0, %v3510
    %v3512 = vrot.slane %v3508, %v3511
    %v3514 = vsel %vm140, %v3502, 0
    %v3517 = vsel %vm140, %v3503, 0
    %3519 = vmatprep.subr.mxu0 0.0
    %3520 = vmatpush1.msra.mxu0 0.0
    %3521 = vmatprep.subr.mxu0 0.0
    %3522 = vmatpush1.msra.mxu0 0.0
    %3523 = vmatprep.subr.mxu0 0.0
    %3524 = vmatpush1.msra.mxu0 0.0
    %3525 = vmatprep.subr.mxu0 0.0
    %3526 = vmatpush1.msra.mxu0 0.0
    %3527 = vmatprep.subr.mxu0 0.0
    %3528 = vmatpush1.msra.mxu0 0.0
    %3529 = vmatprep.subr.mxu0 0.0
    %3530 = vmatpush1.msra.mxu0 0.0
    %3531 = vmatprep.subr.mxu0 0.0
    %3532 = vmatpush1.msra.mxu0 0.0
    %3533 = vmatprep.subr.mxu0 0.0
    %3534 = vmatpush1.msra.mxu0 0.0
    %3535 = vmatprep.subr.mxu0 0.0
    %3536 = vmatpush1.msra.mxu0 0.0
    %3537 = vmatprep.subr.mxu0 0.0
    %3538 = vmatpush1.msra.mxu0 0.0
    %3539 = vmatprep.subr.mxu0 0.0
    %3540 = vmatpush1.msra.mxu0 0.0
    %3541 = vmatprep.subr.mxu0 0.0
    %3542 = vmatpush1.msra.mxu0 0.0
    %3543 = vmatprep.subr.mxu0 0.0
    %3544 = vmatpush1.msra.mxu0 %v3507
    %3545 = vmatprep.subr.mxu0 0.0
    %3546 = vmatpush1.msra.mxu0 %v3506
    %3547 = vmatprep.subr.mxu0 0.0
    %3548 = vmatpush1.msra.mxu0 %v3505
    %3549 = vmatprep.subr.mxu0 0.0
    %3550 = vmatpush1.msra.mxu0 %v3504
    %3551 = vmatprep.subr.mxu0 0.0
    %3552 = vmatpush2.msra.mxu0 0.0
    %3553 = vmatprep.subr.mxu0 0.0
    %3554 = vmatpush2.msra.mxu0 0.0
    %3555 = vmatprep.subr.mxu0 0.0
    %3556 = vmatpush2.msra.mxu0 0.0
    %3557 = vmatprep.subr.mxu0 0.0
    %3558 = vmatpush2.msra.mxu0 0.0
    %3559 = vmatprep.subr.mxu0 0.0
    %3560 = vmatpush2.msra.mxu0 0.0
    %3561 = vmatprep.subr.mxu0 0.0
    %3562 = vmatpush2.msra.mxu0 0.0
    %3563 = vmatprep.subr.mxu0 0.0
    %3564 = vmatpush2.msra.mxu0 0.0
    %3565 = vmatprep.subr.mxu0 0.0
    %3566 = vmatpush2.msra.mxu0 0.0
    %3567 = vmatprep.subr.mxu0 0.0
    %3568 = vmatpush2.msra.mxu0 0.0
    %3569 = vmatprep.subr.mxu0 0.0
    %3570 = vmatpush2.msra.mxu0 0.0
    %3571 = vmatprep.subr.mxu0 0.0
    %3572 = vmatpush2.msra.mxu0 0.0
    %3573 = vmatprep.subr.mxu0 0.0
    %3574 = vmatpush2.msra.mxu0 0.0
    %3575 = vmatprep.subr.mxu0 0.0
    %3576 = vmatpush2.msra.mxu0 0.0
    %3577 = vmatprep.subr.mxu0 0.0
    %3578 = vmatpush2.msra.mxu0 0.0
    %3579 = vmatprep.subr.mxu0 0.0
    %3580 = vmatpush2.msra.mxu0 0.0
    %3581 = vmatprep.subr.mxu0 0.0
    %3582 = vmatpush2.msra.mxu0 0.0
    %3583 = vmatprep.mubr.f32.mxu0 0.0
    %3584 = vmatmul.mubr.f32.gmra.mxu0 %v3514
    %v3585 = vpop.f32.mrf.mxu0
    %v3586 = vadd.f32 %v3512, %v3585
    %v3587 = vpop.f32.mrf.mxu0
    %3588 = vmatprep.mubr.f32.mxu0 0.0
    %3589 = vmatmul.mubr.f32.gmra.mxu0 %v3517
    %v3590 = vpop.f32.mrf.mxu0
    %v3591 = vadd.f32 %v3512, %v3590
    %v3592 = vpop.f32.mrf.mxu0
    %3593 = vdwg.mxu0
    %v3594 = vmax.f32 %v3586, 0.0
    %v3595 = vmax.f32 %v3591, 0.0
    %v3596 = vld [vmem:[#allocation5 + $0x180] sm:$0xff]
    %v3597 = vld [vmem:[#allocation5 + $0x188] sm:$0xff]
    %v3598 = vld [vmem:[#allocation5 + $0x190] sm:$0xff]
    %v3599 = vld [vmem:[#allocation5 + $0x198] sm:$0xff]
    %v3600 = vld [vmem:[#allocation5 + $0x1a0] sm:$0xff]
    %v3601 = vld [vmem:[#allocation5 + $0x1a8] sm:$0xff]
    %v3602 = vld [vmem:[#allocation5 + $0x1b0] sm:$0xff]
    %v3603 = vld [vmem:[#allocation5 + $0x1b8] sm:$0xff]
    %v3604 = vld [vmem:[#allocation5 + $0x1c0] sm:$0x1]
    %v3605 = vlaneseq
    %v3606 = vshrl.u32 %v3605, 7
    %v3607 = vsub.s32 0, %v3606
    %v3608 = vrot.slane %v3604, %v3607
    %v3610 = vsel %vm1810, %v3594, 0
    %v3613 = vsel %vm1810, %v3595, 0
    %3615 = vmatprep.subr.mxu0 0.0
    %3616 = vmatpush1.msra.mxu0 0.0
    %3617 = vmatprep.subr.mxu0 0.0
    %3618 = vmatpush1.msra.mxu0 0.0
    %3619 = vmatprep.subr.mxu0 0.0
    %3620 = vmatpush1.msra.mxu0 0.0
    %3621 = vmatprep.subr.mxu0 0.0
    %3622 = vmatpush1.msra.mxu0 0.0
    %3623 = vmatprep.subr.mxu0 0.0
    %3624 = vmatpush1.msra.mxu0 0.0
    %3625 = vmatprep.subr.mxu0 0.0
    %3626 = vmatpush1.msra.mxu0 0.0
    %3627 = vmatprep.subr.mxu0 0.0
    %3628 = vmatpush1.msra.mxu0 0.0
    %3629 = vmatprep.subr.mxu0 0.0
    %3630 = vmatpush1.msra.mxu0 0.0
    %3631 = vmatprep.subr.mxu0 0.0
    %3632 = vmatpush1.msra.mxu0 %v3603
    %3633 = vmatprep.subr.mxu0 0.0
    %3634 = vmatpush1.msra.mxu0 %v3602
    %3635 = vmatprep.subr.mxu0 0.0
    %3636 = vmatpush1.msra.mxu0 %v3601
    %3637 = vmatprep.subr.mxu0 0.0
    %3638 = vmatpush1.msra.mxu0 %v3600
    %3639 = vmatprep.subr.mxu0 0.0
    %3640 = vmatpush1.msra.mxu0 %v3599
    %3641 = vmatprep.subr.mxu0 0.0
    %3642 = vmatpush1.msra.mxu0 %v3598
    %3643 = vmatprep.subr.mxu0 0.0
    %3644 = vmatpush1.msra.mxu0 %v3597
    %3645 = vmatprep.subr.mxu0 0.0
    %3646 = vmatpush1.msra.mxu0 %v3596
    %3647 = vmatprep.subr.mxu0 0.0
    %3648 = vmatpush2.msra.mxu0 0.0
    %3649 = vmatprep.subr.mxu0 0.0
    %3650 = vmatpush2.msra.mxu0 0.0
    %3651 = vmatprep.subr.mxu0 0.0
    %3652 = vmatpush2.msra.mxu0 0.0
    %3653 = vmatprep.subr.mxu0 0.0
    %3654 = vmatpush2.msra.mxu0 0.0
    %3655 = vmatprep.subr.mxu0 0.0
    %3656 = vmatpush2.msra.mxu0 0.0
    %3657 = vmatprep.subr.mxu0 0.0
    %3658 = vmatpush2.msra.mxu0 0.0
    %3659 = vmatprep.subr.mxu0 0.0
    %3660 = vmatpush2.msra.mxu0 0.0
    %3661 = vmatprep.subr.mxu0 0.0
    %3662 = vmatpush2.msra.mxu0 0.0
    %3663 = vmatprep.subr.mxu0 0.0
    %3664 = vmatpush2.msra.mxu0 0.0
    %3665 = vmatprep.subr.mxu0 0.0
    %3666 = vmatpush2.msra.mxu0 0.0
    %3667 = vmatprep.subr.mxu0 0.0
    %3668 = vmatpush2.msra.mxu0 0.0
    %3669 = vmatprep.subr.mxu0 0.0
    %3670 = vmatpush2.msra.mxu0 0.0
    %3671 = vmatprep.subr.mxu0 0.0
    %3672 = vmatpush2.msra.mxu0 0.0
    %3673 = vmatprep.subr.mxu0 0.0
    %3674 = vmatpush2.msra.mxu0 0.0
    %3675 = vmatprep.subr.mxu0 0.0
    %3676 = vmatpush2.msra.mxu0 0.0
    %3677 = vmatprep.subr.mxu0 0.0
    %3678 = vmatpush2.msra.mxu0 0.0
    %3679 = vmatprep.mubr.f32.mxu0 0.0
    %3680 = vmatmul.mubr.f32.gmra.mxu0 %v3610
    %v3681 = vpop.f32.mrf.mxu0
    %v3682 = vadd.f32 %v3608, %v3681
    %v3683 = vpop.f32.mrf.mxu0
    %3684 = vmatprep.mubr.f32.mxu0 0.0
    %3685 = vmatmul.mubr.f32.gmra.mxu0 %v3613
    %v3686 = vpop.f32.mrf.mxu0
    %v3687 = vadd.f32 %v3608, %v3686
    %v3688 = vpop.f32.mrf.mxu0
    %3689 = vdwg.mxu0
    %v3690 = vadd.f32 %v3502, %v3682
    %v3691 = vadd.f32 %v3503, %v3687
    %v3692 = vld [vmem:[#allocation5 + $0x1c8] sm:$0x1]
    %v3693 = vld [vmem:[#allocation5 + $0x1d0] sm:$0x1]
    %v3694 = vsel %vm140, %v3690, 0.0
    %3695 = vadd.xlane.f32.xlu0 %v3694
    %v3696 = vpop.xlane.xlu0 %3695
    %v3697 = vsel %vm140, %v3691, 0.0
    %3698 = vadd.xlane.f32.xlu0 %v3697
    %v3699 = vpop.xlane.xlu0 %3698
    %v3700 = vmul.f32 %v3696, %v1672
    %v3701 = vmul.f32 %v3699, %v1672
    %v3702 = vsub.f32 %v3690, %v3700
    %v3703 = vsub.f32 %v3691, %v3701
    %v3704 = vmul.f32 %v3702, %v3702
    %v3705 = vmul.f32 %v3703, %v3703
    %v3706 = vsel %vm140, %v3704, 0.0
    %3707 = vadd.xlane.f32.xlu0 %v3706
    %v3708 = vpop.xlane.xlu0 %3707
    %v3709 = vsel %vm140, %v3705, 0.0
    %3710 = vadd.xlane.f32.xlu0 %v3709
    %v3711 = vpop.xlane.xlu0 %3710
    %v3712 = vmul.f32 %v3708, %v1672
    %v3713 = vmul.f32 %v3711, %v1672
    %v3714 = vadd.f32 %v3712, 1e-05
    %v3715 = vadd.f32 %v3713, 1e-05
    %v3716 = vrsqrt.pop %v3714
    %v3717 = vrsqrt.pop %v3715
    %v3718 = vmul.f32 %v3702, %v3716
    %v3719 = vmul.f32 %v3703, %v3717
    %v3720 = vlaneseq
    %v3721 = vshrl.u32 %v3720, 7
    %v3722 = vsub.s32 0, %v3721
    %v3723 = vrot.slane %v3692, %v3722
    %v3724 = vmul.f32 %v3718, %v3723
    %v3725 = vmul.f32 %v3719, %v3723
    %v3726 = vlaneseq
    %v3727 = vshrl.u32 %v3726, 7
    %v3728 = vsub.s32 0, %v3727
    %v3729 = vrot.slane %v3693, %v3728
    %v3730 = vadd.f32 %v3724, %v3729
    %v3731 = vadd.f32 %v3725, %v3729
    %3732 = vst.msk [vmem:[#allocation7] sm:$0xff] %vm140, %v3730
    %3733 = vst.msk [vmem:[#allocation7 + $0x8] sm:$0xff] %vm140, %v3731
    // Predicated region
    $region18: #{tpu_custom_call.1} parent=1 // pred_check
      _
    $region19: #{tpu_custom_call.1} parent=1 // pred_check_branch
      %3735 = sbr.rel (0) target = $region21
    $region20: #{tpu_custom_call.1} parent=1 // pred_region
      %s3737 = ssub.s32 256, 256
      %3738 = vsyncadd [#allocation4], %s3737
      %s3739 = sshll.u32 [#allocation7], 4
      %s3740 = int_to_ptr.vmem [resolvable:$true] %s3739
      %3745 = dma.vmem_to_hbm [thread:$0]  %s3740, 256, %s2, [#allocation4], 128, 128, 8
    $region21: #{tpu_custom_call.1} parent=1 // pred_fallthru
      _
    // Predicated region
    $region22: #{tpu_custom_call.1} parent=1 // pred_check
      _
    $region23: #{tpu_custom_call.1} parent=1 // pred_check_branch
      %3747 = sbr.rel (0) target = $region25
    $region24: #{tpu_custom_call.1} parent=1 // pred_region
      %3748 = dma.done [#allocation4], 256
    $region25: #{tpu_custom_call.1} parent=1 // pred_fallthru
      _
    %3749 = vsyncpa [#allocation3], 1
    %3750 = vsyncpa [#allocation6], 1
    %3751 = vsyncpa [#allocation4], 1

</llo_original>
